<compile_context>
chip_gen: v7x
topology: tpu7x:2x2x1
jax: 0.10.0
libtpu: 0.0.40
codegen_flags: <defaults>
</compile_context>

<pallas_src>
import functools

import jax
import jax.numpy as jnp
from jax.experimental import pallas as pl
from jax.experimental.pallas import tpu as pltpu

NUM_CLASSES = 2
FEATURE_DIM = 1024
LANE = 128
VMEM_LIMIT = 32 * 1024 * 1024


def _round_up(x, m):
    return ((x + m - 1) // m) * m


def _row_tile(ho, wo):
    """Conv output-row tile: largest divisor of ho with tr*wo a multiple of 8 and ~<=2048."""
    target = max(1, 2048 // max(wo, 1))
    best = None
    for d in range(1, ho + 1):
        if ho % d == 0 and d <= target and (d * wo) % 8 == 0:
            best = d
    return best if best is not None else ho


def _spatial_tile(hw):
    """Head spatial tile: largest divisor of hw that is a multiple of 8 and <= 1024."""
    best = None
    for t in range(8, min(hw, 1024) + 1, 8):
        if hw % t == 0:
            best = t
    return best if best is not None else min(1024, _round_up(max(hw, 8), 8))


# ----------------------------------------------------------------------------- kernels
def conv_s2d_kernel(y_ref, w_ref, b_ref, o_ref, *, tr, wo, relu):
    """3x3 / stride-2 / pad-1 conv (+ folded BN, + optional ReLU) on a space-to-depth
    input, as 4 accumulated shifted-window matmuls -- no im2col matrix in HBM.

      y_ref: (Hy, Wy, 4*Cin) bf16  whole padded s2d image for this batch (one DMA per batch)
      w_ref: (4, 4*Cin, Cout) bf16 tap-major effective weights (BN scale folded in)
      b_ref: (1, Cout) f32         folded BN bias
      o_ref: (tr*wo, Cout) bf16    flattened-spatial output tile
    """
    r0 = pl.program_id(1) * tr
    c4 = y_ref.shape[-1]
    cout = w_ref.shape[-1]
    block = y_ref[pl.ds(r0, tr + 1)]                        # (tr+1, Wy, 4C)
    acc = jnp.zeros((tr * wo, cout), jnp.float32)
    for t, (u, v) in enumerate(((0, 0), (0, 1), (1, 0), (1, 1))):
        win = block[u:u + tr, v:v + wo, :]                  # shifted stride-1 window
        acc += jnp.dot(win.reshape(tr * wo, c4), w_ref[t],
                       preferred_element_type=jnp.float32)
    acc += b_ref[...]
    if relu:
        acc = jnp.maximum(acc, 0.0)
    o_ref[...] = acc.astype(o_ref.dtype)


def feature_head_kernel(x_ref, w3_ref, b3_ref, wc_ref, bc_ref,
                        pred_ref, feat_ref, acc_ref, *, hw, ts):
    """Fused: 1x1 conv (256->1024, folded 'norm5' BN) -> ReLU -> adaptive_avg_pool2d((1,1))
    -> flatten -> Linear(1024 -> NUM_CLASSES).  The 1024-ch feature map stays in VMEM.

      x_ref: (ts, 256) bf16 spatial tile for batch b; pred/feat: (B,128)/(B,1024) f32 resident.
    """
    b = pl.program_id(0)
    s = pl.program_id(1)

    @pl.when(s == 0)
    def _():
        acc_ref[...] = jnp.zeros_like(acc_ref)

    y = jnp.dot(x_ref[...], w3_ref[...], preferred_element_type=jnp.float32)
    y = y + b3_ref[...]
    y = jnp.maximum(y, 0.0)
    # mask spatial rows that only exist because HW was padded up to a multiple of ts
    row = s * ts + jax.lax.broadcasted_iota(jnp.int32, (ts, 1), 0)
    y = jnp.where(row < hw, y, 0.0)
    acc_ref[...] += jnp.sum(y, axis=0, keepdims=True)

    @pl.when(s == pl.num_programs(1) - 1)
    def _():
        pooled = acc_ref[...] * (1.0 / hw)                  # (1, 1024) f32
        feat_ref[pl.ds(b, 1), :] = pooled
        logits = jnp.dot(pooled.astype(wc_ref.dtype), wc_ref[...],
                         preferred_element_type=jnp.float32) + bc_ref[...]
        pred_ref[pl.ds(b, 1), :] = logits


# ----------------------------------------------------------------------------- glue
def _s2d_weights(w_hwio, scale):
    """Remap a (3,3,Cin,Cout) HWIO kernel (BN scale folded) onto 2x2 stride-1 taps over the
    space-to-depth input.  Exact identity: out[h,w] = sum_{u,v} Y[h+u, w+v] @ Weff[u,v]."""
    kh, kw, cin, cout = w_hwio.shape
    w = w_hwio * scale.reshape(1, 1, 1, cout)
    taps = []
    for u in range(2):
        for v in range(2):
            phases = []
            for a in range(2):
                for b in range(2):
                    di, dj = 2 * u + a, 2 * v + b
                    if di < kh and dj < kw:
                        phases.append(w[di, dj])
                    else:
                        phases.append(jnp.zeros((cin, cout), w.dtype))
            taps.append(jnp.concatenate(phases, axis=0))    # (4*cin, cout)
    return jnp.stack(taps, axis=0)                           # (4, 4*cin, cout)


def conv3x3_s2_bn(x_nhwc, w_hwio, scale, bias, *, relu=True):
    """Conv2d(3x3, stride 2, pad 1, no bias) + folded eval-BatchNorm (+ ReLU)."""
    B, H, W, C = x_nhwc.shape
    assert H % 2 == 0 and W % 2 == 0
    cout = w_hwio.shape[-1]
    Ho, Wo = H // 2, W // 2
    Hy, Wy = Ho + 1, Wo + 1
    C4 = 4 * C

    x = x_nhwc.astype(jnp.bfloat16)                          # cast before any padding
    xp = jnp.pad(x, ((0, 0), (1, 1), (1, 1), (0, 0)))
    y = xp.reshape(B, Hy, 2, Wy, 2, C).transpose(0, 1, 3, 2, 4, 5).reshape(B, Hy, Wy, C4)

    weff = _s2d_weights(w_hwio, scale).astype(jnp.bfloat16)  # (4, 4C, cout)
    b2d = bias.reshape(1, cout).astype(jnp.float32)

    tr = _row_tile(Ho, Wo)
    grid = (B, Ho // tr)
    cost = pl.CostEstimate(
        flops=2 * B * Ho * Wo * 4 * C4 * cout,
        transcendentals=0,
        bytes_accessed=B * Hy * Wy * C4 * 2 + 4 * C4 * cout * 2 + B * Ho * Wo * cout * 2,
    )
    out = pl.pallas_call(
        functools.partial(conv_s2d_kernel, tr=tr, wo=Wo, relu=relu),
        out_shape=jax.ShapeDtypeStruct((B, Ho * Wo, cout), jnp.bfloat16),
        grid=grid,
        in_specs=[
            pl.BlockSpec((None, Hy, Wy, C4), lambda b, i: (b, 0, 0, 0)),
            pl.BlockSpec((4, C4, cout), lambda b, i: (0, 0, 0)),
            pl.BlockSpec((1, cout), lambda b, i: (0, 0)),
        ],
        out_specs=pl.BlockSpec((None, tr * Wo, cout), lambda b, i: (b, i, 0)),
        compiler_params=pltpu.CompilerParams(
            dimension_semantics=("parallel", "parallel"),
            vmem_limit_bytes=VMEM_LIMIT),
        cost_estimate=cost,
    )(y, weff, b2d)
    return out.reshape(B, Ho, Wo, cout)


def fused_feature_head(h_nhwc, w3, s3, b3, w_cls, b_cls):
    """1x1 conv (256->1024) + BN + relu + adaptive_avg_pool2d((1,1)) + flatten + Linear, fused."""
    B, H, W, C = h_nhwc.shape
    HW = H * W
    F = w3.shape[-1]
    NP = _round_up(NUM_CLASSES, LANE)

    ts = _spatial_tile(HW)
    HWp = _round_up(HW, ts)
    x = h_nhwc.reshape(B, HW, C)
    if HWp != HW:
        x = jnp.pad(x, ((0, 0), (0, HWp - HW), (0, 0)))      # bf16 pad; kernel masks these rows

    w3f = (w3 * s3.reshape(1, F)).astype(jnp.bfloat16)
    b3r = b3.reshape(1, F).astype(jnp.float32)
    wcp = jnp.pad(w_cls, ((0, 0), (0, NP - NUM_CLASSES))).astype(jnp.bfloat16)
    bcp = jnp.pad(b_cls.reshape(1, NUM_CLASSES),
                  ((0, 0), (0, NP - NUM_CLASSES))).astype(jnp.float32)

    cost = pl.CostEstimate(
        flops=2 * B * HWp * C * F + 2 * B * F * NP,
        transcendentals=0,
        bytes_accessed=B * HWp * C * 2 + C * F * 2 + F * NP * 2 + B * (F + NP) * 4,
    )
    pred_p, feat = pl.pallas_call(
        functools.partial(feature_head_kernel, hw=HW, ts=ts),
        out_shape=(jax.ShapeDtypeStruct((B, NP), jnp.float32),
                   jax.ShapeDtypeStruct((B, F), jnp.float32)),
        grid=(B, HWp // ts),
        in_specs=[
            pl.BlockSpec((None, ts, C), lambda b, s: (b, s, 0)),
            pl.BlockSpec((C, F), lambda b, s: (0, 0)),
            pl.BlockSpec((1, F), lambda b, s: (0, 0)),
            pl.BlockSpec((F, NP), lambda b, s: (0, 0)),
            pl.BlockSpec((1, NP), lambda b, s: (0, 0)),
        ],
        out_specs=(
            pl.BlockSpec((B, NP), lambda b, s: (0, 0)),
            pl.BlockSpec((B, F), lambda b, s: (0, 0)),
        ),
        scratch_shapes=[pltpu.VMEM((1, F), jnp.float32)],
        # TODO(synk): batch axis kept "arbitrary" because pred/feat share one resident output
        # block across batches; per-batch output blocks would make this megacore-parallel too.
        compiler_params=pltpu.CompilerParams(
            dimension_semantics=("arbitrary", "arbitrary"),
            vmem_limit_bytes=VMEM_LIMIT),
        cost_estimate=cost,
    )(x, w3f, b3r, wcp, bcp)
    return pred_p[:, :NUM_CLASSES], feat


# ----------------------------------------------------------------------------- model
def init_params(key):
    ks = jax.random.split(key, 11)

    def conv_w(k, kh, kw, cin, cout):
        fan_in = kh * kw * cin
        return jax.random.normal(k, (kh, kw, cin, cout), jnp.float32) / jnp.sqrt(fan_in)

    def bn(kg, kb, c):
        # folded inference BatchNorm: scale = gamma/sqrt(var+eps), bias = beta - mean*scale
        gamma = 1.0 + 0.1 * jax.random.normal(kg, (c,), jnp.float32)
        beta = 0.1 * jax.random.normal(kb, (c,), jnp.float32)
        return gamma, beta

    p = {}
    p["w1"] = conv_w(ks[0], 3, 3, 3, 64)
    p["s1"], p["b1"] = bn(ks[1], ks[2], 64)
    p["w2"] = conv_w(ks[3], 3, 3, 64, 256)
    p["s2"], p["b2"] = bn(ks[4], ks[5], 256)
    p["w3"] = jax.random.normal(ks[6], (256, FEATURE_DIM), jnp.float32) / jnp.sqrt(256.0)
    p["s3"], p["b3"] = bn(ks[7], ks[8], FEATURE_DIM)         # corresponds to norm5 (no ReLU)
    p["w_cls"] = jax.random.normal(ks[9], (FEATURE_DIM, NUM_CLASSES), jnp.float32) / jnp.sqrt(float(FEATURE_DIM))
    p["b_cls"] = 0.01 * jax.random.normal(ks[10], (NUM_CLASSES,), jnp.float32)
    return p


def forward(params, x_nchw, get_feat=False, frozen_mode=False):
    # frozen_mode only toggles train/eval + no_grad in PyTorch; BN is folded (eval) here
    # and there is no autodiff, so the computed values are identical.
    del frozen_mode
    x = jnp.transpose(x_nchw, (0, 2, 3, 1))                  # NCHW -> NHWC
    h = conv3x3_s2_bn(x, params["w1"], params["s1"], params["b1"], relu=True)
    h = conv3x3_s2_bn(h, params["w2"], params["s2"], params["b2"], relu=True)
    pred, pooled = fused_feature_head(h, params["w3"], params["s3"], params["b3"],
                                      params["w_cls"], params["b_cls"])
    if get_feat:
        return pred, pooled
    return pred


def reference_forward(params, x_nchw):
    """Pure-JAX f32 reference of the same reduced encoder + head (tolerance check)."""
    x = jnp.transpose(x_nchw, (0, 2, 3, 1)).astype(jnp.float32)

    def conv_bn(h, w, s, b, relu):
        y = jax.lax.conv_general_dilated(
            h, w, window_strides=(2, 2), padding=((1, 1), (1, 1)),
            dimension_numbers=("NHWC", "HWIO", "NHWC"),
            precision=jax.lax.Precision.HIGHEST)
        y = y * s.reshape(1, 1, 1, -1) + b.reshape(1, 1, 1, -1)
        return jnp.maximum(y, 0.0) if relu else y

    h = conv_bn(x, params["w1"], params["s1"], params["b1"], True)
    h = conv_bn(h, params["w2"], params["s2"], params["b2"], True)
    feats = (jnp.einsum("bhwc,cf->bhwf", h, params["w3"],
                        precision=jax.lax.Precision.HIGHEST)
             * params["s3"] + params["b3"])
    out = jnp.maximum(feats, 0.0).mean(axis=(1, 2))
    pred = out @ params["w_cls"] + params["b_cls"].reshape(1, -1)
    return pred, out


# ----------------------------------------------------------------------------- main
if __name__ == "__main__":
    key = jax.random.PRNGKey(0)
    k_param, k_x = jax.random.split(key)
    params = init_params(k_param)

    # small, deterministic input consistent with the module's NCHW image interface
    x = jax.random.normal(k_x, (2, 3, 16, 16), jnp.float32)

    fwd = jax.jit(functools.partial(forward, get_feat=True))
    pred, feat = fwd(params, x)
    pred = jax.block_until_ready(pred)
    feat = jax.block_until_ready(feat)

    assert pred.shape == (2, NUM_CLASSES) and pred.dtype == jnp.float32
    assert feat.shape == (2, FEATURE_DIM) and feat.dtype == jnp.float32
    assert bool(jnp.all(jnp.isfinite(pred))) and bool(jnp.all(jnp.isfinite(feat)))

    # tolerance-checked pure-JAX reference (kernel runs bf16 matmuls with f32 accumulation)
    pred_ref, feat_ref = reference_forward(params, x)
    ptol = 0.08 + 0.08 * float(jnp.max(jnp.abs(pred_ref)))
    ftol = 0.08 + 0.08 * float(jnp.max(jnp.abs(feat_ref)))
    assert float(jnp.max(jnp.abs(pred - pred_ref))) < ptol, "pred mismatch vs reference"
    assert float(jnp.max(jnp.abs(feat - feat_ref))) < ftol, "feat mismatch vs reference"

    print("KERNEL_OK")
</pallas_src>

<mosaic_0001>
module attributes {stable_mosaic.version = 11 : i64} {
  func.func @conv_s2d_kernel(%arg0: i32, %arg1: i32, %arg2: memref<1x9x9x12xbf16, #tpu.memory_space<vmem>>, %arg3: memref<4x12x64xbf16, #tpu.memory_space<vmem>>, %arg4: memref<1x64xf32, #tpu.memory_space<vmem>>, %arg5: memref<1x64x64xbf16, #tpu.memory_space<vmem>>) attributes {dimension_semantics = [#tpu.dimension_semantics<parallel>, #tpu.dimension_semantics<parallel>], iteration_bounds = array<i64: 2, 1>, scalar_prefetch = 0 : i64, scratch_operands = 0 : i64, tpu.core_type = #tpu.core_type<tc>, window_params = [{transform_indices = @transform_0, window_bounds = array<i64: 1, 9, 9, 12>}, {pipeline_mode = #tpu.pipeline_mode<synchronous>, transform_indices = @transform_1, window_bounds = array<i64: 4, 12, 64>}, {pipeline_mode = #tpu.pipeline_mode<synchronous>, transform_indices = @transform_2, window_bounds = array<i64: 1, 64>}, {transform_indices = @transform_3, window_bounds = array<i64: 1, 64, 64>}]} {
    %c8_i32 = arith.constant 8 : i32
    %0 = arith.muli %arg1, %c8_i32 : i32
    %c0 = arith.constant 0 : index
    %1 = arith.index_cast %0 : i32 to index
    %c0_0 = arith.constant 0 : index
    %c0_1 = arith.constant 0 : index
    %2 = vector.load %arg2[%c0, %1, %c0_0, %c0_1] : memref<1x9x9x12xbf16, #tpu.memory_space<vmem>>, vector<1x9x9x12xbf16>
    %3 = vector.shape_cast %2 : vector<1x9x9x12xbf16> to vector<9x9x12xbf16>
    %cst = arith.constant 0.000000e+00 : f32
    %4 = vector.broadcast %cst : f32 to vector<64x64xf32>
    %5 = vector.extract_strided_slice %3 {offsets = [0, 0, 0], sizes = [8, 8, 12], strides = [1, 1, 1]} : vector<9x9x12xbf16> to vector<8x8x12xbf16>
    %6 = vector.shape_cast %5 : vector<8x8x12xbf16> to vector<64x12xbf16>
    %c0_2 = arith.constant 0 : index
    %c0_3 = arith.constant 0 : index
    %c0_4 = arith.constant 0 : index
    %7 = vector.load %arg3[%c0_2, %c0_3, %c0_4] : memref<4x12x64xbf16, #tpu.memory_space<vmem>>, vector<1x12x64xbf16>
    %8 = vector.shape_cast %7 : vector<1x12x64xbf16> to vector<12x64xbf16>
    %cst_5 = arith.constant dense<0.000000e+00> : vector<64x64xf32>
    %9 = tpu.matmul %6, %8, %cst_5 {dimension_numbers = #tpu.dot_dimension_numbers<[1], [0], [0], [1], [0, 0, 1, 1], [], []>} : vector<64x12xbf16>, vector<12x64xbf16>, vector<64x64xf32> -> vector<64x64xf32>
    %10 = arith.addf %4, %9 : vector<64x64xf32>
    %11 = vector.extract_strided_slice %3 {offsets = [0, 1, 0], sizes = [8, 8, 12], strides = [1, 1, 1]} : vector<9x9x12xbf16> to vector<8x8x12xbf16>
    %12 = vector.shape_cast %11 : vector<8x8x12xbf16> to vector<64x12xbf16>
    %c1 = arith.constant 1 : index
    %c0_6 = arith.constant 0 : index
    %c0_7 = arith.constant 0 : index
    %13 = vector.load %arg3[%c1, %c0_6, %c0_7] : memref<4x12x64xbf16, #tpu.memory_space<vmem>>, vector<1x12x64xbf16>
    %14 = vector.shape_cast %13 : vector<1x12x64xbf16> to vector<12x64xbf16>
    %cst_8 = arith.constant dense<0.000000e+00> : vector<64x64xf32>
    %15 = tpu.matmul %12, %14, %cst_8 {dimension_numbers = #tpu.dot_dimension_numbers<[1], [0], [0], [1], [0, 0, 1, 1], [], []>} : vector<64x12xbf16>, vector<12x64xbf16>, vector<64x64xf32> -> vector<64x64xf32>
    %16 = arith.addf %10, %15 : vector<64x64xf32>
    %17 = vector.extract_strided_slice %3 {offsets = [1, 0, 0], sizes = [8, 8, 12], strides = [1, 1, 1]} : vector<9x9x12xbf16> to vector<8x8x12xbf16>
    %18 = vector.shape_cast %17 : vector<8x8x12xbf16> to vector<64x12xbf16>
    %c2 = arith.constant 2 : index
    %c0_9 = arith.constant 0 : index
    %c0_10 = arith.constant 0 : index
    %19 = vector.load %arg3[%c2, %c0_9, %c0_10] : memref<4x12x64xbf16, #tpu.memory_space<vmem>>, vector<1x12x64xbf16>
    %20 = vector.shape_cast %19 : vector<1x12x64xbf16> to vector<12x64xbf16>
    %cst_11 = arith.constant dense<0.000000e+00> : vector<64x64xf32>
    %21 = tpu.matmul %18, %20, %cst_11 {dimension_numbers = #tpu.dot_dimension_numbers<[1], [0], [0], [1], [0, 0, 1, 1], [], []>} : vector<64x12xbf16>, vector<12x64xbf16>, vector<64x64xf32> -> vector<64x64xf32>
    %22 = arith.addf %16, %21 : vector<64x64xf32>
    %23 = vector.extract_strided_slice %3 {offsets = [1, 1, 0], sizes = [8, 8, 12], strides = [1, 1, 1]} : vector<9x9x12xbf16> to vector<8x8x12xbf16>
    %24 = vector.shape_cast %23 : vector<8x8x12xbf16> to vector<64x12xbf16>
    %c3 = arith.constant 3 : index
    %c0_12 = arith.constant 0 : index
    %c0_13 = arith.constant 0 : index
    %25 = vector.load %arg3[%c3, %c0_12, %c0_13] : memref<4x12x64xbf16, #tpu.memory_space<vmem>>, vector<1x12x64xbf16>
    %26 = vector.shape_cast %25 : vector<1x12x64xbf16> to vector<12x64xbf16>
    %cst_14 = arith.constant dense<0.000000e+00> : vector<64x64xf32>
    %27 = tpu.matmul %24, %26, %cst_14 {dimension_numbers = #tpu.dot_dimension_numbers<[1], [0], [0], [1], [0, 0, 1, 1], [], []>} : vector<64x12xbf16>, vector<12x64xbf16>, vector<64x64xf32> -> vector<64x64xf32>
    %28 = arith.addf %22, %27 : vector<64x64xf32>
    %c0_15 = arith.constant 0 : index
    %c0_16 = arith.constant 0 : index
    %29 = vector.load %arg4[%c0_15, %c0_16] : memref<1x64xf32, #tpu.memory_space<vmem>>, vector<1x64xf32>
    %30 = vector.broadcast %29 : vector<1x64xf32> to vector<64x64xf32>
    %31 = arith.addf %28, %30 : vector<64x64xf32>
    %cst_17 = arith.constant 0.000000e+00 : f32
    %32 = vector.broadcast %cst_17 : f32 to vector<64x64xf32>
    %33 = arith.maximumf %31, %32 : vector<64x64xf32>
    %34 = arith.truncf %33 : vector<64x64xf32> to vector<64x64xbf16>
    %c0_18 = arith.constant 0 : index
    %c0_19 = arith.constant 0 : index
    %c0_20 = arith.constant 0 : index
    %35 = vector.load %arg5[%c0_18, %c0_19, %c0_20] : memref<1x64x64xbf16, #tpu.memory_space<vmem>>, vector<1x64x64xbf16>
    %36 = vector.shape_cast %35 : vector<1x64x64xbf16> to vector<64x64xbf16>
    %37 = vector.shape_cast %34 : vector<64x64xbf16> to vector<1x64x64xbf16>
    tpu.vector_store %arg5[%c0_18, %c0_19, %c0_20], %37 {strides = array<i32>} : memref<1x64x64xbf16, #tpu.memory_space<vmem>>, vector<1x64x64xbf16>,
    return
  }
  func.func @transform_0(%arg0: i32, %arg1: i32) -> (i32, i32, i32, i32) {
    %c0_i32 = arith.constant 0 : i32
    %c0_i32_0 = arith.constant 0 : i32
    %c0_i32_1 = arith.constant 0 : i32
    %c0_i32_2 = arith.constant 0 : i32
    return %arg0, %c0_i32, %c0_i32_0, %c0_i32_1 : i32, i32, i32, i32
  }
  func.func @transform_1(%arg0: i32, %arg1: i32) -> (i32, i32, i32) {
    %c0_i32 = arith.constant 0 : i32
    %c0_i32_0 = arith.constant 0 : i32
    %c0_i32_1 = arith.constant 0 : i32
    %c0_i32_2 = arith.constant 0 : i32
    return %c0_i32, %c0_i32_0, %c0_i32_1 : i32, i32, i32
  }
  func.func @transform_2(%arg0: i32, %arg1: i32) -> (i32, i32) {
    %c0_i32 = arith.constant 0 : i32
    %c0_i32_0 = arith.constant 0 : i32
    %c0_i32_1 = arith.constant 0 : i32
    return %c0_i32, %c0_i32_0 : i32, i32
  }
  func.func @transform_3(%arg0: i32, %arg1: i32) -> (i32, i32, i32) {
    %c0_i32 = arith.constant 0 : i32
    %c0_i32_0 = arith.constant 0 : i32
    return %arg0, %arg1, %c0_i32 : i32, i32, i32
  }
}

module attributes {stable_mosaic.version = 11 : i64} {
  func.func @conv_s2d_kernel(%arg0: i32, %arg1: i32, %arg2: memref<1x5x5x256xbf16, #tpu.memory_space<vmem>>, %arg3: memref<4x256x256xbf16, #tpu.memory_space<vmem>>, %arg4: memref<1x256xf32, #tpu.memory_space<vmem>>, %arg5: memref<1x16x256xbf16, #tpu.memory_space<vmem>>) attributes {dimension_semantics = [#tpu.dimension_semantics<parallel>, #tpu.dimension_semantics<parallel>], iteration_bounds = array<i64: 2, 1>, scalar_prefetch = 0 : i64, scratch_operands = 0 : i64, tpu.core_type = #tpu.core_type<tc>, window_params = [{transform_indices = @transform_0, window_bounds = array<i64: 1, 5, 5, 256>}, {pipeline_mode = #tpu.pipeline_mode<synchronous>, transform_indices = @transform_1, window_bounds = array<i64: 4, 256, 256>}, {pipeline_mode = #tpu.pipeline_mode<synchronous>, transform_indices = @transform_2, window_bounds = array<i64: 1, 256>}, {transform_indices = @transform_3, window_bounds = array<i64: 1, 16, 256>}]} {
    %c4_i32 = arith.constant 4 : i32
    %0 = arith.muli %arg1, %c4_i32 : i32
    %c0 = arith.constant 0 : index
    %1 = arith.index_cast %0 : i32 to index
    %c0_0 = arith.constant 0 : index
    %c0_1 = arith.constant 0 : index
    %2 = vector.load %arg2[%c0, %1, %c0_0, %c0_1] : memref<1x5x5x256xbf16, #tpu.memory_space<vmem>>, vector<1x5x5x256xbf16>
    %3 = vector.shape_cast %2 : vector<1x5x5x256xbf16> to vector<5x5x256xbf16>
    %cst = arith.constant 0.000000e+00 : f32
    %4 = vector.broadcast %cst : f32 to vector<16x256xf32>
    %5 = vector.extract_strided_slice %3 {offsets = [0, 0, 0], sizes = [4, 4, 256], strides = [1, 1, 1]} : vector<5x5x256xbf16> to vector<4x4x256xbf16>
    %6 = vector.shape_cast %5 : vector<4x4x256xbf16> to vector<16x256xbf16>
    %c0_2 = arith.constant 0 : index
    %c0_3 = arith.constant 0 : index
    %c0_4 = arith.constant 0 : index
    %7 = vector.load %arg3[%c0_2, %c0_3, %c0_4] : memref<4x256x256xbf16, #tpu.memory_space<vmem>>, vector<1x256x256xbf16>
    %8 = vector.shape_cast %7 : vector<1x256x256xbf16> to vector<256x256xbf16>
    %cst_5 = arith.constant dense<0.000000e+00> : vector<16x256xf32>
    %9 = tpu.matmul %6, %8, %cst_5 {dimension_numbers = #tpu.dot_dimension_numbers<[1], [0], [0], [1], [0, 0, 1, 1], [], []>} : vector<16x256xbf16>, vector<256x256xbf16>, vector<16x256xf32> -> vector<16x256xf32>
    %10 = arith.addf %4, %9 : vector<16x256xf32>
    %11 = vector.extract_strided_slice %3 {offsets = [0, 1, 0], sizes = [4, 4, 256], strides = [1, 1, 1]} : vector<5x5x256xbf16> to vector<4x4x256xbf16>
    %12 = vector.shape_cast %11 : vector<4x4x256xbf16> to vector<16x256xbf16>
    %c1 = arith.constant 1 : index
    %c0_6 = arith.constant 0 : index
    %c0_7 = arith.constant 0 : index
    %13 = vector.load %arg3[%c1, %c0_6, %c0_7] : memref<4x256x256xbf16, #tpu.memory_space<vmem>>, vector<1x256x256xbf16>
    %14 = vector.shape_cast %13 : vector<1x256x256xbf16> to vector<256x256xbf16>
    %cst_8 = arith.constant dense<0.000000e+00> : vector<16x256xf32>
    %15 = tpu.matmul %12, %14, %cst_8 {dimension_numbers = #tpu.dot_dimension_numbers<[1], [0], [0], [1], [0, 0, 1, 1], [], []>} : vector<16x256xbf16>, vector<256x256xbf16>, vector<16x256xf32> -> vector<16x256xf32>
    %16 = arith.addf %10, %15 : vector<16x256xf32>
    %17 = vector.extract_strided_slice %3 {offsets = [1, 0, 0], sizes = [4, 4, 256], strides = [1, 1, 1]} : vector<5x5x256xbf16> to vector<4x4x256xbf16>
    %18 = vector.shape_cast %17 : vector<4x4x256xbf16> to vector<16x256xbf16>
    %c2 = arith.constant 2 : index
    %c0_9 = arith.constant 0 : index
    %c0_10 = arith.constant 0 : index
    %19 = vector.load %arg3[%c2, %c0_9, %c0_10] : memref<4x256x256xbf16, #tpu.memory_space<vmem>>, vector<1x256x256xbf16>
    %20 = vector.shape_cast %19 : vector<1x256x256xbf16> to vector<256x256xbf16>
    %cst_11 = arith.constant dense<0.000000e+00> : vector<16x256xf32>
    %21 = tpu.matmul %18, %20, %cst_11 {dimension_numbers = #tpu.dot_dimension_numbers<[1], [0], [0], [1], [0, 0, 1, 1], [], []>} : vector<16x256xbf16>, vector<256x256xbf16>, vector<16x256xf32> -> vector<16x256xf32>
    %22 = arith.addf %16, %21 : vector<16x256xf32>
    %23 = vector.extract_strided_slice %3 {offsets = [1, 1, 0], sizes = [4, 4, 256], strides = [1, 1, 1]} : vector<5x5x256xbf16> to vector<4x4x256xbf16>
    %24 = vector.shape_cast %23 : vector<4x4x256xbf16> to vector<16x256xbf16>
    %c3 = arith.constant 3 : index
    %c0_12 = arith.constant 0 : index
    %c0_13 = arith.constant 0 : index
    %25 = vector.load %arg3[%c3, %c0_12, %c0_13] : memref<4x256x256xbf16, #tpu.memory_space<vmem>>, vector<1x256x256xbf16>
    %26 = vector.shape_cast %25 : vector<1x256x256xbf16> to vector<256x256xbf16>
    %cst_14 = arith.constant dense<0.000000e+00> : vector<16x256xf32>
    %27 = tpu.matmul %24, %26, %cst_14 {dimension_numbers = #tpu.dot_dimension_numbers<[1], [0], [0], [1], [0, 0, 1, 1], [], []>} : vector<16x256xbf16>, vector<256x256xbf16>, vector<16x256xf32> -> vector<16x256xf32>
    %28 = arith.addf %22, %27 : vector<16x256xf32>
    %c0_15 = arith.constant 0 : index
    %c0_16 = arith.constant 0 : index
    %29 = vector.load %arg4[%c0_15, %c0_16] : memref<1x256xf32, #tpu.memory_space<vmem>>, vector<1x256xf32>
    %30 = vector.broadcast %29 : vector<1x256xf32> to vector<16x256xf32>
    %31 = arith.addf %28, %30 : vector<16x256xf32>
    %cst_17 = arith.constant 0.000000e+00 : f32
    %32 = vector.broadcast %cst_17 : f32 to vector<16x256xf32>
    %33 = arith.maximumf %31, %32 : vector<16x256xf32>
    %34 = arith.truncf %33 : vector<16x256xf32> to vector<16x256xbf16>
    %c0_18 = arith.constant 0 : index
    %c0_19 = arith.constant 0 : index
    %c0_20 = arith.constant 0 : index
    %35 = vector.load %arg5[%c0_18, %c0_19, %c0_20] : memref<1x16x256xbf16, #tpu.memory_space<vmem>>, vector<1x16x256xbf16>
    %36 = vector.shape_cast %35 : vector<1x16x256xbf16> to vector<16x256xbf16>
    %37 = vector.shape_cast %34 : vector<16x256xbf16> to vector<1x16x256xbf16>
    tpu.vector_store %arg5[%c0_18, %c0_19, %c0_20], %37 {strides = array<i32>} : memref<1x16x256xbf16, #tpu.memory_space<vmem>>, vector<1x16x256xbf16>,
    return
  }
  func.func @transform_0(%arg0: i32, %arg1: i32) -> (i32, i32, i32, i32) {
    %c0_i32 = arith.constant 0 : i32
    %c0_i32_0 = arith.constant 0 : i32
    %c0_i32_1 = arith.constant 0 : i32
    %c0_i32_2 = arith.constant 0 : i32
    return %arg0, %c0_i32, %c0_i32_0, %c0_i32_1 : i32, i32, i32, i32
  }
  func.func @transform_1(%arg0: i32, %arg1: i32) -> (i32, i32, i32) {
    %c0_i32 = arith.constant 0 : i32
    %c0_i32_0 = arith.constant 0 : i32
    %c0_i32_1 = arith.constant 0 : i32
    %c0_i32_2 = arith.constant 0 : i32
    return %c0_i32, %c0_i32_0, %c0_i32_1 : i32, i32, i32
  }
  func.func @transform_2(%arg0: i32, %arg1: i32) -> (i32, i32) {
    %c0_i32 = arith.constant 0 : i32
    %c0_i32_0 = arith.constant 0 : i32
    %c0_i32_1 = arith.constant 0 : i32
    return %c0_i32, %c0_i32_0 : i32, i32
  }
  func.func @transform_3(%arg0: i32, %arg1: i32) -> (i32, i32, i32) {
    %c0_i32 = arith.constant 0 : i32
    %c0_i32_0 = arith.constant 0 : i32
    return %arg0, %arg1, %c0_i32 : i32, i32, i32
  }
}

module attributes {stable_mosaic.version = 11 : i64} {
  func.func @feature_head_kernel(%arg0: i32, %arg1: i32, %arg2: memref<1x16x256xbf16, #tpu.memory_space<vmem>>, %arg3: memref<256x1024xbf16, #tpu.memory_space<vmem>>, %arg4: memref<1x1024xf32, #tpu.memory_space<vmem>>, %arg5: memref<1024x128xbf16, #tpu.memory_space<vmem>>, %arg6: memref<1x128xf32, #tpu.memory_space<vmem>>, %arg7: memref<2x128xf32, #tpu.memory_space<vmem>>, %arg8: memref<2x1024xf32, #tpu.memory_space<vmem>>, %arg9: memref<1x1024xf32, #tpu.memory_space<vmem>>) attributes {dimension_semantics = [#tpu.dimension_semantics<arbitrary>, #tpu.dimension_semantics<arbitrary>], iteration_bounds = array<i64: 2, 1>, scalar_prefetch = 0 : i64, scratch_operands = 1 : i64, tpu.core_type = #tpu.core_type<tc>, window_params = [{transform_indices = @transform_0, window_bounds = array<i64: 1, 16, 256>}, {pipeline_mode = #tpu.pipeline_mode<synchronous>, transform_indices = @transform_1, window_bounds = array<i64: 256, 1024>}, {pipeline_mode = #tpu.pipeline_mode<synchronous>, transform_indices = @transform_2, window_bounds = array<i64: 1, 1024>}, {pipeline_mode = #tpu.pipeline_mode<synchronous>, transform_indices = @transform_3, window_bounds = array<i64: 1024, 128>}, {pipeline_mode = #tpu.pipeline_mode<synchronous>, transform_indices = @transform_4, window_bounds = array<i64: 1, 128>}, {pipeline_mode = #tpu.pipeline_mode<synchronous>, transform_indices = @transform_5, window_bounds = array<i64: 2, 128>}, {pipeline_mode = #tpu.pipeline_mode<synchronous>, transform_indices = @transform_6, window_bounds = array<i64: 2, 1024>}]} {
    %c0_i32 = arith.constant 0 : i32
    %0 = arith.cmpi eq, %arg1, %c0_i32 : i32
    %1 = arith.extui %0 : i1 to i32
    %c0_i32_0 = arith.constant 0 : i32
    %2 = arith.cmpi ne, %1, %c0_i32_0 : i32
    scf.if %2 {
      %cst_17 = arith.constant 0.000000e+00 : f32
      %30 = vector.broadcast %cst_17 : f32 to vector<1x1024xf32>
      %c0_18 = arith.constant 0 : index
      %c0_19 = arith.constant 0 : index
      %31 = vector.load %arg9[%c0_18, %c0_19] : memref<1x1024xf32, #tpu.memory_space<vmem>>, vector<1x1024xf32>
      tpu.vector_store %arg9[%c0_18, %c0_19], %30 {strides = array<i32>} : memref<1x1024xf32, #tpu.memory_space<vmem>>, vector<1x1024xf32>,
    } else {
    }
    %c0 = arith.constant 0 : index
    %c0_1 = arith.constant 0 : index
    %c0_2 = arith.constant 0 : index
    %3 = vector.load %arg2[%c0, %c0_1, %c0_2] : memref<1x16x256xbf16, #tpu.memory_space<vmem>>, vector<1x16x256xbf16>
    %4 = vector.shape_cast %3 : vector<1x16x256xbf16> to vector<16x256xbf16>
    %c0_3 = arith.constant 0 : index
    %c0_4 = arith.constant 0 : index
    %5 = vector.load %arg3[%c0_3, %c0_4] : memref<256x1024xbf16, #tpu.memory_space<vmem>>, vector<256x1024xbf16>
    %cst = arith.constant dense<0.000000e+00> : vector<16x1024xf32>
    %6 = tpu.matmul %4, %5, %cst {dimension_numbers = #tpu.dot_dimension_numbers<[1], [0], [0], [1], [0, 0, 1, 1], [], []>} : vector<16x256xbf16>, vector<256x1024xbf16>, vector<16x1024xf32> -> vector<16x1024xf32>
    %c0_5 = arith.constant 0 : index
    %c0_6 = arith.constant 0 : index
    %7 = vector.load %arg4[%c0_5, %c0_6] : memref<1x1024xf32, #tpu.memory_space<vmem>>, vector<1x1024xf32>
    %8 = vector.broadcast %7 : vector<1x1024xf32> to vector<16x1024xf32>
    %9 = arith.addf %6, %8 : vector<16x1024xf32>
    %cst_7 = arith.constant 0.000000e+00 : f32
    %10 = vector.broadcast %cst_7 : f32 to vector<16x1024xf32>
    %11 = arith.maximumf %9, %10 : vector<16x1024xf32>
    %c16_i32 = arith.constant 16 : i32
    %12 = arith.muli %arg1, %c16_i32 : i32
    %13 = tpu.iota {dimensions = array<i32: 0>} : vector<16x1xi32>
    %14 = vector.broadcast %12 : i32 to vector<16x1xi32>
    %15 = arith.addi %14, %13 : vector<16x1xi32>
    %c16_i32_8 = arith.constant 16 : i32
    %16 = vector.broadcast %c16_i32_8 : i32 to vector<16x1xi32>
    %17 = arith.cmpi slt, %15, %16 : vector<16x1xi32>
    %cst_9 = arith.constant 0.000000e+00 : f32
    %18 = vector.shape_cast %17 : vector<16x1xi1> to vector<16x1xi1>
    %19 = vector.broadcast %18 : vector<16x1xi1> to vector<16x1024xi1>
    %20 = vector.broadcast %cst_9 : f32 to vector<16x1024xf32>
    %21 = arith.select %19, %11, %20 : vector<16x1024xi1>, vector<16x1024xf32>
    %c0_10 = arith.constant 0 : index
    %c0_11 = arith.constant 0 : index
    %22 = vector.load %arg9[%c0_10, %c0_11] : memref<1x1024xf32, #tpu.memory_space<vmem>>, vector<1x1024xf32>
    %cst_12 = arith.constant dense<0.000000e+00> : vector<1024xf32>
    %23 = vector.multi_reduction <add>, %21, %cst_12 [0] : vector<16x1024xf32> to vector<1024xf32>
    %24 = vector.shape_cast %23 : vector<1024xf32> to vector<1x1024xf32>
    %25 = arith.addf %22, %24 : vector<1x1024xf32>
    %c0_13 = arith.constant 0 : index
    %c0_14 = arith.constant 0 : index
    %26 = vector.load %arg9[%c0_13, %c0_14] : memref<1x1024xf32, #tpu.memory_space<vmem>>, vector<1x1024xf32>
    tpu.vector_store %arg9[%c0_13, %c0_14], %25 {strides = array<i32>} : memref<1x1024xf32, #tpu.memory_space<vmem>>, vector<1x1024xf32>,
    %c0_i32_15 = arith.constant 0 : i32
    %27 = arith.cmpi eq, %arg1, %c0_i32_15 : i32
    %28 = arith.extui %27 : i1 to i32
    %c0_i32_16 = arith.constant 0 : i32
    %29 = arith.cmpi ne, %28, %c0_i32_16 : i32
    scf.if %29 {
      %c0_17 = arith.constant 0 : index
      %c0_18 = arith.constant 0 : index
      %30 = vector.load %arg9[%c0_17, %c0_18] : memref<1x1024xf32, #tpu.memory_space<vmem>>, vector<1x1024xf32>
      %cst_19 = arith.constant 6.250000e-02 : f32
      %31 = vector.broadcast %cst_19 : f32 to vector<1x1024xf32>
      %32 = arith.mulf %30, %31 : vector<1x1024xf32>
      %33 = arith.index_cast %arg0 : i32 to index
      %c0_20 = arith.constant 0 : index
      %34 = vector.load %arg8[%33, %c0_20] : memref<2x1024xf32, #tpu.memory_space<vmem>>, vector<1x1024xf32>
      tpu.vector_store %arg8[%33, %c0_20], %32 {strides = array<i32>} : memref<2x1024xf32, #tpu.memory_space<vmem>>, vector<1x1024xf32>,
      %35 = arith.truncf %32 : vector<1x1024xf32> to vector<1x1024xbf16>
      %c0_21 = arith.constant 0 : index
      %c0_22 = arith.constant 0 : index
      %36 = vector.load %arg5[%c0_21, %c0_22] : memref<1024x128xbf16, #tpu.memory_space<vmem>>, vector<1024x128xbf16>
      %cst_23 = arith.constant dense<0.000000e+00> : vector<1x128xf32>
      %37 = tpu.matmul %35, %36, %cst_23 {dimension_numbers = #tpu.dot_dimension_numbers<[1], [0], [0], [1], [0, 0, 1, 1], [], []>} : vector<1x1024xbf16>, vector<1024x128xbf16>, vector<1x128xf32> -> vector<1x128xf32>
      %c0_24 = arith.constant 0 : index
      %c0_25 = arith.constant 0 : index
      %38 = vector.load %arg6[%c0_24, %c0_25] : memref<1x128xf32, #tpu.memory_space<vmem>>, vector<1x128xf32>
      %39 = arith.addf %37, %38 : vector<1x128xf32>
      %40 = arith.index_cast %arg0 : i32 to index
      %c0_26 = arith.constant 0 : index
      %41 = vector.load %arg7[%40, %c0_26] : memref<2x128xf32, #tpu.memory_space<vmem>>, vector<1x128xf32>
      tpu.vector_store %arg7[%40, %c0_26], %39 {strides = array<i32>} : memref<2x128xf32, #tpu.memory_space<vmem>>, vector<1x128xf32>,
    } else {
    }
    return
  }
  func.func @transform_0(%arg0: i32, %arg1: i32) -> (i32, i32, i32) {
    %c0_i32 = arith.constant 0 : i32
    %c0_i32_0 = arith.constant 0 : i32
    return %arg0, %arg1, %c0_i32 : i32, i32, i32
  }
  func.func @transform_1(%arg0: i32, %arg1: i32) -> (i32, i32) {
    %c0_i32 = arith.constant 0 : i32
    %c0_i32_0 = arith.constant 0 : i32
    %c0_i32_1 = arith.constant 0 : i32
    return %c0_i32, %c0_i32_0 : i32, i32
  }
  func.func @transform_2(%arg0: i32, %arg1: i32) -> (i32, i32) {
    %c0_i32 = arith.constant 0 : i32
    %c0_i32_0 = arith.constant 0 : i32
    %c0_i32_1 = arith.constant 0 : i32
    return %c0_i32, %c0_i32_0 : i32, i32
  }
  func.func @transform_3(%arg0: i32, %arg1: i32) -> (i32, i32) {
    %c0_i32 = arith.constant 0 : i32
    %c0_i32_0 = arith.constant 0 : i32
    %c0_i32_1 = arith.constant 0 : i32
    return %c0_i32, %c0_i32_0 : i32, i32
  }
  func.func @transform_4(%arg0: i32, %arg1: i32) -> (i32, i32) {
    %c0_i32 = arith.constant 0 : i32
    %c0_i32_0 = arith.constant 0 : i32
    %c0_i32_1 = arith.constant 0 : i32
    return %c0_i32, %c0_i32_0 : i32, i32
  }
  func.func @transform_5(%arg0: i32, %arg1: i32) -> (i32, i32) {
    %c0_i32 = arith.constant 0 : i32
    %c0_i32_0 = arith.constant 0 : i32
    %c0_i32_1 = arith.constant 0 : i32
    return %c0_i32, %c0_i32_0 : i32, i32
  }
  func.func @transform_6(%arg0: i32, %arg1: i32) -> (i32, i32) {
    %c0_i32 = arith.constant 0 : i32
    %c0_i32_0 = arith.constant 0 : i32
    %c0_i32_1 = arith.constant 0 : i32
    return %c0_i32, %c0_i32_0 : i32, i32
  }
}

</mosaic_0001>

<llo_original>
// kernel: forward.3
$region0: #{forward.3}
  #allocation0 [shape = 'u32[]', space=smem, size = 0x4, offset = 0x4, fixed_abs, tag = 'smem constant byte address 0x4 - core index']
  #allocation1 [shape = 'u32[144,128]{1,0:T(1,128)}', space=vmem, size = 0x12000, scoped, tag = 'internal scratch']
  %s0 = inlined_call_operand.vmem [shape: bf16[2,9,9,12], index: 0, kind: input, shape index: {}]
  %s1 = inlined_call_operand.vmem [shape: bf16[4,12,64], index: 1, kind: input, shape index: {}]
  %s2 = inlined_call_operand.vmem [shape: f32[1,64], index: 2, kind: input, shape index: {}]
  %s3 = inlined_call_operand.vmem [shape: bf16[2,64,64], index: 3, kind: output, shape index: {}]
  %s4 = sld [smem:[#allocation0]]
  $region45: #{forward.3} parent=0
    _
  %s6 = ssub.s32 1, %s4
  %s7 = scalar_select 0, %s6, %s4
  loop: start=0, step=1, limit=4
  $region2: #{forward.3} parent=0 // loop_pre_header
    _
  $region3: #{forward.3} parent=0 // loop_header
    %s9 = sphi 0, %s13
    %p10 = scmp.ge.s32.totalorder %s9, 4
    %s16 = sphi 0, %s28
    %s17 = sphi 0, %s24
    %s18 = sphi 0, %s16
    %s19 = sphi 0, %s17
    %s20 = sphi 0, %s18
    %s21 = sphi 0, %s19
    %s31 = sphi 0, %s33
    %s34 = sphi 0, %s31
    %s35 = sphi 0, %s34
    %s51 = sphi 0, %s35
    %s55 = sphi 0, %s55
    %s57 = sphi 0, %s55
    %s58 = sphi 0, %s57
    %s72 = sphi 0, %s58
    %s76 = sphi 0, %s76
    %s78 = sphi 0, %s76
    %s79 = sphi 0, %s78
    %s93 = sphi 0, %s79
    %s101 = sphi 0, %s103
    %s104 = sphi 0, %s101
    %s105 = sphi 0, %s104
    %s121 = sphi 0, %s105
  $region4: #{forward.3} parent=0 // loop_header_branch
    %12 = sbr.rel (%p10) target = $region8
  $region5: #{forward.3} parent=0 // loop_body
    %s14 = ssub.s32 %s9, 1
    %s15 = ssub.s32 %s9, 2
    %s22 = sadd.s32 1, %s17
    %p23 = scmp.ge.s32.totalorder %s22, 1
    %s24 = scalar_select %p23, 0, %s22
    %s25 = sadd.s32 1, %s16
    %s26 = scalar_select %p23, %s25, %s16
    %p27 = scmp.ge.s32.totalorder %s26, 2
    %s28 = scalar_select %p27, 0, %s26
    %s29 = ssub.s32 %s16, %s28
    %p30 = scmp.eq.s32.totalorder %s29, 0
    %s32 = sadd.s32 %s31, 1
    %s33 = scalar_select %p30, %s31, %s32
    %p36 = pneg %p30
    %p37 = scmp.eq.s32.totalorder %s9, 1
    %p38 = por %p36, %p37
    %p39 = scmp.ne.s32.totalorder %s31, %s34
    %p40 = scmp.eq.s32.totalorder %s9, 0
    %p41 = por %p39, %p40
    %p42 = scmp.ne.s32.totalorder %s31, %s34
    %p43 = scmp.eq.s32.totalorder %s14, 1
    %p44 = por %p42, %p43
    %p45 = scmp.ne.s32.totalorder %s34, %s35
    %p46 = scmp.eq.s32.totalorder %s14, 0
    %p47 = por %p45, %p46
    %p48 = scmp.ne.s32.totalorder %s34, %s35
    %p49 = scmp.eq.s32.totalorder %s15, 1
    %p50 = por %p48, %p49
    %p52 = scmp.ne.s32.totalorder %s35, %s51
    %p53 = scmp.eq.s32.totalorder %s15, 0
    %p54 = por %p52, %p53
    %s56 = sadd.s32 %s55, 1
    %p59 = scmp.eq.s32.totalorder %s9, 1
    %p60 = scmp.ne.s32.totalorder %s55, %s57
    %p61 = scmp.eq.s32.totalorder %s9, 0
    %p62 = por %p60, %p61
    %p63 = scmp.ne.s32.totalorder %s55, %s57
    %p64 = scmp.eq.s32.totalorder %s14, 1
    %p65 = por %p63, %p64
    %p66 = scmp.ne.s32.totalorder %s57, %s58
    %p67 = scmp.eq.s32.totalorder %s14, 0
    %p68 = por %p66, %p67
    %p69 = scmp.ne.s32.totalorder %s57, %s58
    %p70 = scmp.eq.s32.totalorder %s15, 1
    %p71 = por %p69, %p70
    %p73 = scmp.ne.s32.totalorder %s58, %s72
    %p74 = scmp.eq.s32.totalorder %s15, 0
    %p75 = por %p73, %p74
    %s77 = sadd.s32 %s76, 1
    %p80 = scmp.eq.s32.totalorder %s9, 1
    %p81 = scmp.ne.s32.totalorder %s76, %s78
    %p82 = scmp.eq.s32.totalorder %s9, 0
    %p83 = por %p81, %p82
    %p84 = scmp.ne.s32.totalorder %s76, %s78
    %p85 = scmp.eq.s32.totalorder %s14, 1
    %p86 = por %p84, %p85
    %p87 = scmp.ne.s32.totalorder %s78, %s79
    %p88 = scmp.eq.s32.totalorder %s14, 0
    %p89 = por %p87, %p88
    %p90 = scmp.ne.s32.totalorder %s78, %s79
    %p91 = scmp.eq.s32.totalorder %s15, 1
    %p92 = por %p90, %p91
    %p94 = scmp.ne.s32.totalorder %s79, %s93
    %p95 = scmp.eq.s32.totalorder %s15, 0
    %p96 = por %p94, %p95
    %s97 = ssub.s32 %s16, %s28
    %s98 = ssub.s32 %s17, %s24
    %s99 = sor.u32 %s97, %s98
    %p100 = scmp.eq.s32.totalorder %s99, 0
    %s102 = sadd.s32 %s101, 1
    %s103 = scalar_select %p100, %s101, %s102
    %p106 = pneg %p100
    %p107 = scmp.eq.s32.totalorder %s9, 1
    %p108 = por %p106, %p107
    %p109 = scmp.ne.s32.totalorder %s101, %s104
    %p110 = scmp.eq.s32.totalorder %s9, 0
    %p111 = por %p109, %p110
    %p112 = scmp.ne.s32.totalorder %s101, %s104
    %p113 = scmp.eq.s32.totalorder %s14, 1
    %p114 = por %p112, %p113
    %p115 = scmp.ne.s32.totalorder %s104, %s105
    %p116 = scmp.eq.s32.totalorder %s14, 0
    %p117 = por %p115, %p116
    %p118 = scmp.ne.s32.totalorder %s104, %s105
    %p119 = scmp.eq.s32.totalorder %s15, 1
    %p120 = por %p118, %p119
    %p122 = scmp.ne.s32.totalorder %s105, %s121
    %p123 = scmp.eq.s32.totalorder %s15, 0
    %p124 = por %p122, %p123
    %p125 = scmp.le.s32.totalorder 1, %s9
    %p126 = scmp.lt.s32.totalorder %s9, 3
    %p127 = pnand %p125, %p126
    %p128 = pneg %p127
    // Predicated region
    $region9: #{forward.3} parent=5 // pred_check
      _
    $region10: #{forward.3} parent=5 // pred_check_branch
      %130 = sbr.rel (%p127) target = $region12
    $region11: #{forward.3} parent=5 // pred_region
      %s131 = ssub.s32 %s9, 1
      // Predicated region
      $region13: #{forward.3} parent=11 // pred_check
        %p132 = pneg %p68
      $region14: #{forward.3} parent=11 // pred_check_branch
        %134 = sbr.rel (%p132) target = $region16
      $region15: #{forward.3} parent=11 // pred_region
        _
      $region16: #{forward.3} parent=11 // pred_fallthru
        _
      // Predicated region
      $region17: #{forward.3} parent=11 // pred_check
        %p135 = pneg %p89
      $region18: #{forward.3} parent=11 // pred_check_branch
        %137 = sbr.rel (%p135) target = $region20
      $region19: #{forward.3} parent=11 // pred_region
        _
      $region20: #{forward.3} parent=11 // pred_fallthru
        _
    $region12: #{forward.3} parent=5 // pred_fallthru
      _
    %p138 = scmp.lt.s32.totalorder %s9, 2
    // Predicated region
    $region21: #{forward.3} parent=5 // pred_check
      %p139 = pneg %p138
    $region22: #{forward.3} parent=5 // pred_check_branch
      %141 = sbr.rel (%p139) target = $region24
    $region23: #{forward.3} parent=5 // pred_region
      // Predicated region
      $region25: #{forward.3} parent=23 // pred_check
        %p142 = pneg %p41
      $region26: #{forward.3} parent=23 // pred_check_branch
        %144 = sbr.rel (%p142) target = $region28
      $region27: #{forward.3} parent=23 // pred_region
        %p145 = scmp.lt.s32.totalorder %s16, 1
        %s146 = scalar_select %p145, %s16, 1
        %s147 = smul.addr %s146, 18
        %s148 = smul.addr %s147, 4
        %s149 = scalar_lea.vmem %s0, %s148
      $region28: #{forward.3} parent=23 // pred_fallthru
        _
    $region24: #{forward.3} parent=5 // pred_fallthru
      _
    %p150 = scmp.le.s32.totalorder 1, %s9
    %p151 = scmp.lt.s32.totalorder %s9, 3
    %p152 = pnand %p150, %p151
    %p153 = pneg %p152
    // Predicated region
    $region29: #{forward.3} parent=5 // pred_check
      _
    $region30: #{forward.3} parent=5 // pred_check_branch
      %155 = sbr.rel (%p152) target = $region32
    $region31: #{forward.3} parent=5 // pred_region
      %s156 = ssub.s32 %s9, 1
      %p157 = scmp.lt.s32.totalorder %s18, 1
      %s158 = scalar_select %p157, %s18, 1
      %s159 = smul.addr %s158, 18
      %s160 = smul.addr %s159, 4
      %s161 = scalar_lea.vmem %s0, %s160
      %p162 = pneg %p47
      %p163 = pneg %p44
      %p164 = pneg %p68
      %p165 = pneg %p65
      %p166 = pneg %p89
      %p167 = pneg %p86
      %p168 = pneg %p117
      %p169 = pneg %p114
      %s170 = smul.u32 8, %s19
      %p171 = scmp.lt.s32.totalorder %s18, 1
      %s172 = scalar_select %p171, %s18, 1
      %p173 = scmp.lt.s32.totalorder %s170, 7
      %s174 = scalar_select %p173, %s170, 7
      %s175 = smul.addr %s172, 8
      %s176 = sadd.s32 %s174, %s175
      %s177 = smul.addr %s176, 4
      %s178 = scalar_lea.vmem %s3, %s177
      %p179 = scmp.lt.s32.totalorder %s18, 1
      %s180 = scalar_select %p179, %s18, 1
      %s181 = smul.addr %s180, 18
      %s182 = smul.addr %s181, 4
      %s183 = scalar_lea.vmem %s0, %s182
      %s184 = smul.u32 8, %s19
      %p185 = scmp.lt.s32.totalorder %s18, 1
      %s186 = scalar_select %p185, %s18, 1
      %p187 = scmp.lt.s32.totalorder %s184, 7
      %s188 = scalar_select %p187, %s184, 7
      %s189 = smul.addr %s186, 8
      %s190 = sadd.s32 %s188, %s189
      %s191 = smul.addr %s190, 4
      %s192 = scalar_lea.vmem %s3, %s191
      %s193 = smul.u32 8, %s19
      %s195 = smul.u32 %s19, 8
      %s196 = smul.u32 %s195, 2
      %s197 = smul.addr %s196, 4
      %s198 = scalar_lea.vmem %s183, %s197
      %v199 = vld [vmem:[%s198] sm:$0xf]
      %v200 = vld [vmem:[%s198 + $0x4] sm:$0x1]
      %v201 = vld [vmem:[%s198 + $0x8] sm:$0xf]
      %v202 = vld [vmem:[%s198 + $0xc] sm:$0x1]
      %v203 = vld [vmem:[%s198 + $0x10] sm:$0xf]
      %v204 = vld [vmem:[%s198 + $0x14] sm:$0x1]
      %v205 = vld [vmem:[%s198 + $0x18] sm:$0xf]
      %v206 = vld [vmem:[%s198 + $0x1c] sm:$0x1]
      %v207 = vld [vmem:[%s198 + $0x20] sm:$0xf]
      %v208 = vld [vmem:[%s198 + $0x24] sm:$0x1]
      %v209 = vld [vmem:[%s198 + $0x28] sm:$0xf]
      %v210 = vld [vmem:[%s198 + $0x2c] sm:$0x1]
      %v211 = vld [vmem:[%s198 + $0x30] sm:$0xf]
      %v212 = vld [vmem:[%s198 + $0x34] sm:$0x1]
      %v213 = vld [vmem:[%s198 + $0x38] sm:$0xf]
      %v214 = vld [vmem:[%s198 + $0x3c] sm:$0x1]
      %v215 = vld [vmem:[%s198 + $0x40] sm:$0xf]
      %v216 = vld [vmem:[%s198 + $0x44] sm:$0x1]
      %v217 = vld [vmem:[%s1] sm:$0xf]
      %v218 = vld [vmem:[%s1 + $0x4] sm:$0x3]
      %vm219 = vsmask.f32 3328
      %vm220 = vsmask.f32 7440
      %vm221 = vmor %vm219, %vm220
      %v223 = vshrl.u32 %v199, 16
      %v225 = vrot.slane %v223, 4
      %v226 = vshll.u32 %v199, 16
      %v228 = vrot.slane %v226, 5
      %v229 = vor.u32 %v225, %v228
      %v230 = vrot.slane %v229, 4
      %v232 = vshll.u32 %v200, 16
      %v234 = vrot.slane %v232, 5
      %v235 = vsel %vm221, %v230, %v234
      %v237 = vshrl.u32 %v201, 16
      %v239 = vrot.slane %v237, 4
      %v240 = vshll.u32 %v201, 16
      %v242 = vrot.slane %v240, 5
      %v243 = vor.u32 %v239, %v242
      %v244 = vrot.slane %v243, 4
      %v246 = vshll.u32 %v202, 16
      %v248 = vrot.slane %v246, 5
      %v249 = vsel %vm221, %v244, %v248
      %v251 = vshrl.u32 %v203, 16
      %v253 = vrot.slane %v251, 4
      %v254 = vshll.u32 %v203, 16
      %v256 = vrot.slane %v254, 5
      %v257 = vor.u32 %v253, %v256
      %v258 = vrot.slane %v257, 4
      %v260 = vshll.u32 %v204, 16
      %v262 = vrot.slane %v260, 5
      %v263 = vsel %vm221, %v258, %v262
      %v265 = vshrl.u32 %v205, 16
      %v267 = vrot.slane %v265, 4
      %v268 = vshll.u32 %v205, 16
      %v270 = vrot.slane %v268, 5
      %v271 = vor.u32 %v267, %v270
      %v272 = vrot.slane %v271, 4
      %v274 = vshll.u32 %v206, 16
      %v276 = vrot.slane %v274, 5
      %v277 = vsel %vm221, %v272, %v276
      %v279 = vshrl.u32 %v207, 16
      %v281 = vrot.slane %v279, 4
      %v282 = vshll.u32 %v207, 16
      %v284 = vrot.slane %v282, 5
      %v285 = vor.u32 %v281, %v284
      %v286 = vrot.slane %v285, 4
      %v288 = vshll.u32 %v208, 16
      %v290 = vrot.slane %v288, 5
      %v291 = vsel %vm221, %v286, %v290
      %v293 = vshrl.u32 %v209, 16
      %v295 = vrot.slane %v293, 4
      %v296 = vshll.u32 %v209, 16
      %v298 = vrot.slane %v296, 5
      %v299 = vor.u32 %v295, %v298
      %v300 = vrot.slane %v299, 4
      %v302 = vshll.u32 %v210, 16
      %v304 = vrot.slane %v302, 5
      %v305 = vsel %vm221, %v300, %v304
      %v307 = vshrl.u32 %v211, 16
      %v309 = vrot.slane %v307, 4
      %v310 = vshll.u32 %v211, 16
      %v312 = vrot.slane %v310, 5
      %v313 = vor.u32 %v309, %v312
      %v314 = vrot.slane %v313, 4
      %v316 = vshll.u32 %v212, 16
      %v318 = vrot.slane %v316, 5
      %v319 = vsel %vm221, %v314, %v318
      %v321 = vshrl.u32 %v213, 16
      %v323 = vrot.slane %v321, 4
      %v324 = vshll.u32 %v213, 16
      %v326 = vrot.slane %v324, 5
      %v327 = vor.u32 %v323, %v326
      %v328 = vrot.slane %v327, 4
      %v330 = vshll.u32 %v214, 16
      %v332 = vrot.slane %v330, 5
      %v333 = vsel %vm221, %v328, %v332
      %s334 = scalar_lea.vmem %s1, 8
      %v335 = vld [vmem:[%s334] sm:$0xf]
      %v336 = vld [vmem:[%s334 + $0x4] sm:$0x3]
      %v337 = vunpack.c.l.b16 %v235
      %v338 = vunpack.c.l.b16 %v249
      %v339 = vunpack.c.l.b16 %v263
      %v340 = vunpack.c.l.b16 %v277
      %v341 = vunpack.c.l.b16 %v291
      %v342 = vunpack.c.l.b16 %v305
      %v343 = vunpack.c.l.b16 %v319
      %v344 = vunpack.c.l.b16 %v333
      %v345 = vpack.c.b16 %v338, %v337
      %v346 = vpack.c.b16 %v340, %v339
      %v347 = vpack.c.b16 %v342, %v341
      %v348 = vpack.c.b16 %v344, %v343
      %v351 = vunpack.c.l.b16 %v335
      %v352 = vunpack.c.l.b16 %v336
      %v353 = vpack.c.b16 %v352, %v351
      %vm354 = vcmask 97280
      %v356 = vsel %vm354, %v345, 0
      %v359 = vsel %vm354, %v346, 0
      %v362 = vsel %vm354, %v347, 0
      %v365 = vsel %vm354, %v348, 0
      %vm367 = vcmask 1045504
      %v369 = vsel %vm367, %v353, 0
      %371 = vmatprep.subr.bf16.mxu0 0
      %372 = vmatpush1.bf16.msra.mxu0 %v369
      %373 = vmatprep.subr.bf16.mxu0 0
      %374 = vmatpush1.bf16.msra.mxu0 0
      %375 = vmatprep.subr.bf16.mxu0 0
      %376 = vmatpush1.bf16.msra.mxu0 0
      %377 = vmatprep.subr.bf16.mxu0 0
      %378 = vmatpush1.bf16.msra.mxu0 0
      %379 = vmatprep.subr.bf16.mxu0 0
      %380 = vmatpush1.bf16.msra.mxu0 0
      %381 = vmatprep.subr.bf16.mxu0 0
      %382 = vmatpush1.bf16.msra.mxu0 0
      %383 = vmatprep.subr.bf16.mxu0 0
      %384 = vmatpush1.bf16.msra.mxu0 0
      %385 = vmatprep.subr.bf16.mxu0 0
      %386 = vmatpush1.bf16.msra.mxu0 0
      %387 = vmatprep.subr.bf16.mxu0 0
      %388 = vmatpush1.bf16.msra.mxu0 0
      %389 = vmatprep.subr.bf16.mxu0 0
      %390 = vmatpush1.bf16.msra.mxu0 0
      %391 = vmatprep.subr.bf16.mxu0 0
      %392 = vmatpush1.bf16.msra.mxu0 0
      %393 = vmatprep.subr.bf16.mxu0 0
      %394 = vmatpush1.bf16.msra.mxu0 0
      %395 = vmatprep.subr.bf16.mxu0 0
      %396 = vmatpush1.bf16.msra.mxu0 0
      %397 = vmatprep.subr.bf16.mxu0 0
      %398 = vmatpush1.bf16.msra.mxu0 0
      %399 = vmatprep.subr.bf16.mxu0 0
      %400 = vmatpush1.bf16.msra.mxu0 0
      %401 = vmatprep.subr.bf16.mxu0 0
      %402 = vmatpush1.bf16.msra.mxu0 0
      %403 = vmatprep.mubr.bf16.mxu0 0
      %404 = vmatmul.mubr.bf16.gmra.mrb[0].mxu0 %v356
      %v405 = vpop.f32.mrb[0].mxu0
      %v406 = vadd.f32 0.0, %v405
      %v407 = vpop.f32.mrb[0].mxu0
      %v408 = vpop.f32.mrb[0].mxu0
      %v409 = vadd.f32 0.0, %v408
      %v410 = vpop.f32.mrb[0].mxu0
      %411 = vmatprep.mubr.bf16.mxu0 0
      %412 = vmatmul.mubr.bf16.gmra.mrb[0].mxu0 %v359
      %v413 = vpop.f32.mrb[0].mxu0
      %v414 = vadd.f32 0.0, %v413
      %v415 = vpop.f32.mrb[0].mxu0
      %v416 = vpop.f32.mrb[0].mxu0
      %v417 = vadd.f32 0.0, %v416
      %v418 = vpop.f32.mrb[0].mxu0
      %419 = vmatprep.mubr.bf16.mxu0 0
      %420 = vmatmul.mubr.bf16.gmra.mrb[0].mxu0 %v362
      %v421 = vpop.f32.mrb[0].mxu0
      %v422 = vadd.f32 0.0, %v421
      %v423 = vpop.f32.mrb[0].mxu0
      %v424 = vpop.f32.mrb[0].mxu0
      %v425 = vadd.f32 0.0, %v424
      %v426 = vpop.f32.mrb[0].mxu0
      %427 = vmatprep.mubr.bf16.mxu0 0
      %428 = vmatmul.mubr.bf16.gmra.mrb[0].mxu0 %v365
      %v429 = vpop.f32.mrb[0].mxu0
      %v430 = vadd.f32 0.0, %v429
      %v431 = vpop.f32.mrb[0].mxu0
      %v432 = vpop.f32.mrb[0].mxu0
      %v433 = vadd.f32 0.0, %v432
      %v434 = vpop.f32.mrb[0].mxu0
      %435 = vdwg.mxu0
      %v444 = vunpack.c.l.b16 %v199
      %v445 = vunpack.c.l.b16 %v201
      %v446 = vunpack.c.l.b16 %v203
      %v447 = vunpack.c.l.b16 %v205
      %v448 = vunpack.c.l.b16 %v207
      %v449 = vunpack.c.l.b16 %v209
      %v450 = vunpack.c.l.b16 %v211
      %v451 = vunpack.c.l.b16 %v213
      %v452 = vpack.c.b16 %v445, %v444
      %v453 = vpack.c.b16 %v447, %v446
      %v454 = vpack.c.b16 %v449, %v448
      %v455 = vpack.c.b16 %v451, %v450
      %v458 = vunpack.c.l.b16 %v217
      %v459 = vunpack.c.l.b16 %v218
      %v460 = vpack.c.b16 %v459, %v458
      %v462 = vsel %vm354, %v452, 0
      %v465 = vsel %vm354, %v453, 0
      %v468 = vsel %vm354, %v454, 0
      %v471 = vsel %vm354, %v455, 0
      %v474 = vsel %vm367, %v460, 0
      %476 = vmatprep.subr.bf16.mxu0 0
      %477 = vmatpush1.bf16.msra.mxu0 %v474
      %478 = vmatprep.subr.bf16.mxu0 0
      %479 = vmatpush1.bf16.msra.mxu0 0
      %480 = vmatprep.subr.bf16.mxu0 0
      %481 = vmatpush1.bf16.msra.mxu0 0
      %482 = vmatprep.subr.bf16.mxu0 0
      %483 = vmatpush1.bf16.msra.mxu0 0
      %484 = vmatprep.subr.bf16.mxu0 0
      %485 = vmatpush1.bf16.msra.mxu0 0
      %486 = vmatprep.subr.bf16.mxu0 0
      %487 = vmatpush1.bf16.msra.mxu0 0
      %488 = vmatprep.subr.bf16.mxu0 0
      %489 = vmatpush1.bf16.msra.mxu0 0
      %490 = vmatprep.subr.bf16.mxu0 0
      %491 = vmatpush1.bf16.msra.mxu0 0
      %492 = vmatprep.subr.bf16.mxu0 0
      %493 = vmatpush1.bf16.msra.mxu0 0
      %494 = vmatprep.subr.bf16.mxu0 0
      %495 = vmatpush1.bf16.msra.mxu0 0
      %496 = vmatprep.subr.bf16.mxu0 0
      %497 = vmatpush1.bf16.msra.mxu0 0
      %498 = vmatprep.subr.bf16.mxu0 0
      %499 = vmatpush1.bf16.msra.mxu0 0
      %500 = vmatprep.subr.bf16.mxu0 0
      %501 = vmatpush1.bf16.msra.mxu0 0
      %502 = vmatprep.subr.bf16.mxu0 0
      %503 = vmatpush1.bf16.msra.mxu0 0
      %504 = vmatprep.subr.bf16.mxu0 0
      %505 = vmatpush1.bf16.msra.mxu0 0
      %506 = vmatprep.subr.bf16.mxu0 0
      %507 = vmatpush1.bf16.msra.mxu0 0
      %508 = vmatprep.mubr.bf16.mxu0 0
      %509 = vmatmul.mubr.bf16.gmra.mrb[0].mxu0 %v462
      %v510 = vpop.f32.mrb[0].mxu0
      %v511 = vadd.f32 %v406, %v510
      %v512 = vpop.f32.mrb[0].mxu0
      %v513 = vpop.f32.mrb[0].mxu0
      %v514 = vadd.f32 %v409, %v513
      %v515 = vpop.f32.mrb[0].mxu0
      %516 = vmatprep.mubr.bf16.mxu0 0
      %517 = vmatmul.mubr.bf16.gmra.mrb[0].mxu0 %v465
      %v518 = vpop.f32.mrb[0].mxu0
      %v519 = vadd.f32 %v414, %v518
      %v520 = vpop.f32.mrb[0].mxu0
      %v521 = vpop.f32.mrb[0].mxu0
      %v522 = vadd.f32 %v417, %v521
      %v523 = vpop.f32.mrb[0].mxu0
      %524 = vmatprep.mubr.bf16.mxu0 0
      %525 = vmatmul.mubr.bf16.gmra.mrb[0].mxu0 %v468
      %v526 = vpop.f32.mrb[0].mxu0
      %v527 = vadd.f32 %v422, %v526
      %v528 = vpop.f32.mrb[0].mxu0
      %v529 = vpop.f32.mrb[0].mxu0
      %v530 = vadd.f32 %v425, %v529
      %v531 = vpop.f32.mrb[0].mxu0
      %532 = vmatprep.mubr.bf16.mxu0 0
      %533 = vmatmul.mubr.bf16.gmra.mrb[0].mxu0 %v471
      %v534 = vpop.f32.mrb[0].mxu0
      %v535 = vadd.f32 %v430, %v534
      %v536 = vpop.f32.mrb[0].mxu0
      %v537 = vpop.f32.mrb[0].mxu0
      %v538 = vadd.f32 %v433, %v537
      %v539 = vpop.f32.mrb[0].mxu0
      %540 = vdwg.mxu0
      %s541 = scalar_lea.vmem %s1, 16
      %v542 = vld [vmem:[%s541] sm:$0xf]
      %v543 = vld [vmem:[%s541 + $0x4] sm:$0x3]
      %v545 = vunpack.c.l.b16 %v215
      %v546 = vpack.c.b16 %v446, %v445
      %v547 = vpack.c.b16 %v448, %v447
      %v548 = vpack.c.b16 %v450, %v449
      %v549 = vpack.c.b16 %v545, %v451
      %v552 = vunpack.c.l.b16 %v542
      %v553 = vunpack.c.l.b16 %v543
      %v554 = vpack.c.b16 %v553, %v552
      %v556 = vsel %vm354, %v546, 0
      %v559 = vsel %vm354, %v547, 0
      %v562 = vsel %vm354, %v548, 0
      %v565 = vsel %vm354, %v549, 0
      %v568 = vsel %vm367, %v554, 0
      %570 = vmatprep.subr.bf16.mxu0 0
      %571 = vmatpush1.bf16.msra.mxu0 %v568
      %572 = vmatprep.subr.bf16.mxu0 0
      %573 = vmatpush1.bf16.msra.mxu0 0
      %574 = vmatprep.subr.bf16.mxu0 0
      %575 = vmatpush1.bf16.msra.mxu0 0
      %576 = vmatprep.subr.bf16.mxu0 0
      %577 = vmatpush1.bf16.msra.mxu0 0
      %578 = vmatprep.subr.bf16.mxu0 0
      %579 = vmatpush1.bf16.msra.mxu0 0
      %580 = vmatprep.subr.bf16.mxu0 0
      %581 = vmatpush1.bf16.msra.mxu0 0
      %582 = vmatprep.subr.bf16.mxu0 0
      %583 = vmatpush1.bf16.msra.mxu0 0
      %584 = vmatprep.subr.bf16.mxu0 0
      %585 = vmatpush1.bf16.msra.mxu0 0
      %586 = vmatprep.subr.bf16.mxu0 0
      %587 = vmatpush1.bf16.msra.mxu0 0
      %588 = vmatprep.subr.bf16.mxu0 0
      %589 = vmatpush1.bf16.msra.mxu0 0
      %590 = vmatprep.subr.bf16.mxu0 0
      %591 = vmatpush1.bf16.msra.mxu0 0
      %592 = vmatprep.subr.bf16.mxu0 0
      %593 = vmatpush1.bf16.msra.mxu0 0
      %594 = vmatprep.subr.bf16.mxu0 0
      %595 = vmatpush1.bf16.msra.mxu0 0
      %596 = vmatprep.subr.bf16.mxu0 0
      %597 = vmatpush1.bf16.msra.mxu0 0
      %598 = vmatprep.subr.bf16.mxu0 0
      %599 = vmatpush1.bf16.msra.mxu0 0
      %600 = vmatprep.subr.bf16.mxu0 0
      %601 = vmatpush1.bf16.msra.mxu0 0
      %602 = vmatprep.mubr.bf16.mxu0 0
      %603 = vmatmul.mubr.bf16.gmra.mrb[0].mxu0 %v556
      %v604 = vpop.f32.mrb[0].mxu0
      %v605 = vadd.f32 0.0, %v604
      %v606 = vpop.f32.mrb[0].mxu0
      %v607 = vpop.f32.mrb[0].mxu0
      %v608 = vadd.f32 0.0, %v607
      %v609 = vpop.f32.mrb[0].mxu0
      %610 = vmatprep.mubr.bf16.mxu0 0
      %611 = vmatmul.mubr.bf16.gmra.mrb[0].mxu0 %v559
      %v612 = vpop.f32.mrb[0].mxu0
      %v613 = vadd.f32 0.0, %v612
      %v614 = vpop.f32.mrb[0].mxu0
      %v615 = vpop.f32.mrb[0].mxu0
      %v616 = vadd.f32 0.0, %v615
      %v617 = vpop.f32.mrb[0].mxu0
      %618 = vmatprep.mubr.bf16.mxu0 0
      %619 = vmatmul.mubr.bf16.gmra.mrb[0].mxu0 %v562
      %v620 = vpop.f32.mrb[0].mxu0
      %v621 = vadd.f32 0.0, %v620
      %v622 = vpop.f32.mrb[0].mxu0
      %v623 = vpop.f32.mrb[0].mxu0
      %v624 = vadd.f32 0.0, %v623
      %v625 = vpop.f32.mrb[0].mxu0
      %626 = vmatprep.mubr.bf16.mxu0 0
      %627 = vmatmul.mubr.bf16.gmra.mrb[0].mxu0 %v565
      %v628 = vpop.f32.mrb[0].mxu0
      %v629 = vadd.f32 0.0, %v628
      %v630 = vpop.f32.mrb[0].mxu0
      %v631 = vpop.f32.mrb[0].mxu0
      %v632 = vadd.f32 0.0, %v631
      %v633 = vpop.f32.mrb[0].mxu0
      %634 = vdwg.mxu0
      %v635 = vadd.f32 %v511, %v605
      %v636 = vadd.f32 %v514, %v608
      %v637 = vadd.f32 %v519, %v613
      %v638 = vadd.f32 %v522, %v616
      %v639 = vadd.f32 %v527, %v621
      %v640 = vadd.f32 %v530, %v624
      %v641 = vadd.f32 %v535, %v629
      %v642 = vadd.f32 %v538, %v632
      %v644 = vshrl.u32 %v215, 16
      %v646 = vrot.slane %v644, 4
      %v647 = vshll.u32 %v215, 16
      %v649 = vrot.slane %v647, 5
      %v650 = vor.u32 %v646, %v649
      %v651 = vrot.slane %v650, 4
      %v653 = vshll.u32 %v216, 16
      %v655 = vrot.slane %v653, 5
      %v656 = vsel %vm221, %v651, %v655
      %s657 = scalar_lea.vmem %s1, 24
      %v658 = vld [vmem:[%s657] sm:$0xf]
      %v659 = vld [vmem:[%s657 + $0x4] sm:$0x3]
      %v660 = vunpack.c.l.b16 %v656
      %v661 = vpack.c.b16 %v339, %v338
      %v662 = vpack.c.b16 %v341, %v340
      %v663 = vpack.c.b16 %v343, %v342
      %v664 = vpack.c.b16 %v660, %v344
      %v667 = vunpack.c.l.b16 %v658
      %v668 = vunpack.c.l.b16 %v659
      %v669 = vpack.c.b16 %v668, %v667
      %v671 = vsel %vm354, %v661, 0
      %v674 = vsel %vm354, %v662, 0
      %v677 = vsel %vm354, %v663, 0
      %v680 = vsel %vm354, %v664, 0
      %v683 = vsel %vm367, %v669, 0
      %685 = vmatprep.subr.bf16.mxu0 0
      %686 = vmatpush1.bf16.msra.mxu0 %v683
      %687 = vmatprep.subr.bf16.mxu0 0
      %688 = vmatpush1.bf16.msra.mxu0 0
      %689 = vmatprep.subr.bf16.mxu0 0
      %690 = vmatpush1.bf16.msra.mxu0 0
      %691 = vmatprep.subr.bf16.mxu0 0
      %692 = vmatpush1.bf16.msra.mxu0 0
      %693 = vmatprep.subr.bf16.mxu0 0
      %694 = vmatpush1.bf16.msra.mxu0 0
      %695 = vmatprep.subr.bf16.mxu0 0
      %696 = vmatpush1.bf16.msra.mxu0 0
      %697 = vmatprep.subr.bf16.mxu0 0
      %698 = vmatpush1.bf16.msra.mxu0 0
      %699 = vmatprep.subr.bf16.mxu0 0
      %700 = vmatpush1.bf16.msra.mxu0 0
      %701 = vmatprep.subr.bf16.mxu0 0
      %702 = vmatpush1.bf16.msra.mxu0 0
      %703 = vmatprep.subr.bf16.mxu0 0
      %704 = vmatpush1.bf16.msra.mxu0 0
      %705 = vmatprep.subr.bf16.mxu0 0
      %706 = vmatpush1.bf16.msra.mxu0 0
      %707 = vmatprep.subr.bf16.mxu0 0
      %708 = vmatpush1.bf16.msra.mxu0 0
      %709 = vmatprep.subr.bf16.mxu0 0
      %710 = vmatpush1.bf16.msra.mxu0 0
      %711 = vmatprep.subr.bf16.mxu0 0
      %712 = vmatpush1.bf16.msra.mxu0 0
      %713 = vmatprep.subr.bf16.mxu0 0
      %714 = vmatpush1.bf16.msra.mxu0 0
      %715 = vmatprep.subr.bf16.mxu0 0
      %716 = vmatpush1.bf16.msra.mxu0 0
      %717 = vmatprep.mubr.bf16.mxu0 0
      %718 = vmatmul.mubr.bf16.gmra.mrb[0].mxu0 %v671
      %v719 = vpop.f32.mrb[0].mxu0
      %v720 = vadd.f32 0.0, %v719
      %v721 = vpop.f32.mrb[0].mxu0
      %v722 = vpop.f32.mrb[0].mxu0
      %v723 = vadd.f32 0.0, %v722
      %v724 = vpop.f32.mrb[0].mxu0
      %725 = vmatprep.mubr.bf16.mxu0 0
      %726 = vmatmul.mubr.bf16.gmra.mrb[0].mxu0 %v674
      %v727 = vpop.f32.mrb[0].mxu0
      %v728 = vadd.f32 0.0, %v727
      %v729 = vpop.f32.mrb[0].mxu0
      %v730 = vpop.f32.mrb[0].mxu0
      %v731 = vadd.f32 0.0, %v730
      %v732 = vpop.f32.mrb[0].mxu0
      %733 = vmatprep.mubr.bf16.mxu0 0
      %734 = vmatmul.mubr.bf16.gmra.mrb[0].mxu0 %v677
      %v735 = vpop.f32.mrb[0].mxu0
      %v736 = vadd.f32 0.0, %v735
      %v737 = vpop.f32.mrb[0].mxu0
      %v738 = vpop.f32.mrb[0].mxu0
      %v739 = vadd.f32 0.0, %v738
      %v740 = vpop.f32.mrb[0].mxu0
      %741 = vmatprep.mubr.bf16.mxu0 0
      %742 = vmatmul.mubr.bf16.gmra.mrb[0].mxu0 %v680
      %v743 = vpop.f32.mrb[0].mxu0
      %v744 = vadd.f32 0.0, %v743
      %v745 = vpop.f32.mrb[0].mxu0
      %v746 = vpop.f32.mrb[0].mxu0
      %v747 = vadd.f32 0.0, %v746
      %v748 = vpop.f32.mrb[0].mxu0
      %749 = vdwg.mxu0
      %v750 = vadd.f32 %v635, %v720
      %v751 = vadd.f32 %v636, %v723
      %v752 = vadd.f32 %v637, %v728
      %v753 = vadd.f32 %v638, %v731
      %v754 = vadd.f32 %v639, %v736
      %v755 = vadd.f32 %v640, %v739
      %v756 = vadd.f32 %v641, %v744
      %v757 = vadd.f32 %v642, %v747
      %v758 = vld [vmem:[%s2] sm:$0x1]
      %v760 = vlaneseq
      %v761 = vshrl.u32 %v760, 7
      %v762 = vsub.s32 0, %v761
      %v763 = vrot.slane %v758, %v762
      %v765 = vadd.f32 %v750, %v763
      %v766 = vadd.f32 %v751, %v763
      %v767 = vadd.f32 %v752, %v763
      %v768 = vadd.f32 %v753, %v763
      %v769 = vadd.f32 %v754, %v763
      %v770 = vadd.f32 %v755, %v763
      %v771 = vadd.f32 %v756, %v763
      %v772 = vadd.f32 %v757, %v763
      %v773 = vmax.f32 %v765, 0.0
      %v774 = vmax.f32 %v766, 0.0
      %v775 = vmax.f32 %v767, 0.0
      %v776 = vmax.f32 %v768, 0.0
      %v777 = vmax.f32 %v769, 0.0
      %v778 = vmax.f32 %v770, 0.0
      %v779 = vmax.f32 %v771, 0.0
      %v780 = vmax.f32 %v772, 0.0
      %v781 = vpack.c.bf16 %v774, %v773
      %v782 = vpack.c.bf16 %v776, %v775
      %v783 = vpack.c.bf16 %v778, %v777
      %v784 = vpack.c.bf16 %v780, %v779
      %v789 = vunpack.c.l.b16 %v781
      %v790 = vunpack.c.h.b16 %v781
      %v791 = vunpack.c.l.b16 %v782
      %v792 = vunpack.c.h.b16 %v782
      %v793 = vunpack.c.l.b16 %v783
      %v794 = vunpack.c.h.b16 %v783
      %v795 = vunpack.c.l.b16 %v784
      %v796 = vunpack.c.h.b16 %v784
      %v797 = vpack.c.b16 %v789, %v789
      %v798 = vpack.c.b16 %v790, %v790
      %v799 = vpack.c.b16 %v791, %v791
      %v800 = vpack.c.b16 %v792, %v792
      %v801 = vpack.c.b16 %v793, %v793
      %v802 = vpack.c.b16 %v794, %v794
      %v803 = vpack.c.b16 %v795, %v795
      %v804 = vpack.c.b16 %v796, %v796
      %vm813 = vcmask 519168
      %814 = vst.msk [vmem:[%s192] sm:$0xf] %vm813, %v797
      %815 = vst.msk [vmem:[%s192 + $0x4] sm:$0xf] %vm813, %v798
      %816 = vst.msk [vmem:[%s192 + $0x8] sm:$0xf] %vm813, %v799
      %817 = vst.msk [vmem:[%s192 + $0xc] sm:$0xf] %vm813, %v800
      %818 = vst.msk [vmem:[%s192 + $0x10] sm:$0xf] %vm813, %v801
      %819 = vst.msk [vmem:[%s192 + $0x14] sm:$0xf] %vm813, %v802
      %820 = vst.msk [vmem:[%s192 + $0x18] sm:$0xf] %vm813, %v803
      %821 = vst.msk [vmem:[%s192 + $0x1c] sm:$0xf] %vm813, %v804
      %s822 = smul.u32 8, %s19
      %p823 = scmp.lt.s32.totalorder %s18, 1
      %s824 = scalar_select %p823, %s18, 1
      %p825 = scmp.lt.s32.totalorder %s822, 7
      %s826 = scalar_select %p825, %s822, 7
      %s827 = smul.addr %s824, 8
      %s828 = sadd.s32 %s826, %s827
      %s829 = smul.addr %s828, 4
      %s830 = scalar_lea.vmem %s3, %s829
      // Predicated region
      $region33: #{forward.3} parent=31 // pred_check
        %p831 = pneg %p114
      $region34: #{forward.3} parent=31 // pred_check_branch
        %833 = sbr.rel (%p831) target = $region36
      $region35: #{forward.3} parent=31 // pred_region
        %s834 = smul.u32 8, %s19
      $region36: #{forward.3} parent=31 // pred_fallthru
        _
    $region32: #{forward.3} parent=5 // pred_fallthru
      _
    %p835 = scmp.le.s32.totalorder 2, %s9
    // Predicated region
    $region37: #{forward.3} parent=5 // pred_check
      %p836 = pneg %p835
    $region38: #{forward.3} parent=5 // pred_check_branch
      %838 = sbr.rel (%p836) target = $region40
    $region39: #{forward.3} parent=5 // pred_region
      %s839 = ssub.s32 %s9, 2
      // Predicated region
      $region41: #{forward.3} parent=39 // pred_check
        %p840 = pneg %p120
      $region42: #{forward.3} parent=39 // pred_check_branch
        %842 = sbr.rel (%p840) target = $region44
      $region43: #{forward.3} parent=39 // pred_region
        %s843 = smul.u32 8, %s21
        %p844 = scmp.lt.s32.totalorder %s20, 1
        %s845 = scalar_select %p844, %s20, 1
        %p846 = scmp.lt.s32.totalorder %s843, 7
        %s847 = scalar_select %p846, %s843, 7
        %s848 = smul.addr %s845, 8
        %s849 = sadd.s32 %s847, %s848
        %s850 = smul.addr %s849, 4
        %s851 = scalar_lea.vmem %s3, %s850
      $region44: #{forward.3} parent=39 // pred_fallthru
        _
    $region40: #{forward.3} parent=5 // pred_fallthru
      _
  $region6: #{forward.3} parent=0 // loop_footer
    %s13 = sadd.s32 1, %s9
  $region7: #{forward.3} parent=0 // loop_footer_branch
    %8 = sbr.rel target = $region3
  $region8: #{forward.3} parent=0 // loop_exit
    _

// kernel: forward.4
$region0: #{forward.4}
  #allocation0 [shape = 'u32[]', space=smem, size = 0x4, offset = 0x4, fixed_abs, tag = 'smem constant byte address 0x4 - core index']
  #allocation1 [shape = 'u32[144,128]{1,0:T(1,128)}', space=vmem, size = 0x12000, scoped, tag = 'internal scratch']
  %s0 = inlined_call_operand.vmem [shape: bf16[2,5,5,256], index: 0, kind: input, shape index: {}]
  %s1 = inlined_call_operand.vmem [shape: bf16[4,256,256], index: 1, kind: input, shape index: {}]
  %s2 = inlined_call_operand.vmem [shape: f32[1,256], index: 2, kind: input, shape index: {}]
  %s3 = inlined_call_operand.vmem [shape: bf16[2,16,256], index: 3, kind: output, shape index: {}]
  %s4 = sld [smem:[#allocation0]]
  $region45: #{forward.4} parent=0
    _
  %s6 = ssub.s32 1, %s4
  %s7 = scalar_select 0, %s6, %s4
  loop: start=0, step=1, limit=4
  $region2: #{forward.4} parent=0 // loop_pre_header
    _
  $region3: #{forward.4} parent=0 // loop_header
    %s9 = sphi 0, %s13
    %p10 = scmp.ge.s32.totalorder %s9, 4
    %s16 = sphi 0, %s28
    %s17 = sphi 0, %s24
    %s18 = sphi 0, %s16
    %s19 = sphi 0, %s17
    %s20 = sphi 0, %s18
    %s21 = sphi 0, %s19
    %s31 = sphi 0, %s33
    %s34 = sphi 0, %s31
    %s35 = sphi 0, %s34
    %s51 = sphi 0, %s35
    %s55 = sphi 0, %s55
    %s57 = sphi 0, %s55
    %s58 = sphi 0, %s57
    %s72 = sphi 0, %s58
    %s76 = sphi 0, %s76
    %s78 = sphi 0, %s76
    %s79 = sphi 0, %s78
    %s93 = sphi 0, %s79
    %s101 = sphi 0, %s103
    %s104 = sphi 0, %s101
    %s105 = sphi 0, %s104
    %s121 = sphi 0, %s105
  $region4: #{forward.4} parent=0 // loop_header_branch
    %12 = sbr.rel (%p10) target = $region8
  $region5: #{forward.4} parent=0 // loop_body
    %s14 = ssub.s32 %s9, 1
    %s15 = ssub.s32 %s9, 2
    %s22 = sadd.s32 1, %s17
    %p23 = scmp.ge.s32.totalorder %s22, 1
    %s24 = scalar_select %p23, 0, %s22
    %s25 = sadd.s32 1, %s16
    %s26 = scalar_select %p23, %s25, %s16
    %p27 = scmp.ge.s32.totalorder %s26, 2
    %s28 = scalar_select %p27, 0, %s26
    %s29 = ssub.s32 %s16, %s28
    %p30 = scmp.eq.s32.totalorder %s29, 0
    %s32 = sadd.s32 %s31, 1
    %s33 = scalar_select %p30, %s31, %s32
    %p36 = pneg %p30
    %p37 = scmp.eq.s32.totalorder %s9, 1
    %p38 = por %p36, %p37
    %p39 = scmp.ne.s32.totalorder %s31, %s34
    %p40 = scmp.eq.s32.totalorder %s9, 0
    %p41 = por %p39, %p40
    %p42 = scmp.ne.s32.totalorder %s31, %s34
    %p43 = scmp.eq.s32.totalorder %s14, 1
    %p44 = por %p42, %p43
    %p45 = scmp.ne.s32.totalorder %s34, %s35
    %p46 = scmp.eq.s32.totalorder %s14, 0
    %p47 = por %p45, %p46
    %p48 = scmp.ne.s32.totalorder %s34, %s35
    %p49 = scmp.eq.s32.totalorder %s15, 1
    %p50 = por %p48, %p49
    %p52 = scmp.ne.s32.totalorder %s35, %s51
    %p53 = scmp.eq.s32.totalorder %s15, 0
    %p54 = por %p52, %p53
    %s56 = sadd.s32 %s55, 1
    %p59 = scmp.eq.s32.totalorder %s9, 1
    %p60 = scmp.ne.s32.totalorder %s55, %s57
    %p61 = scmp.eq.s32.totalorder %s9, 0
    %p62 = por %p60, %p61
    %p63 = scmp.ne.s32.totalorder %s55, %s57
    %p64 = scmp.eq.s32.totalorder %s14, 1
    %p65 = por %p63, %p64
    %p66 = scmp.ne.s32.totalorder %s57, %s58
    %p67 = scmp.eq.s32.totalorder %s14, 0
    %p68 = por %p66, %p67
    %p69 = scmp.ne.s32.totalorder %s57, %s58
    %p70 = scmp.eq.s32.totalorder %s15, 1
    %p71 = por %p69, %p70
    %p73 = scmp.ne.s32.totalorder %s58, %s72
    %p74 = scmp.eq.s32.totalorder %s15, 0
    %p75 = por %p73, %p74
    %s77 = sadd.s32 %s76, 1
    %p80 = scmp.eq.s32.totalorder %s9, 1
    %p81 = scmp.ne.s32.totalorder %s76, %s78
    %p82 = scmp.eq.s32.totalorder %s9, 0
    %p83 = por %p81, %p82
    %p84 = scmp.ne.s32.totalorder %s76, %s78
    %p85 = scmp.eq.s32.totalorder %s14, 1
    %p86 = por %p84, %p85
    %p87 = scmp.ne.s32.totalorder %s78, %s79
    %p88 = scmp.eq.s32.totalorder %s14, 0
    %p89 = por %p87, %p88
    %p90 = scmp.ne.s32.totalorder %s78, %s79
    %p91 = scmp.eq.s32.totalorder %s15, 1
    %p92 = por %p90, %p91
    %p94 = scmp.ne.s32.totalorder %s79, %s93
    %p95 = scmp.eq.s32.totalorder %s15, 0
    %p96 = por %p94, %p95
    %s97 = ssub.s32 %s16, %s28
    %s98 = ssub.s32 %s17, %s24
    %s99 = sor.u32 %s97, %s98
    %p100 = scmp.eq.s32.totalorder %s99, 0
    %s102 = sadd.s32 %s101, 1
    %s103 = scalar_select %p100, %s101, %s102
    %p106 = pneg %p100
    %p107 = scmp.eq.s32.totalorder %s9, 1
    %p108 = por %p106, %p107
    %p109 = scmp.ne.s32.totalorder %s101, %s104
    %p110 = scmp.eq.s32.totalorder %s9, 0
    %p111 = por %p109, %p110
    %p112 = scmp.ne.s32.totalorder %s101, %s104
    %p113 = scmp.eq.s32.totalorder %s14, 1
    %p114 = por %p112, %p113
    %p115 = scmp.ne.s32.totalorder %s104, %s105
    %p116 = scmp.eq.s32.totalorder %s14, 0
    %p117 = por %p115, %p116
    %p118 = scmp.ne.s32.totalorder %s104, %s105
    %p119 = scmp.eq.s32.totalorder %s15, 1
    %p120 = por %p118, %p119
    %p122 = scmp.ne.s32.totalorder %s105, %s121
    %p123 = scmp.eq.s32.totalorder %s15, 0
    %p124 = por %p122, %p123
    %p125 = scmp.le.s32.totalorder 1, %s9
    %p126 = scmp.lt.s32.totalorder %s9, 3
    %p127 = pnand %p125, %p126
    %p128 = pneg %p127
    // Predicated region
    $region9: #{forward.4} parent=5 // pred_check
      _
    $region10: #{forward.4} parent=5 // pred_check_branch
      %130 = sbr.rel (%p127) target = $region12
    $region11: #{forward.4} parent=5 // pred_region
      %s131 = ssub.s32 %s9, 1
      // Predicated region
      $region13: #{forward.4} parent=11 // pred_check
        %p132 = pneg %p68
      $region14: #{forward.4} parent=11 // pred_check_branch
        %134 = sbr.rel (%p132) target = $region16
      $region15: #{forward.4} parent=11 // pred_region
        _
      $region16: #{forward.4} parent=11 // pred_fallthru
        _
      // Predicated region
      $region17: #{forward.4} parent=11 // pred_check
        %p135 = pneg %p89
      $region18: #{forward.4} parent=11 // pred_check_branch
        %137 = sbr.rel (%p135) target = $region20
      $region19: #{forward.4} parent=11 // pred_region
        _
      $region20: #{forward.4} parent=11 // pred_fallthru
        _
    $region12: #{forward.4} parent=5 // pred_fallthru
      _
    %p138 = scmp.lt.s32.totalorder %s9, 2
    // Predicated region
    $region21: #{forward.4} parent=5 // pred_check
      %p139 = pneg %p138
    $region22: #{forward.4} parent=5 // pred_check_branch
      %141 = sbr.rel (%p139) target = $region24
    $region23: #{forward.4} parent=5 // pred_region
      // Predicated region
      $region25: #{forward.4} parent=23 // pred_check
        %p142 = pneg %p41
      $region26: #{forward.4} parent=23 // pred_check_branch
        %144 = sbr.rel (%p142) target = $region28
      $region27: #{forward.4} parent=23 // pred_region
        %p145 = scmp.lt.s32.totalorder %s16, 1
        %s146 = scalar_select %p145, %s16, 1
        %s147 = smul.addr %s146, 10
        %s148 = smul.addr %s147, 4
        %s149 = scalar_lea.vmem %s0, %s148
      $region28: #{forward.4} parent=23 // pred_fallthru
        _
    $region24: #{forward.4} parent=5 // pred_fallthru
      _
    %p150 = scmp.le.s32.totalorder 1, %s9
    %p151 = scmp.lt.s32.totalorder %s9, 3
    %p152 = pnand %p150, %p151
    %p153 = pneg %p152
    // Predicated region
    $region29: #{forward.4} parent=5 // pred_check
      _
    $region30: #{forward.4} parent=5 // pred_check_branch
      %155 = sbr.rel (%p152) target = $region32
    $region31: #{forward.4} parent=5 // pred_region
      %s156 = ssub.s32 %s9, 1
      %p157 = scmp.lt.s32.totalorder %s18, 1
      %s158 = scalar_select %p157, %s18, 1
      %s159 = smul.addr %s158, 10
      %s160 = smul.addr %s159, 4
      %s161 = scalar_lea.vmem %s0, %s160
      %p162 = pneg %p47
      %p163 = pneg %p44
      %p164 = pneg %p68
      %p165 = pneg %p65
      %p166 = pneg %p89
      %p167 = pneg %p86
      %p168 = pneg %p117
      %p169 = pneg %p114
      %s170 = smul.u32 2, %s19
      %p171 = scmp.lt.s32.totalorder %s18, 1
      %s172 = scalar_select %p171, %s18, 1
      %p173 = scmp.lt.s32.totalorder %s170, 1
      %s174 = scalar_select %p173, %s170, 1
      %s175 = smul.addr %s174, 2
      %s176 = smul.addr %s172, 4
      %s177 = sadd.s32 %s175, %s176
      %s178 = smul.addr %s177, 4
      %s179 = scalar_lea.vmem %s3, %s178
      %p180 = scmp.lt.s32.totalorder %s18, 1
      %s181 = scalar_select %p180, %s18, 1
      %s182 = smul.addr %s181, 10
      %s183 = smul.addr %s182, 4
      %s184 = scalar_lea.vmem %s0, %s183
      %s185 = smul.u32 2, %s19
      %p186 = scmp.lt.s32.totalorder %s18, 1
      %s187 = scalar_select %p186, %s18, 1
      %p188 = scmp.lt.s32.totalorder %s185, 1
      %s189 = scalar_select %p188, %s185, 1
      %s190 = smul.addr %s189, 2
      %s191 = smul.addr %s187, 4
      %s192 = sadd.s32 %s190, %s191
      %s193 = smul.addr %s192, 4
      %s194 = scalar_lea.vmem %s3, %s193
      %s195 = smul.u32 2, %s19
      %s196 = smul.u32 %s19, 4
      %s197 = smul.u32 %s196, 2
      %s198 = smul.addr %s197, 4
      %s199 = scalar_lea.vmem %s184, %s198
      %v200 = vld [vmem:[%s199] sm:$0x77]
      %v201 = vld [vmem:[%s199 + $0x8] sm:$0x77]
      %v202 = vld [vmem:[%s199 + $0x10] sm:$0x77]
      %v203 = vld [vmem:[%s199 + $0x18] sm:$0x77]
      %v204 = vld [vmem:[%s199 + $0x20] sm:$0x77]
      %v210 = vunpack.c.l.s4 1983009808
      %v211 = vunpack.c.0.s8 %v210
      %v212 = vlaneseq
      %v213 = vshrl.u32 %v212, 7
      %v214 = vsub.s32 %v211, %v213
      %v215 = vrot.slane %v200, %v214
      %v217 = vunpack.c.l.s4 1983009808
      %v218 = vunpack.c.0.s8 %v217
      %v219 = vlaneseq
      %v220 = vshrl.u32 %v219, 7
      %v221 = vsub.s32 %v218, %v220
      %v222 = vrot.slane %v201, %v221
      %v224 = vunpack.c.l.s4 1983009808
      %v225 = vunpack.c.0.s8 %v224
      %v226 = vlaneseq
      %v227 = vshrl.u32 %v226, 7
      %v228 = vsub.s32 %v225, %v227
      %v229 = vrot.slane %v202, %v228
      %v231 = vunpack.c.l.s4 1983009808
      %v232 = vunpack.c.0.s8 %v231
      %v233 = vlaneseq
      %v234 = vshrl.u32 %v233, 7
      %v235 = vsub.s32 %v232, %v234
      %v236 = vrot.slane %v203, %v235
      %v237 = vld [vmem:[%s1] sm:$0xff]
      %v238 = vld [vmem:[%s1 + $0x8] sm:$0xff]
      %v239 = vld [vmem:[%s1 + $0x10] sm:$0xff]
      %v240 = vld [vmem:[%s1 + $0x18] sm:$0xff]
      %v241 = vld [vmem:[%s1 + $0x20] sm:$0xff]
      %v242 = vld [vmem:[%s1 + $0x28] sm:$0xff]
      %v243 = vld [vmem:[%s1 + $0x30] sm:$0xff]
      %v244 = vld [vmem:[%s1 + $0x38] sm:$0xff]
      %v245 = vld [vmem:[%s1 + $0x40] sm:$0xff]
      %v246 = vld [vmem:[%s1 + $0x48] sm:$0xff]
      %v247 = vld [vmem:[%s1 + $0x50] sm:$0xff]
      %v248 = vld [vmem:[%s1 + $0x58] sm:$0xff]
      %v249 = vld [vmem:[%s1 + $0x60] sm:$0xff]
      %v250 = vld [vmem:[%s1 + $0x68] sm:$0xff]
      %v251 = vld [vmem:[%s1 + $0x70] sm:$0xff]
      %v252 = vld [vmem:[%s1 + $0x78] sm:$0xff]
      %v253 = vld [vmem:[%s1 + $0x80] sm:$0xff]
      %v254 = vld [vmem:[%s1 + $0x88] sm:$0xff]
      %v255 = vld [vmem:[%s1 + $0x90] sm:$0xff]
      %v256 = vld [vmem:[%s1 + $0x98] sm:$0xff]
      %v257 = vld [vmem:[%s1 + $0xa0] sm:$0xff]
      %v258 = vld [vmem:[%s1 + $0xa8] sm:$0xff]
      %v259 = vld [vmem:[%s1 + $0xb0] sm:$0xff]
      %v260 = vld [vmem:[%s1 + $0xb8] sm:$0xff]
      %v261 = vld [vmem:[%s1 + $0xc0] sm:$0xff]
      %v262 = vld [vmem:[%s1 + $0xc8] sm:$0xff]
      %v263 = vld [vmem:[%s1 + $0xd0] sm:$0xff]
      %v264 = vld [vmem:[%s1 + $0xd8] sm:$0xff]
      %v265 = vld [vmem:[%s1 + $0xe0] sm:$0xff]
      %v266 = vld [vmem:[%s1 + $0xe8] sm:$0xff]
      %v267 = vld [vmem:[%s1 + $0xf0] sm:$0xff]
      %v268 = vld [vmem:[%s1 + $0xf8] sm:$0xff]
      %v269 = vcombine.high %v215, %v215
      %v270 = vcombine.high %v222, %v222
      %v271 = vcombine.high %v229, %v229
      %v272 = vcombine.high %v236, %v236
      %vm273 = vsmask.f32 1280
      %vm274 = vsmask.f32 3336
      %vm275 = vmor %vm273, %vm274
      %vm276 = vsmask.f32 5392
      %vm277 = vmor %vm275, %vm276
      %vm278 = vsmask.f32 7448
      %vm279 = vmor %vm277, %vm278
      %v281 = vshrl.u32 %v215, 16
      %v283 = vrot.slane %v281, 6
      %v284 = vshll.u32 %v215, 16
      %v286 = vrot.slane %v284, 7
      %v287 = vor.u32 %v283, %v286
      %v288 = vrot.slane %v287, 2
      %v290 = vshll.u32 %v269, 16
      %v292 = vrot.slane %v290, 7
      %v293 = vsel %vm279, %v288, %v292
      %v295 = vshrl.u32 %v222, 16
      %v297 = vrot.slane %v295, 6
      %v298 = vshll.u32 %v222, 16
      %v300 = vrot.slane %v298, 7
      %v301 = vor.u32 %v297, %v300
      %v302 = vrot.slane %v301, 2
      %v304 = vshll.u32 %v270, 16
      %v306 = vrot.slane %v304, 7
      %v307 = vsel %vm279, %v302, %v306
      %v309 = vshrl.u32 %v229, 16
      %v311 = vrot.slane %v309, 6
      %v312 = vshll.u32 %v229, 16
      %v314 = vrot.slane %v312, 7
      %v315 = vor.u32 %v311, %v314
      %v316 = vrot.slane %v315, 2
      %v318 = vshll.u32 %v271, 16
      %v320 = vrot.slane %v318, 7
      %v321 = vsel %vm279, %v316, %v320
      %v323 = vshrl.u32 %v236, 16
      %v325 = vrot.slane %v323, 6
      %v326 = vshll.u32 %v236, 16
      %v328 = vrot.slane %v326, 7
      %v329 = vor.u32 %v325, %v328
      %v330 = vrot.slane %v329, 2
      %v332 = vshll.u32 %v272, 16
      %v334 = vrot.slane %v332, 7
      %v335 = vsel %vm279, %v330, %v334
      %s336 = scalar_lea.vmem %s1, 256
      %v337 = vld [vmem:[%s336] sm:$0xff]
      %v338 = vld [vmem:[%s336 + $0x8] sm:$0xff]
      %v339 = vld [vmem:[%s336 + $0x10] sm:$0xff]
      %v340 = vld [vmem:[%s336 + $0x18] sm:$0xff]
      %v341 = vld [vmem:[%s336 + $0x20] sm:$0xff]
      %v342 = vld [vmem:[%s336 + $0x28] sm:$0xff]
      %v343 = vld [vmem:[%s336 + $0x30] sm:$0xff]
      %v344 = vld [vmem:[%s336 + $0x38] sm:$0xff]
      %v345 = vld [vmem:[%s336 + $0x40] sm:$0xff]
      %v346 = vld [vmem:[%s336 + $0x48] sm:$0xff]
      %v347 = vld [vmem:[%s336 + $0x50] sm:$0xff]
      %v348 = vld [vmem:[%s336 + $0x58] sm:$0xff]
      %v349 = vld [vmem:[%s336 + $0x60] sm:$0xff]
      %v350 = vld [vmem:[%s336 + $0x68] sm:$0xff]
      %v351 = vld [vmem:[%s336 + $0x70] sm:$0xff]
      %v352 = vld [vmem:[%s336 + $0x78] sm:$0xff]
      %v353 = vld [vmem:[%s336 + $0x80] sm:$0xff]
      %v354 = vld [vmem:[%s336 + $0x88] sm:$0xff]
      %v355 = vld [vmem:[%s336 + $0x90] sm:$0xff]
      %v356 = vld [vmem:[%s336 + $0x98] sm:$0xff]
      %v357 = vld [vmem:[%s336 + $0xa0] sm:$0xff]
      %v358 = vld [vmem:[%s336 + $0xa8] sm:$0xff]
      %v359 = vld [vmem:[%s336 + $0xb0] sm:$0xff]
      %v360 = vld [vmem:[%s336 + $0xb8] sm:$0xff]
      %v361 = vld [vmem:[%s336 + $0xc0] sm:$0xff]
      %v362 = vld [vmem:[%s336 + $0xc8] sm:$0xff]
      %v363 = vld [vmem:[%s336 + $0xd0] sm:$0xff]
      %v364 = vld [vmem:[%s336 + $0xd8] sm:$0xff]
      %v365 = vld [vmem:[%s336 + $0xe0] sm:$0xff]
      %v366 = vld [vmem:[%s336 + $0xe8] sm:$0xff]
      %v367 = vld [vmem:[%s336 + $0xf0] sm:$0xff]
      %v368 = vld [vmem:[%s336 + $0xf8] sm:$0xff]
      %v369 = vcombine.low %v293, %v307
      %v370 = vcombine.low %v321, %v335
      %v372 = vunpack.c.l.s4 1983009808
      %v373 = vunpack.c.0.s8 %v372
      %v374 = vlaneseq
      %v375 = vshrl.u32 %v374, 7
      %v376 = vsub.s32 %v373, %v375
      %v377 = vrot.slane %v369, %v376
      %v379 = vunpack.c.l.s4 1983009808
      %v380 = vunpack.c.0.s8 %v379
      %v381 = vlaneseq
      %v382 = vshrl.u32 %v381, 7
      %v383 = vsub.s32 %v380, %v382
      %v384 = vrot.slane %v370, %v383
      %v385 = vcombine.low %v377, %v384
      %v386 = vcombine.high %v377, %v384
      %v421 = vunpack.c.l.b16 %v337
      %v422 = vunpack.c.h.b16 %v337
      %v423 = vunpack.c.l.b16 %v338
      %v424 = vunpack.c.h.b16 %v338
      %v425 = vunpack.c.l.b16 %v339
      %v426 = vunpack.c.h.b16 %v339
      %v427 = vunpack.c.l.b16 %v340
      %v428 = vunpack.c.h.b16 %v340
      %v429 = vunpack.c.l.b16 %v341
      %v430 = vunpack.c.h.b16 %v341
      %v431 = vunpack.c.l.b16 %v342
      %v432 = vunpack.c.h.b16 %v342
      %v433 = vunpack.c.l.b16 %v343
      %v434 = vunpack.c.h.b16 %v343
      %v435 = vunpack.c.l.b16 %v344
      %v436 = vunpack.c.h.b16 %v344
      %v437 = vunpack.c.l.b16 %v345
      %v438 = vunpack.c.h.b16 %v345
      %v439 = vunpack.c.l.b16 %v346
      %v440 = vunpack.c.h.b16 %v346
      %v441 = vunpack.c.l.b16 %v347
      %v442 = vunpack.c.h.b16 %v347
      %v443 = vunpack.c.l.b16 %v348
      %v444 = vunpack.c.h.b16 %v348
      %v445 = vunpack.c.l.b16 %v349
      %v446 = vunpack.c.h.b16 %v349
      %v447 = vunpack.c.l.b16 %v350
      %v448 = vunpack.c.h.b16 %v350
      %v449 = vunpack.c.l.b16 %v351
      %v450 = vunpack.c.h.b16 %v351
      %v451 = vunpack.c.l.b16 %v352
      %v452 = vunpack.c.h.b16 %v352
      %v453 = vunpack.c.l.b16 %v353
      %v454 = vunpack.c.h.b16 %v353
      %v455 = vunpack.c.l.b16 %v354
      %v456 = vunpack.c.h.b16 %v354
      %v457 = vunpack.c.l.b16 %v355
      %v458 = vunpack.c.h.b16 %v355
      %v459 = vunpack.c.l.b16 %v356
      %v460 = vunpack.c.h.b16 %v356
      %v461 = vunpack.c.l.b16 %v357
      %v462 = vunpack.c.h.b16 %v357
      %v463 = vunpack.c.l.b16 %v358
      %v464 = vunpack.c.h.b16 %v358
      %v465 = vunpack.c.l.b16 %v359
      %v466 = vunpack.c.h.b16 %v359
      %v467 = vunpack.c.l.b16 %v360
      %v468 = vunpack.c.h.b16 %v360
      %v469 = vunpack.c.l.b16 %v361
      %v470 = vunpack.c.h.b16 %v361
      %v471 = vunpack.c.l.b16 %v362
      %v472 = vunpack.c.h.b16 %v362
      %v473 = vunpack.c.l.b16 %v363
      %v474 = vunpack.c.h.b16 %v363
      %v475 = vunpack.c.l.b16 %v364
      %v476 = vunpack.c.h.b16 %v364
      %v477 = vunpack.c.l.b16 %v365
      %v478 = vunpack.c.h.b16 %v365
      %v479 = vunpack.c.l.b16 %v366
      %v480 = vunpack.c.h.b16 %v366
      %v481 = vunpack.c.l.b16 %v367
      %v482 = vunpack.c.h.b16 %v367
      %v483 = vunpack.c.l.b16 %v368
      %v484 = vunpack.c.h.b16 %v368
      %v485 = vpack.c.b16 %v423, %v421
      %v486 = vpack.c.b16 %v424, %v422
      %v487 = vpack.c.b16 %v427, %v425
      %v488 = vpack.c.b16 %v428, %v426
      %v489 = vpack.c.b16 %v431, %v429
      %v490 = vpack.c.b16 %v432, %v430
      %v491 = vpack.c.b16 %v435, %v433
      %v492 = vpack.c.b16 %v436, %v434
      %v493 = vpack.c.b16 %v439, %v437
      %v494 = vpack.c.b16 %v440, %v438
      %v495 = vpack.c.b16 %v443, %v441
      %v496 = vpack.c.b16 %v444, %v442
      %v497 = vpack.c.b16 %v447, %v445
      %v498 = vpack.c.b16 %v448, %v446
      %v499 = vpack.c.b16 %v451, %v449
      %v500 = vpack.c.b16 %v452, %v450
      %v501 = vpack.c.b16 %v455, %v453
      %v502 = vpack.c.b16 %v456, %v454
      %v503 = vpack.c.b16 %v459, %v457
      %v504 = vpack.c.b16 %v460, %v458
      %v505 = vpack.c.b16 %v463, %v461
      %v506 = vpack.c.b16 %v464, %v462
      %v507 = vpack.c.b16 %v467, %v465
      %v508 = vpack.c.b16 %v468, %v466
      %v509 = vpack.c.b16 %v471, %v469
      %v510 = vpack.c.b16 %v472, %v470
      %v511 = vpack.c.b16 %v475, %v473
      %v512 = vpack.c.b16 %v476, %v474
      %v513 = vpack.c.b16 %v479, %v477
      %v514 = vpack.c.b16 %v480, %v478
      %v515 = vpack.c.b16 %v483, %v481
      %v516 = vpack.c.b16 %v484, %v482
      %549 = vmatprep.subr.bf16.mxu0 %v486
      %550 = vmatpush1.bf16.msra.mxu0 %v485
      %551 = vmatprep.subr.bf16.mxu0 %v488
      %552 = vmatpush1.bf16.msra.mxu0 %v487
      %553 = vmatprep.subr.bf16.mxu0 %v490
      %554 = vmatpush1.bf16.msra.mxu0 %v489
      %555 = vmatprep.subr.bf16.mxu0 %v492
      %556 = vmatpush1.bf16.msra.mxu0 %v491
      %557 = vmatprep.subr.bf16.mxu0 %v494
      %558 = vmatpush1.bf16.msra.mxu0 %v493
      %559 = vmatprep.subr.bf16.mxu0 %v496
      %560 = vmatpush1.bf16.msra.mxu0 %v495
      %561 = vmatprep.subr.bf16.mxu0 %v498
      %562 = vmatpush1.bf16.msra.mxu0 %v497
      %563 = vmatprep.subr.bf16.mxu0 %v500
      %564 = vmatpush1.bf16.msra.mxu0 %v499
      %565 = vmatprep.subr.bf16.mxu0 %v502
      %566 = vmatpush1.bf16.msra.mxu0 %v501
      %567 = vmatprep.subr.bf16.mxu0 %v504
      %568 = vmatpush1.bf16.msra.mxu0 %v503
      %569 = vmatprep.subr.bf16.mxu0 %v506
      %570 = vmatpush1.bf16.msra.mxu0 %v505
      %571 = vmatprep.subr.bf16.mxu0 %v508
      %572 = vmatpush1.bf16.msra.mxu0 %v507
      %573 = vmatprep.subr.bf16.mxu0 %v510
      %574 = vmatpush1.bf16.msra.mxu0 %v509
      %575 = vmatprep.subr.bf16.mxu0 %v512
      %576 = vmatpush1.bf16.msra.mxu0 %v511
      %577 = vmatprep.subr.bf16.mxu0 %v514
      %578 = vmatpush1.bf16.msra.mxu0 %v513
      %579 = vmatprep.subr.bf16.mxu0 %v516
      %580 = vmatpush1.bf16.msra.mxu0 %v515
      %581 = vmatprep.mubr.bf16.mxu0 %v386
      %582 = vmatmul.mubr.bf16.gmra.mrb[0].mxu0 %v385
      %v583 = vpop.f32.mrb[0].mxu0
      %v584 = vadd.f32 0.0, %v583
      %v585 = vpop.f32.mrb[0].mxu0
      %v586 = vadd.f32 0.0, %v585
      %v587 = vpop.f32.mrb[0].mxu0
      %v588 = vadd.f32 0.0, %v587
      %v589 = vpop.f32.mrb[0].mxu0
      %v590 = vadd.f32 0.0, %v589
      %591 = vdwg.mxu0
      %v592 = vcombine.low %v215, %v222
      %v593 = vcombine.low %v229, %v236
      %v595 = vunpack.c.l.s4 1983009808
      %v596 = vunpack.c.0.s8 %v595
      %v597 = vlaneseq
      %v598 = vshrl.u32 %v597, 7
      %v599 = vsub.s32 %v596, %v598
      %v600 = vrot.slane %v592, %v599
      %v602 = vunpack.c.l.s4 1983009808
      %v603 = vunpack.c.0.s8 %v602
      %v604 = vlaneseq
      %v605 = vshrl.u32 %v604, 7
      %v606 = vsub.s32 %v603, %v605
      %v607 = vrot.slane %v593, %v606
      %v608 = vcombine.low %v600, %v607
      %v609 = vcombine.high %v600, %v607
      %v644 = vunpack.c.l.b16 %v237
      %v645 = vunpack.c.h.b16 %v237
      %v646 = vunpack.c.l.b16 %v238
      %v647 = vunpack.c.h.b16 %v238
      %v648 = vunpack.c.l.b16 %v239
      %v649 = vunpack.c.h.b16 %v239
      %v650 = vunpack.c.l.b16 %v240
      %v651 = vunpack.c.h.b16 %v240
      %v652 = vunpack.c.l.b16 %v241
      %v653 = vunpack.c.h.b16 %v241
      %v654 = vunpack.c.l.b16 %v242
      %v655 = vunpack.c.h.b16 %v242
      %v656 = vunpack.c.l.b16 %v243
      %v657 = vunpack.c.h.b16 %v243
      %v658 = vunpack.c.l.b16 %v244
      %v659 = vunpack.c.h.b16 %v244
      %v660 = vunpack.c.l.b16 %v245
      %v661 = vunpack.c.h.b16 %v245
      %v662 = vunpack.c.l.b16 %v246
      %v663 = vunpack.c.h.b16 %v246
      %v664 = vunpack.c.l.b16 %v247
      %v665 = vunpack.c.h.b16 %v247
      %v666 = vunpack.c.l.b16 %v248
      %v667 = vunpack.c.h.b16 %v248
      %v668 = vunpack.c.l.b16 %v249
      %v669 = vunpack.c.h.b16 %v249
      %v670 = vunpack.c.l.b16 %v250
      %v671 = vunpack.c.h.b16 %v250
      %v672 = vunpack.c.l.b16 %v251
      %v673 = vunpack.c.h.b16 %v251
      %v674 = vunpack.c.l.b16 %v252
      %v675 = vunpack.c.h.b16 %v252
      %v676 = vunpack.c.l.b16 %v253
      %v677 = vunpack.c.h.b16 %v253
      %v678 = vunpack.c.l.b16 %v254
      %v679 = vunpack.c.h.b16 %v254
      %v680 = vunpack.c.l.b16 %v255
      %v681 = vunpack.c.h.b16 %v255
      %v682 = vunpack.c.l.b16 %v256
      %v683 = vunpack.c.h.b16 %v256
      %v684 = vunpack.c.l.b16 %v257
      %v685 = vunpack.c.h.b16 %v257
      %v686 = vunpack.c.l.b16 %v258
      %v687 = vunpack.c.h.b16 %v258
      %v688 = vunpack.c.l.b16 %v259
      %v689 = vunpack.c.h.b16 %v259
      %v690 = vunpack.c.l.b16 %v260
      %v691 = vunpack.c.h.b16 %v260
      %v692 = vunpack.c.l.b16 %v261
      %v693 = vunpack.c.h.b16 %v261
      %v694 = vunpack.c.l.b16 %v262
      %v695 = vunpack.c.h.b16 %v262
      %v696 = vunpack.c.l.b16 %v263
      %v697 = vunpack.c.h.b16 %v263
      %v698 = vunpack.c.l.b16 %v264
      %v699 = vunpack.c.h.b16 %v264
      %v700 = vunpack.c.l.b16 %v265
      %v701 = vunpack.c.h.b16 %v265
      %v702 = vunpack.c.l.b16 %v266
      %v703 = vunpack.c.h.b16 %v266
      %v704 = vunpack.c.l.b16 %v267
      %v705 = vunpack.c.h.b16 %v267
      %v706 = vunpack.c.l.b16 %v268
      %v707 = vunpack.c.h.b16 %v268
      %v708 = vpack.c.b16 %v646, %v644
      %v709 = vpack.c.b16 %v647, %v645
      %v710 = vpack.c.b16 %v650, %v648
      %v711 = vpack.c.b16 %v651, %v649
      %v712 = vpack.c.b16 %v654, %v652
      %v713 = vpack.c.b16 %v655, %v653
      %v714 = vpack.c.b16 %v658, %v656
      %v715 = vpack.c.b16 %v659, %v657
      %v716 = vpack.c.b16 %v662, %v660
      %v717 = vpack.c.b16 %v663, %v661
      %v718 = vpack.c.b16 %v666, %v664
      %v719 = vpack.c.b16 %v667, %v665
      %v720 = vpack.c.b16 %v670, %v668
      %v721 = vpack.c.b16 %v671, %v669
      %v722 = vpack.c.b16 %v674, %v672
      %v723 = vpack.c.b16 %v675, %v673
      %v724 = vpack.c.b16 %v678, %v676
      %v725 = vpack.c.b16 %v679, %v677
      %v726 = vpack.c.b16 %v682, %v680
      %v727 = vpack.c.b16 %v683, %v681
      %v728 = vpack.c.b16 %v686, %v684
      %v729 = vpack.c.b16 %v687, %v685
      %v730 = vpack.c.b16 %v690, %v688
      %v731 = vpack.c.b16 %v691, %v689
      %v732 = vpack.c.b16 %v694, %v692
      %v733 = vpack.c.b16 %v695, %v693
      %v734 = vpack.c.b16 %v698, %v696
      %v735 = vpack.c.b16 %v699, %v697
      %v736 = vpack.c.b16 %v702, %v700
      %v737 = vpack.c.b16 %v703, %v701
      %v738 = vpack.c.b16 %v706, %v704
      %v739 = vpack.c.b16 %v707, %v705
      %772 = vmatprep.subr.bf16.mxu0 %v709
      %773 = vmatpush1.bf16.msra.mxu0 %v708
      %774 = vmatprep.subr.bf16.mxu0 %v711
      %775 = vmatpush1.bf16.msra.mxu0 %v710
      %776 = vmatprep.subr.bf16.mxu0 %v713
      %777 = vmatpush1.bf16.msra.mxu0 %v712
      %778 = vmatprep.subr.bf16.mxu0 %v715
      %779 = vmatpush1.bf16.msra.mxu0 %v714
      %780 = vmatprep.subr.bf16.mxu0 %v717
      %781 = vmatpush1.bf16.msra.mxu0 %v716
      %782 = vmatprep.subr.bf16.mxu0 %v719
      %783 = vmatpush1.bf16.msra.mxu0 %v718
      %784 = vmatprep.subr.bf16.mxu0 %v721
      %785 = vmatpush1.bf16.msra.mxu0 %v720
      %786 = vmatprep.subr.bf16.mxu0 %v723
      %787 = vmatpush1.bf16.msra.mxu0 %v722
      %788 = vmatprep.subr.bf16.mxu0 %v725
      %789 = vmatpush1.bf16.msra.mxu0 %v724
      %790 = vmatprep.subr.bf16.mxu0 %v727
      %791 = vmatpush1.bf16.msra.mxu0 %v726
      %792 = vmatprep.subr.bf16.mxu0 %v729
      %793 = vmatpush1.bf16.msra.mxu0 %v728
      %794 = vmatprep.subr.bf16.mxu0 %v731
      %795 = vmatpush1.bf16.msra.mxu0 %v730
      %796 = vmatprep.subr.bf16.mxu0 %v733
      %797 = vmatpush1.bf16.msra.mxu0 %v732
      %798 = vmatprep.subr.bf16.mxu0 %v735
      %799 = vmatpush1.bf16.msra.mxu0 %v734
      %800 = vmatprep.subr.bf16.mxu0 %v737
      %801 = vmatpush1.bf16.msra.mxu0 %v736
      %802 = vmatprep.subr.bf16.mxu0 %v739
      %803 = vmatpush1.bf16.msra.mxu0 %v738
      %804 = vmatprep.mubr.bf16.mxu0 %v609
      %805 = vmatmul.mubr.bf16.gmra.mrb[0].mxu0 %v608
      %v806 = vpop.f32.mrb[0].mxu0
      %v807 = vadd.f32 %v584, %v806
      %v808 = vpop.f32.mrb[0].mxu0
      %v809 = vadd.f32 %v586, %v808
      %v810 = vpop.f32.mrb[0].mxu0
      %v811 = vadd.f32 %v588, %v810
      %v812 = vpop.f32.mrb[0].mxu0
      %v813 = vadd.f32 %v590, %v812
      %814 = vdwg.mxu0
      %v817 = vunpack.c.l.s4 1983009808
      %v818 = vunpack.c.0.s8 %v817
      %v819 = vlaneseq
      %v820 = vshrl.u32 %v819, 7
      %v821 = vsub.s32 %v818, %v820
      %v822 = vrot.slane %v204, %v821
      %s823 = scalar_lea.vmem %s1, 512
      %v824 = vld [vmem:[%s823] sm:$0xff]
      %v825 = vld [vmem:[%s823 + $0x8] sm:$0xff]
      %v826 = vld [vmem:[%s823 + $0x10] sm:$0xff]
      %v827 = vld [vmem:[%s823 + $0x18] sm:$0xff]
      %v828 = vld [vmem:[%s823 + $0x20] sm:$0xff]
      %v829 = vld [vmem:[%s823 + $0x28] sm:$0xff]
      %v830 = vld [vmem:[%s823 + $0x30] sm:$0xff]
      %v831 = vld [vmem:[%s823 + $0x38] sm:$0xff]
      %v832 = vld [vmem:[%s823 + $0x40] sm:$0xff]
      %v833 = vld [vmem:[%s823 + $0x48] sm:$0xff]
      %v834 = vld [vmem:[%s823 + $0x50] sm:$0xff]
      %v835 = vld [vmem:[%s823 + $0x58] sm:$0xff]
      %v836 = vld [vmem:[%s823 + $0x60] sm:$0xff]
      %v837 = vld [vmem:[%s823 + $0x68] sm:$0xff]
      %v838 = vld [vmem:[%s823 + $0x70] sm:$0xff]
      %v839 = vld [vmem:[%s823 + $0x78] sm:$0xff]
      %v840 = vld [vmem:[%s823 + $0x80] sm:$0xff]
      %v841 = vld [vmem:[%s823 + $0x88] sm:$0xff]
      %v842 = vld [vmem:[%s823 + $0x90] sm:$0xff]
      %v843 = vld [vmem:[%s823 + $0x98] sm:$0xff]
      %v844 = vld [vmem:[%s823 + $0xa0] sm:$0xff]
      %v845 = vld [vmem:[%s823 + $0xa8] sm:$0xff]
      %v846 = vld [vmem:[%s823 + $0xb0] sm:$0xff]
      %v847 = vld [vmem:[%s823 + $0xb8] sm:$0xff]
      %v848 = vld [vmem:[%s823 + $0xc0] sm:$0xff]
      %v849 = vld [vmem:[%s823 + $0xc8] sm:$0xff]
      %v850 = vld [vmem:[%s823 + $0xd0] sm:$0xff]
      %v851 = vld [vmem:[%s823 + $0xd8] sm:$0xff]
      %v852 = vld [vmem:[%s823 + $0xe0] sm:$0xff]
      %v853 = vld [vmem:[%s823 + $0xe8] sm:$0xff]
      %v854 = vld [vmem:[%s823 + $0xf0] sm:$0xff]
      %v855 = vld [vmem:[%s823 + $0xf8] sm:$0xff]
      %v856 = vcombine.low %v222, %v229
      %v857 = vcombine.low %v236, %v822
      %v859 = vunpack.c.l.s4 1983009808
      %v860 = vunpack.c.0.s8 %v859
      %v861 = vlaneseq
      %v862 = vshrl.u32 %v861, 7
      %v863 = vsub.s32 %v860, %v862
      %v864 = vrot.slane %v856, %v863
      %v866 = vunpack.c.l.s4 1983009808
      %v867 = vunpack.c.0.s8 %v866
      %v868 = vlaneseq
      %v869 = vshrl.u32 %v868, 7
      %v870 = vsub.s32 %v867, %v869
      %v871 = vrot.slane %v857, %v870
      %v872 = vcombine.low %v864, %v871
      %v873 = vcombine.high %v864, %v871
      %v908 = vunpack.c.l.b16 %v824
      %v909 = vunpack.c.h.b16 %v824
      %v910 = vunpack.c.l.b16 %v825
      %v911 = vunpack.c.h.b16 %v825
      %v912 = vunpack.c.l.b16 %v826
      %v913 = vunpack.c.h.b16 %v826
      %v914 = vunpack.c.l.b16 %v827
      %v915 = vunpack.c.h.b16 %v827
      %v916 = vunpack.c.l.b16 %v828
      %v917 = vunpack.c.h.b16 %v828
      %v918 = vunpack.c.l.b16 %v829
      %v919 = vunpack.c.h.b16 %v829
      %v920 = vunpack.c.l.b16 %v830
      %v921 = vunpack.c.h.b16 %v830
      %v922 = vunpack.c.l.b16 %v831
      %v923 = vunpack.c.h.b16 %v831
      %v924 = vunpack.c.l.b16 %v832
      %v925 = vunpack.c.h.b16 %v832
      %v926 = vunpack.c.l.b16 %v833
      %v927 = vunpack.c.h.b16 %v833
      %v928 = vunpack.c.l.b16 %v834
      %v929 = vunpack.c.h.b16 %v834
      %v930 = vunpack.c.l.b16 %v835
      %v931 = vunpack.c.h.b16 %v835
      %v932 = vunpack.c.l.b16 %v836
      %v933 = vunpack.c.h.b16 %v836
      %v934 = vunpack.c.l.b16 %v837
      %v935 = vunpack.c.h.b16 %v837
      %v936 = vunpack.c.l.b16 %v838
      %v937 = vunpack.c.h.b16 %v838
      %v938 = vunpack.c.l.b16 %v839
      %v939 = vunpack.c.h.b16 %v839
      %v940 = vunpack.c.l.b16 %v840
      %v941 = vunpack.c.h.b16 %v840
      %v942 = vunpack.c.l.b16 %v841
      %v943 = vunpack.c.h.b16 %v841
      %v944 = vunpack.c.l.b16 %v842
      %v945 = vunpack.c.h.b16 %v842
      %v946 = vunpack.c.l.b16 %v843
      %v947 = vunpack.c.h.b16 %v843
      %v948 = vunpack.c.l.b16 %v844
      %v949 = vunpack.c.h.b16 %v844
      %v950 = vunpack.c.l.b16 %v845
      %v951 = vunpack.c.h.b16 %v845
      %v952 = vunpack.c.l.b16 %v846
      %v953 = vunpack.c.h.b16 %v846
      %v954 = vunpack.c.l.b16 %v847
      %v955 = vunpack.c.h.b16 %v847
      %v956 = vunpack.c.l.b16 %v848
      %v957 = vunpack.c.h.b16 %v848
      %v958 = vunpack.c.l.b16 %v849
      %v959 = vunpack.c.h.b16 %v849
      %v960 = vunpack.c.l.b16 %v850
      %v961 = vunpack.c.h.b16 %v850
      %v962 = vunpack.c.l.b16 %v851
      %v963 = vunpack.c.h.b16 %v851
      %v964 = vunpack.c.l.b16 %v852
      %v965 = vunpack.c.h.b16 %v852
      %v966 = vunpack.c.l.b16 %v853
      %v967 = vunpack.c.h.b16 %v853
      %v968 = vunpack.c.l.b16 %v854
      %v969 = vunpack.c.h.b16 %v854
      %v970 = vunpack.c.l.b16 %v855
      %v971 = vunpack.c.h.b16 %v855
      %v972 = vpack.c.b16 %v910, %v908
      %v973 = vpack.c.b16 %v911, %v909
      %v974 = vpack.c.b16 %v914, %v912
      %v975 = vpack.c.b16 %v915, %v913
      %v976 = vpack.c.b16 %v918, %v916
      %v977 = vpack.c.b16 %v919, %v917
      %v978 = vpack.c.b16 %v922, %v920
      %v979 = vpack.c.b16 %v923, %v921
      %v980 = vpack.c.b16 %v926, %v924
      %v981 = vpack.c.b16 %v927, %v925
      %v982 = vpack.c.b16 %v930, %v928
      %v983 = vpack.c.b16 %v931, %v929
      %v984 = vpack.c.b16 %v934, %v932
      %v985 = vpack.c.b16 %v935, %v933
      %v986 = vpack.c.b16 %v938, %v936
      %v987 = vpack.c.b16 %v939, %v937
      %v988 = vpack.c.b16 %v942, %v940
      %v989 = vpack.c.b16 %v943, %v941
      %v990 = vpack.c.b16 %v946, %v944
      %v991 = vpack.c.b16 %v947, %v945
      %v992 = vpack.c.b16 %v950, %v948
      %v993 = vpack.c.b16 %v951, %v949
      %v994 = vpack.c.b16 %v954, %v952
      %v995 = vpack.c.b16 %v955, %v953
      %v996 = vpack.c.b16 %v958, %v956
      %v997 = vpack.c.b16 %v959, %v957
      %v998 = vpack.c.b16 %v962, %v960
      %v999 = vpack.c.b16 %v963, %v961
      %v1000 = vpack.c.b16 %v966, %v964
      %v1001 = vpack.c.b16 %v967, %v965
      %v1002 = vpack.c.b16 %v970, %v968
      %v1003 = vpack.c.b16 %v971, %v969
      %1036 = vmatprep.subr.bf16.mxu0 %v973
      %1037 = vmatpush1.bf16.msra.mxu0 %v972
      %1038 = vmatprep.subr.bf16.mxu0 %v975
      %1039 = vmatpush1.bf16.msra.mxu0 %v974
      %1040 = vmatprep.subr.bf16.mxu0 %v977
      %1041 = vmatpush1.bf16.msra.mxu0 %v976
      %1042 = vmatprep.subr.bf16.mxu0 %v979
      %1043 = vmatpush1.bf16.msra.mxu0 %v978
      %1044 = vmatprep.subr.bf16.mxu0 %v981
      %1045 = vmatpush1.bf16.msra.mxu0 %v980
      %1046 = vmatprep.subr.bf16.mxu0 %v983
      %1047 = vmatpush1.bf16.msra.mxu0 %v982
      %1048 = vmatprep.subr.bf16.mxu0 %v985
      %1049 = vmatpush1.bf16.msra.mxu0 %v984
      %1050 = vmatprep.subr.bf16.mxu0 %v987
      %1051 = vmatpush1.bf16.msra.mxu0 %v986
      %1052 = vmatprep.subr.bf16.mxu0 %v989
      %1053 = vmatpush1.bf16.msra.mxu0 %v988
      %1054 = vmatprep.subr.bf16.mxu0 %v991
      %1055 = vmatpush1.bf16.msra.mxu0 %v990
      %1056 = vmatprep.subr.bf16.mxu0 %v993
      %1057 = vmatpush1.bf16.msra.mxu0 %v992
      %1058 = vmatprep.subr.bf16.mxu0 %v995
      %1059 = vmatpush1.bf16.msra.mxu0 %v994
      %1060 = vmatprep.subr.bf16.mxu0 %v997
      %1061 = vmatpush1.bf16.msra.mxu0 %v996
      %1062 = vmatprep.subr.bf16.mxu0 %v999
      %1063 = vmatpush1.bf16.msra.mxu0 %v998
      %1064 = vmatprep.subr.bf16.mxu0 %v1001
      %1065 = vmatpush1.bf16.msra.mxu0 %v1000
      %1066 = vmatprep.subr.bf16.mxu0 %v1003
      %1067 = vmatpush1.bf16.msra.mxu0 %v1002
      %1068 = vmatprep.mubr.bf16.mxu0 %v873
      %1069 = vmatmul.mubr.bf16.gmra.mrb[0].mxu0 %v872
      %v1070 = vpop.f32.mrb[0].mxu0
      %v1071 = vadd.f32 0.0, %v1070
      %v1072 = vpop.f32.mrb[0].mxu0
      %v1073 = vadd.f32 0.0, %v1072
      %v1074 = vpop.f32.mrb[0].mxu0
      %v1075 = vadd.f32 0.0, %v1074
      %v1076 = vpop.f32.mrb[0].mxu0
      %v1077 = vadd.f32 0.0, %v1076
      %1078 = vdwg.mxu0
      %v1079 = vadd.f32 %v807, %v1071
      %v1080 = vadd.f32 %v809, %v1073
      %v1081 = vadd.f32 %v811, %v1075
      %v1082 = vadd.f32 %v813, %v1077
      %v1083 = vcombine.high %v822, %v822
      %v1085 = vshrl.u32 %v822, 16
      %v1087 = vrot.slane %v1085, 6
      %v1088 = vshll.u32 %v822, 16
      %v1090 = vrot.slane %v1088, 7
      %v1091 = vor.u32 %v1087, %v1090
      %v1092 = vrot.slane %v1091, 2
      %v1094 = vshll.u32 %v1083, 16
      %v1096 = vrot.slane %v1094, 7
      %v1097 = vsel %vm279, %v1092, %v1096
      %s1098 = scalar_lea.vmem %s1, 768
      %v1099 = vld [vmem:[%s1098] sm:$0xff]
      %v1100 = vld [vmem:[%s1098 + $0x8] sm:$0xff]
      %v1101 = vld [vmem:[%s1098 + $0x10] sm:$0xff]
      %v1102 = vld [vmem:[%s1098 + $0x18] sm:$0xff]
      %v1103 = vld [vmem:[%s1098 + $0x20] sm:$0xff]
      %v1104 = vld [vmem:[%s1098 + $0x28] sm:$0xff]
      %v1105 = vld [vmem:[%s1098 + $0x30] sm:$0xff]
      %v1106 = vld [vmem:[%s1098 + $0x38] sm:$0xff]
      %v1107 = vld [vmem:[%s1098 + $0x40] sm:$0xff]
      %v1108 = vld [vmem:[%s1098 + $0x48] sm:$0xff]
      %v1109 = vld [vmem:[%s1098 + $0x50] sm:$0xff]
      %v1110 = vld [vmem:[%s1098 + $0x58] sm:$0xff]
      %v1111 = vld [vmem:[%s1098 + $0x60] sm:$0xff]
      %v1112 = vld [vmem:[%s1098 + $0x68] sm:$0xff]
      %v1113 = vld [vmem:[%s1098 + $0x70] sm:$0xff]
      %v1114 = vld [vmem:[%s1098 + $0x78] sm:$0xff]
      %v1115 = vld [vmem:[%s1098 + $0x80] sm:$0xff]
      %v1116 = vld [vmem:[%s1098 + $0x88] sm:$0xff]
      %v1117 = vld [vmem:[%s1098 + $0x90] sm:$0xff]
      %v1118 = vld [vmem:[%s1098 + $0x98] sm:$0xff]
      %v1119 = vld [vmem:[%s1098 + $0xa0] sm:$0xff]
      %v1120 = vld [vmem:[%s1098 + $0xa8] sm:$0xff]
      %v1121 = vld [vmem:[%s1098 + $0xb0] sm:$0xff]
      %v1122 = vld [vmem:[%s1098 + $0xb8] sm:$0xff]
      %v1123 = vld [vmem:[%s1098 + $0xc0] sm:$0xff]
      %v1124 = vld [vmem:[%s1098 + $0xc8] sm:$0xff]
      %v1125 = vld [vmem:[%s1098 + $0xd0] sm:$0xff]
      %v1126 = vld [vmem:[%s1098 + $0xd8] sm:$0xff]
      %v1127 = vld [vmem:[%s1098 + $0xe0] sm:$0xff]
      %v1128 = vld [vmem:[%s1098 + $0xe8] sm:$0xff]
      %v1129 = vld [vmem:[%s1098 + $0xf0] sm:$0xff]
      %v1130 = vld [vmem:[%s1098 + $0xf8] sm:$0xff]
      %v1131 = vcombine.low %v307, %v321
      %v1132 = vcombine.low %v335, %v1097
      %v1134 = vunpack.c.l.s4 1983009808
      %v1135 = vunpack.c.0.s8 %v1134
      %v1136 = vlaneseq
      %v1137 = vshrl.u32 %v1136, 7
      %v1138 = vsub.s32 %v1135, %v1137
      %v1139 = vrot.slane %v1131, %v1138
      %v1141 = vunpack.c.l.s4 1983009808
      %v1142 = vunpack.c.0.s8 %v1141
      %v1143 = vlaneseq
      %v1144 = vshrl.u32 %v1143, 7
      %v1145 = vsub.s32 %v1142, %v1144
      %v1146 = vrot.slane %v1132, %v1145
      %v1147 = vcombine.low %v1139, %v1146
      %v1148 = vcombine.high %v1139, %v1146
      %v1183 = vunpack.c.l.b16 %v1099
      %v1184 = vunpack.c.h.b16 %v1099
      %v1185 = vunpack.c.l.b16 %v1100
      %v1186 = vunpack.c.h.b16 %v1100
      %v1187 = vunpack.c.l.b16 %v1101
      %v1188 = vunpack.c.h.b16 %v1101
      %v1189 = vunpack.c.l.b16 %v1102
      %v1190 = vunpack.c.h.b16 %v1102
      %v1191 = vunpack.c.l.b16 %v1103
      %v1192 = vunpack.c.h.b16 %v1103
      %v1193 = vunpack.c.l.b16 %v1104
      %v1194 = vunpack.c.h.b16 %v1104
      %v1195 = vunpack.c.l.b16 %v1105
      %v1196 = vunpack.c.h.b16 %v1105
      %v1197 = vunpack.c.l.b16 %v1106
      %v1198 = vunpack.c.h.b16 %v1106
      %v1199 = vunpack.c.l.b16 %v1107
      %v1200 = vunpack.c.h.b16 %v1107
      %v1201 = vunpack.c.l.b16 %v1108
      %v1202 = vunpack.c.h.b16 %v1108
      %v1203 = vunpack.c.l.b16 %v1109
      %v1204 = vunpack.c.h.b16 %v1109
      %v1205 = vunpack.c.l.b16 %v1110
      %v1206 = vunpack.c.h.b16 %v1110
      %v1207 = vunpack.c.l.b16 %v1111
      %v1208 = vunpack.c.h.b16 %v1111
      %v1209 = vunpack.c.l.b16 %v1112
      %v1210 = vunpack.c.h.b16 %v1112
      %v1211 = vunpack.c.l.b16 %v1113
      %v1212 = vunpack.c.h.b16 %v1113
      %v1213 = vunpack.c.l.b16 %v1114
      %v1214 = vunpack.c.h.b16 %v1114
      %v1215 = vunpack.c.l.b16 %v1115
      %v1216 = vunpack.c.h.b16 %v1115
      %v1217 = vunpack.c.l.b16 %v1116
      %v1218 = vunpack.c.h.b16 %v1116
      %v1219 = vunpack.c.l.b16 %v1117
      %v1220 = vunpack.c.h.b16 %v1117
      %v1221 = vunpack.c.l.b16 %v1118
      %v1222 = vunpack.c.h.b16 %v1118
      %v1223 = vunpack.c.l.b16 %v1119
      %v1224 = vunpack.c.h.b16 %v1119
      %v1225 = vunpack.c.l.b16 %v1120
      %v1226 = vunpack.c.h.b16 %v1120
      %v1227 = vunpack.c.l.b16 %v1121
      %v1228 = vunpack.c.h.b16 %v1121
      %v1229 = vunpack.c.l.b16 %v1122
      %v1230 = vunpack.c.h.b16 %v1122
      %v1231 = vunpack.c.l.b16 %v1123
      %v1232 = vunpack.c.h.b16 %v1123
      %v1233 = vunpack.c.l.b16 %v1124
      %v1234 = vunpack.c.h.b16 %v1124
      %v1235 = vunpack.c.l.b16 %v1125
      %v1236 = vunpack.c.h.b16 %v1125
      %v1237 = vunpack.c.l.b16 %v1126
      %v1238 = vunpack.c.h.b16 %v1126
      %v1239 = vunpack.c.l.b16 %v1127
      %v1240 = vunpack.c.h.b16 %v1127
      %v1241 = vunpack.c.l.b16 %v1128
      %v1242 = vunpack.c.h.b16 %v1128
      %v1243 = vunpack.c.l.b16 %v1129
      %v1244 = vunpack.c.h.b16 %v1129
      %v1245 = vunpack.c.l.b16 %v1130
      %v1246 = vunpack.c.h.b16 %v1130
      %v1247 = vpack.c.b16 %v1185, %v1183
      %v1248 = vpack.c.b16 %v1186, %v1184
      %v1249 = vpack.c.b16 %v1189, %v1187
      %v1250 = vpack.c.b16 %v1190, %v1188
      %v1251 = vpack.c.b16 %v1193, %v1191
      %v1252 = vpack.c.b16 %v1194, %v1192
      %v1253 = vpack.c.b16 %v1197, %v1195
      %v1254 = vpack.c.b16 %v1198, %v1196
      %v1255 = vpack.c.b16 %v1201, %v1199
      %v1256 = vpack.c.b16 %v1202, %v1200
      %v1257 = vpack.c.b16 %v1205, %v1203
      %v1258 = vpack.c.b16 %v1206, %v1204
      %v1259 = vpack.c.b16 %v1209, %v1207
      %v1260 = vpack.c.b16 %v1210, %v1208
      %v1261 = vpack.c.b16 %v1213, %v1211
      %v1262 = vpack.c.b16 %v1214, %v1212
      %v1263 = vpack.c.b16 %v1217, %v1215
      %v1264 = vpack.c.b16 %v1218, %v1216
      %v1265 = vpack.c.b16 %v1221, %v1219
      %v1266 = vpack.c.b16 %v1222, %v1220
      %v1267 = vpack.c.b16 %v1225, %v1223
      %v1268 = vpack.c.b16 %v1226, %v1224
      %v1269 = vpack.c.b16 %v1229, %v1227
      %v1270 = vpack.c.b16 %v1230, %v1228
      %v1271 = vpack.c.b16 %v1233, %v1231
      %v1272 = vpack.c.b16 %v1234, %v1232
      %v1273 = vpack.c.b16 %v1237, %v1235
      %v1274 = vpack.c.b16 %v1238, %v1236
      %v1275 = vpack.c.b16 %v1241, %v1239
      %v1276 = vpack.c.b16 %v1242, %v1240
      %v1277 = vpack.c.b16 %v1245, %v1243
      %v1278 = vpack.c.b16 %v1246, %v1244
      %1311 = vmatprep.subr.bf16.mxu0 %v1248
      %1312 = vmatpush1.bf16.msra.mxu0 %v1247
      %1313 = vmatprep.subr.bf16.mxu0 %v1250
      %1314 = vmatpush1.bf16.msra.mxu0 %v1249
      %1315 = vmatprep.subr.bf16.mxu0 %v1252
      %1316 = vmatpush1.bf16.msra.mxu0 %v1251
      %1317 = vmatprep.subr.bf16.mxu0 %v1254
      %1318 = vmatpush1.bf16.msra.mxu0 %v1253
      %1319 = vmatprep.subr.bf16.mxu0 %v1256
      %1320 = vmatpush1.bf16.msra.mxu0 %v1255
      %1321 = vmatprep.subr.bf16.mxu0 %v1258
      %1322 = vmatpush1.bf16.msra.mxu0 %v1257
      %1323 = vmatprep.subr.bf16.mxu0 %v1260
      %1324 = vmatpush1.bf16.msra.mxu0 %v1259
      %1325 = vmatprep.subr.bf16.mxu0 %v1262
      %1326 = vmatpush1.bf16.msra.mxu0 %v1261
      %1327 = vmatprep.subr.bf16.mxu0 %v1264
      %1328 = vmatpush1.bf16.msra.mxu0 %v1263
      %1329 = vmatprep.subr.bf16.mxu0 %v1266
      %1330 = vmatpush1.bf16.msra.mxu0 %v1265
      %1331 = vmatprep.subr.bf16.mxu0 %v1268
      %1332 = vmatpush1.bf16.msra.mxu0 %v1267
      %1333 = vmatprep.subr.bf16.mxu0 %v1270
      %1334 = vmatpush1.bf16.msra.mxu0 %v1269
      %1335 = vmatprep.subr.bf16.mxu0 %v1272
      %1336 = vmatpush1.bf16.msra.mxu0 %v1271
      %1337 = vmatprep.subr.bf16.mxu0 %v1274
      %1338 = vmatpush1.bf16.msra.mxu0 %v1273
      %1339 = vmatprep.subr.bf16.mxu0 %v1276
      %1340 = vmatpush1.bf16.msra.mxu0 %v1275
      %1341 = vmatprep.subr.bf16.mxu0 %v1278
      %1342 = vmatpush1.bf16.msra.mxu0 %v1277
      %1343 = vmatprep.mubr.bf16.mxu0 %v1148
      %1344 = vmatmul.mubr.bf16.gmra.mrb[0].mxu0 %v1147
      %v1345 = vpop.f32.mrb[0].mxu0
      %v1346 = vadd.f32 0.0, %v1345
      %v1347 = vpop.f32.mrb[0].mxu0
      %v1348 = vadd.f32 0.0, %v1347
      %v1349 = vpop.f32.mrb[0].mxu0
      %v1350 = vadd.f32 0.0, %v1349
      %v1351 = vpop.f32.mrb[0].mxu0
      %v1352 = vadd.f32 0.0, %v1351
      %1353 = vdwg.mxu0
      %v1354 = vadd.f32 %v1079, %v1346
      %v1355 = vadd.f32 %v1080, %v1348
      %v1356 = vadd.f32 %v1081, %v1350
      %v1357 = vadd.f32 %v1082, %v1352
      %v1358 = vld [vmem:[%s2] sm:$0x3]
      %v1360 = vlaneseq
      %v1361 = vshrl.u32 %v1360, 7
      %v1362 = vsub.s32 0, %v1361
      %v1363 = vrot.slane %v1358, %v1362
      %v1364 = vlaneseq
      %v1365 = vshrl.u32 %v1364, 7
      %v1366 = vsub.s32 1, %v1365
      %v1367 = vrot.slane %v1358, %v1366
      %v1370 = vadd.f32 %v1354, %v1363
      %v1371 = vadd.f32 %v1355, %v1367
      %v1372 = vadd.f32 %v1356, %v1363
      %v1373 = vadd.f32 %v1357, %v1367
      %v1374 = vmax.f32 %v1370, 0.0
      %v1375 = vmax.f32 %v1371, 0.0
      %v1376 = vmax.f32 %v1372, 0.0
      %v1377 = vmax.f32 %v1373, 0.0
      %v1378 = vpack.c.bf16 %v1376, %v1374
      %v1379 = vpack.c.bf16 %v1377, %v1375
      %v1382 = vunpack.c.l.b16 %v1378
      %v1383 = vunpack.c.l.b16 %v1379
      %v1384 = vunpack.c.h.b16 %v1378
      %v1385 = vunpack.c.h.b16 %v1379
      %v1386 = vpack.c.b16 %v1383, %v1382
      %v1387 = vpack.c.b16 %v1385, %v1384
      %1390 = vst [vmem:[%s194] sm:$0xff] %v1386
      %1391 = vst [vmem:[%s194 + $0x8] sm:$0xff] %v1387
      %s1392 = smul.u32 2, %s19
      %p1393 = scmp.lt.s32.totalorder %s18, 1
      %s1394 = scalar_select %p1393, %s18, 1
      %p1395 = scmp.lt.s32.totalorder %s1392, 1
      %s1396 = scalar_select %p1395, %s1392, 1
      %s1397 = smul.addr %s1396, 2
      %s1398 = smul.addr %s1394, 4
      %s1399 = sadd.s32 %s1397, %s1398
      %s1400 = smul.addr %s1399, 4
      %s1401 = scalar_lea.vmem %s3, %s1400
      // Predicated region
      $region33: #{forward.4} parent=31 // pred_check
        %p1402 = pneg %p114
      $region34: #{forward.4} parent=31 // pred_check_branch
        %1404 = sbr.rel (%p1402) target = $region36
      $region35: #{forward.4} parent=31 // pred_region
        %s1405 = smul.u32 2, %s19
      $region36: #{forward.4} parent=31 // pred_fallthru
        _
    $region32: #{forward.4} parent=5 // pred_fallthru
      _
    %p1406 = scmp.le.s32.totalorder 2, %s9
    // Predicated region
    $region37: #{forward.4} parent=5 // pred_check
      %p1407 = pneg %p1406
    $region38: #{forward.4} parent=5 // pred_check_branch
      %1409 = sbr.rel (%p1407) target = $region40
    $region39: #{forward.4} parent=5 // pred_region
      %s1410 = ssub.s32 %s9, 2
      // Predicated region
      $region41: #{forward.4} parent=39 // pred_check
        %p1411 = pneg %p120
      $region42: #{forward.4} parent=39 // pred_check_branch
        %1413 = sbr.rel (%p1411) target = $region44
      $region43: #{forward.4} parent=39 // pred_region
        %s1414 = smul.u32 2, %s21
        %p1415 = scmp.lt.s32.totalorder %s20, 1
        %s1416 = scalar_select %p1415, %s20, 1
        %p1417 = scmp.lt.s32.totalorder %s1414, 1
        %s1418 = scalar_select %p1417, %s1414, 1
        %s1419 = smul.addr %s1418, 2
        %s1420 = smul.addr %s1416, 4
        %s1421 = sadd.s32 %s1419, %s1420
        %s1422 = smul.addr %s1421, 4
        %s1423 = scalar_lea.vmem %s3, %s1422
      $region44: #{forward.4} parent=39 // pred_fallthru
        _
    $region40: #{forward.4} parent=5 // pred_fallthru
      _
  $region6: #{forward.4} parent=0 // loop_footer
    %s13 = sadd.s32 1, %s9
  $region7: #{forward.4} parent=0 // loop_footer_branch
    %8 = sbr.rel target = $region3
  $region8: #{forward.4} parent=0 // loop_exit
    _

// kernel: forward.5
$region0: #{forward.5}
  #allocation0 [shape = 'u32[]', space=smem, size = 0x4, offset = 0x4, fixed_abs, tag = 'smem constant byte address 0x4 - core index']
  #allocation1 [shape = 'u32[144,128]{1,0:T(1,128)}', space=vmem, size = 0x12000, scoped, tag = 'internal scratch']
  #allocation2 [shape = 'f32[1,1024]{1,0:T(1,128)}', space=vmem, size = 0x1000, scoped, tag = 'scratch operand']
  %s0 = inlined_call_operand.vmem [shape: bf16[2,16,256], index: 0, kind: input, shape index: {}]
  %s1 = inlined_call_operand.vmem [shape: bf16[256,1024], index: 1, kind: input, shape index: {}]
  %s2 = inlined_call_operand.vmem [shape: f32[1,1024], index: 2, kind: input, shape index: {}]
  %s3 = inlined_call_operand.vmem [shape: bf16[1024,128], index: 3, kind: input, shape index: {}]
  %s4 = inlined_call_operand.vmem [shape: f32[1,128], index: 4, kind: input, shape index: {}]
  %s5 = inlined_call_operand.hbm [shape: f32[2,128], index: 5, kind: output, shape index: {0}]
  %s6 = inlined_call_operand.hbm [shape: f32[2,1024], index: 6, kind: output, shape index: {1}]
  %7 = xla_tuple %s5, %s6
  %s8 = sld [smem:[#allocation0]]
  $region69: #{forward.5} parent=0
    _
  %s10 = ssub.s32 1, %s8
  %s11 = scalar_select 0, %s10, %s8
  $region1: #{forward.5} parent=0
    #allocation3 [shape = 'u8[1024]{0}', space=vmem, size = 0x400, scoped, tag = 'output window, operand 0, single buffered']
    #allocation4 [shape = 's32[2]{0}', space=sflag, size = 0x8, scoped, tag = 'scoped memory for forward.5']
    #allocation5 [shape = 'u8[8192]{0}', space=vmem, size = 0x2000, scoped, tag = 'output window, operand 1, single buffered']
    #allocation6 [shape = 's32[1]{0}', space=sflag, size = 0x4, scoped, tag = 'scoped memory for forward.5']
    %12 = vsyncpa [#allocation4], 0
    %13 = vsyncpa [#allocation6], 0
    loop: start=0, step=1, limit=4
    $region2: #{forward.5} parent=1 // loop_pre_header
      _
    $region3: #{forward.5} parent=1 // loop_header
      %s15 = sphi 0, %s19
      %p16 = scmp.ge.s32.totalorder %s15, 4
      %s22 = sphi 0, %s34
      %s23 = sphi 0, %s30
      %s24 = sphi 0, %s22
      %s25 = sphi 0, %s23
      %s26 = sphi 0, %s24
      %s27 = sphi 0, %s25
      %s39 = sphi 0, %s41
      %s42 = sphi 0, %s39
      %s43 = sphi 0, %s42
      %s59 = sphi 0, %s43
      %s63 = sphi 0, %s63
      %s65 = sphi 0, %s63
      %s66 = sphi 0, %s65
      %s80 = sphi 0, %s66
      %s84 = sphi 0, %s84
      %s86 = sphi 0, %s84
      %s87 = sphi 0, %s86
      %s101 = sphi 0, %s87
      %s105 = sphi 0, %s105
      %s107 = sphi 0, %s105
      %s108 = sphi 0, %s107
      %s122 = sphi 0, %s108
      %s126 = sphi 0, %s126
      %s128 = sphi 0, %s126
      %s129 = sphi 0, %s128
      %s143 = sphi 0, %s129
      %s147 = sphi 0, %s147
      %s149 = sphi 0, %s147
      %s150 = sphi 0, %s149
      %s164 = sphi 0, %s150
      %s168 = sphi 0, %s168
      %s170 = sphi 0, %s168
      %s171 = sphi 0, %s170
      %s185 = sphi 0, %s171
    $region4: #{forward.5} parent=1 // loop_header_branch
      %18 = sbr.rel (%p16) target = $region8
    $region5: #{forward.5} parent=1 // loop_body
      %s20 = ssub.s32 %s15, 1
      %s21 = ssub.s32 %s15, 2
      %s28 = sadd.s32 1, %s23
      %p29 = scmp.ge.s32.totalorder %s28, 1
      %s30 = scalar_select %p29, 0, %s28
      %s31 = sadd.s32 1, %s22
      %s32 = scalar_select %p29, %s31, %s22
      %p33 = scmp.ge.s32.totalorder %s32, 2
      %s34 = scalar_select %p33, 0, %s32
      %s35 = ssub.s32 %s22, %s34
      %s36 = ssub.s32 %s23, %s30
      %s37 = sor.u32 %s35, %s36
      %p38 = scmp.eq.s32.totalorder %s37, 0
      %s40 = sadd.s32 %s39, 1
      %s41 = scalar_select %p38, %s39, %s40
      %p44 = pneg %p38
      %p45 = scmp.eq.s32.totalorder %s15, 1
      %p46 = por %p44, %p45
      %p47 = scmp.ne.s32.totalorder %s39, %s42
      %p48 = scmp.eq.s32.totalorder %s15, 0
      %p49 = por %p47, %p48
      %p50 = scmp.ne.s32.totalorder %s39, %s42
      %p51 = scmp.eq.s32.totalorder %s20, 1
      %p52 = por %p50, %p51
      %p53 = scmp.ne.s32.totalorder %s42, %s43
      %p54 = scmp.eq.s32.totalorder %s20, 0
      %p55 = por %p53, %p54
      %p56 = scmp.ne.s32.totalorder %s42, %s43
      %p57 = scmp.eq.s32.totalorder %s21, 1
      %p58 = por %p56, %p57
      %p60 = scmp.ne.s32.totalorder %s43, %s59
      %p61 = scmp.eq.s32.totalorder %s21, 0
      %p62 = por %p60, %p61
      %s64 = sadd.s32 %s63, 1
      %p67 = scmp.eq.s32.totalorder %s15, 1
      %p68 = scmp.ne.s32.totalorder %s63, %s65
      %p69 = scmp.eq.s32.totalorder %s15, 0
      %p70 = por %p68, %p69
      %p71 = scmp.ne.s32.totalorder %s63, %s65
      %p72 = scmp.eq.s32.totalorder %s20, 1
      %p73 = por %p71, %p72
      %p74 = scmp.ne.s32.totalorder %s65, %s66
      %p75 = scmp.eq.s32.totalorder %s20, 0
      %p76 = por %p74, %p75
      %p77 = scmp.ne.s32.totalorder %s65, %s66
      %p78 = scmp.eq.s32.totalorder %s21, 1
      %p79 = por %p77, %p78
      %p81 = scmp.ne.s32.totalorder %s66, %s80
      %p82 = scmp.eq.s32.totalorder %s21, 0
      %p83 = por %p81, %p82
      %s85 = sadd.s32 %s84, 1
      %p88 = scmp.eq.s32.totalorder %s15, 1
      %p89 = scmp.ne.s32.totalorder %s84, %s86
      %p90 = scmp.eq.s32.totalorder %s15, 0
      %p91 = por %p89, %p90
      %p92 = scmp.ne.s32.totalorder %s84, %s86
      %p93 = scmp.eq.s32.totalorder %s20, 1
      %p94 = por %p92, %p93
      %p95 = scmp.ne.s32.totalorder %s86, %s87
      %p96 = scmp.eq.s32.totalorder %s20, 0
      %p97 = por %p95, %p96
      %p98 = scmp.ne.s32.totalorder %s86, %s87
      %p99 = scmp.eq.s32.totalorder %s21, 1
      %p100 = por %p98, %p99
      %p102 = scmp.ne.s32.totalorder %s87, %s101
      %p103 = scmp.eq.s32.totalorder %s21, 0
      %p104 = por %p102, %p103
      %s106 = sadd.s32 %s105, 1
      %p109 = scmp.eq.s32.totalorder %s15, 1
      %p110 = scmp.ne.s32.totalorder %s105, %s107
      %p111 = scmp.eq.s32.totalorder %s15, 0
      %p112 = por %p110, %p111
      %p113 = scmp.ne.s32.totalorder %s105, %s107
      %p114 = scmp.eq.s32.totalorder %s20, 1
      %p115 = por %p113, %p114
      %p116 = scmp.ne.s32.totalorder %s107, %s108
      %p117 = scmp.eq.s32.totalorder %s20, 0
      %p118 = por %p116, %p117
      %p119 = scmp.ne.s32.totalorder %s107, %s108
      %p120 = scmp.eq.s32.totalorder %s21, 1
      %p121 = por %p119, %p120
      %p123 = scmp.ne.s32.totalorder %s108, %s122
      %p124 = scmp.eq.s32.totalorder %s21, 0
      %p125 = por %p123, %p124
      %s127 = sadd.s32 %s126, 1
      %p130 = scmp.eq.s32.totalorder %s15, 1
      %p131 = scmp.ne.s32.totalorder %s126, %s128
      %p132 = scmp.eq.s32.totalorder %s15, 0
      %p133 = por %p131, %p132
      %p134 = scmp.ne.s32.totalorder %s126, %s128
      %p135 = scmp.eq.s32.totalorder %s20, 1
      %p136 = por %p134, %p135
      %p137 = scmp.ne.s32.totalorder %s128, %s129
      %p138 = scmp.eq.s32.totalorder %s20, 0
      %p139 = por %p137, %p138
      %p140 = scmp.ne.s32.totalorder %s128, %s129
      %p141 = scmp.eq.s32.totalorder %s21, 1
      %p142 = por %p140, %p141
      %p144 = scmp.ne.s32.totalorder %s129, %s143
      %p145 = scmp.eq.s32.totalorder %s21, 0
      %p146 = por %p144, %p145
      %s148 = sadd.s32 %s147, 1
      %p151 = scmp.eq.s32.totalorder %s15, 1
      %p152 = scmp.ne.s32.totalorder %s147, %s149
      %p153 = scmp.eq.s32.totalorder %s15, 0
      %p154 = por %p152, %p153
      %p155 = scmp.ne.s32.totalorder %s147, %s149
      %p156 = scmp.eq.s32.totalorder %s20, 1
      %p157 = por %p155, %p156
      %p158 = scmp.ne.s32.totalorder %s149, %s150
      %p159 = scmp.eq.s32.totalorder %s20, 0
      %p160 = por %p158, %p159
      %p161 = scmp.ne.s32.totalorder %s149, %s150
      %p162 = scmp.eq.s32.totalorder %s21, 1
      %p163 = por %p161, %p162
      %p165 = scmp.ne.s32.totalorder %s150, %s164
      %p166 = scmp.eq.s32.totalorder %s21, 0
      %p167 = por %p165, %p166
      %s169 = sadd.s32 %s168, 1
      %p172 = scmp.eq.s32.totalorder %s15, 1
      %p173 = scmp.ne.s32.totalorder %s168, %s170
      %p174 = scmp.eq.s32.totalorder %s15, 0
      %p175 = por %p173, %p174
      %p176 = scmp.ne.s32.totalorder %s168, %s170
      %p177 = scmp.eq.s32.totalorder %s20, 1
      %p178 = por %p176, %p177
      %p179 = scmp.ne.s32.totalorder %s170, %s171
      %p180 = scmp.eq.s32.totalorder %s20, 0
      %p181 = por %p179, %p180
      %p182 = scmp.ne.s32.totalorder %s170, %s171
      %p183 = scmp.eq.s32.totalorder %s21, 1
      %p184 = por %p182, %p183
      %p186 = scmp.ne.s32.totalorder %s171, %s185
      %p187 = scmp.eq.s32.totalorder %s21, 0
      %p188 = por %p186, %p187
      %p189 = scmp.le.s32.totalorder 1, %s15
      %p190 = scmp.lt.s32.totalorder %s15, 3
      %p191 = pnand %p189, %p190
      %p192 = pneg %p191
      // Predicated region
      $region9: #{forward.5} parent=5 // pred_check
        _
      $region10: #{forward.5} parent=5 // pred_check_branch
        %194 = sbr.rel (%p191) target = $region12
      $region11: #{forward.5} parent=5 // pred_region
        %s195 = ssub.s32 %s15, 1
        // Predicated region
        $region13: #{forward.5} parent=11 // pred_check
          %p196 = pneg %p76
        $region14: #{forward.5} parent=11 // pred_check_branch
          %198 = sbr.rel (%p196) target = $region16
        $region15: #{forward.5} parent=11 // pred_region
          _
        $region16: #{forward.5} parent=11 // pred_fallthru
          _
        // Predicated region
        $region17: #{forward.5} parent=11 // pred_check
          %p199 = pneg %p97
        $region18: #{forward.5} parent=11 // pred_check_branch
          %201 = sbr.rel (%p199) target = $region20
        $region19: #{forward.5} parent=11 // pred_region
          _
        $region20: #{forward.5} parent=11 // pred_fallthru
          _
        // Predicated region
        $region21: #{forward.5} parent=11 // pred_check
          %p202 = pneg %p118
        $region22: #{forward.5} parent=11 // pred_check_branch
          %204 = sbr.rel (%p202) target = $region24
        $region23: #{forward.5} parent=11 // pred_region
          _
        $region24: #{forward.5} parent=11 // pred_fallthru
          _
        // Predicated region
        $region25: #{forward.5} parent=11 // pred_check
          %p205 = pneg %p139
        $region26: #{forward.5} parent=11 // pred_check_branch
          %207 = sbr.rel (%p205) target = $region28
        $region27: #{forward.5} parent=11 // pred_region
          _
        $region28: #{forward.5} parent=11 // pred_fallthru
          _
      $region12: #{forward.5} parent=5 // pred_fallthru
        _
      %p208 = scmp.lt.s32.totalorder %s15, 2
      // Predicated region
      $region29: #{forward.5} parent=5 // pred_check
        %p209 = pneg %p208
      $region30: #{forward.5} parent=5 // pred_check_branch
        %211 = sbr.rel (%p209) target = $region32
      $region31: #{forward.5} parent=5 // pred_region
        // Predicated region
        $region33: #{forward.5} parent=31 // pred_check
          %p212 = pneg %p49
        $region34: #{forward.5} parent=31 // pred_check_branch
          %214 = sbr.rel (%p212) target = $region36
        $region35: #{forward.5} parent=31 // pred_region
          %s215 = smul.u32 2, %s23
          %p216 = scmp.lt.s32.totalorder %s22, 1
          %s217 = scalar_select %p216, %s22, 1
          %p218 = scmp.lt.s32.totalorder %s215, 1
          %s219 = scalar_select %p218, %s215, 1
          %s220 = smul.addr %s219, 2
          %s221 = smul.addr %s217, 4
          %s222 = sadd.s32 %s220, %s221
          %s223 = smul.addr %s222, 4
          %s224 = scalar_lea.vmem %s0, %s223
          %s225 = smul.u32 2, %s23
        $region36: #{forward.5} parent=31 // pred_fallthru
          _
      $region32: #{forward.5} parent=5 // pred_fallthru
        _
      %p226 = scmp.le.s32.totalorder 1, %s15
      %p227 = scmp.lt.s32.totalorder %s15, 3
      %p228 = pnand %p226, %p227
      %p229 = pneg %p228
      // Predicated region
      $region37: #{forward.5} parent=5 // pred_check
        _
      $region38: #{forward.5} parent=5 // pred_check_branch
        %231 = sbr.rel (%p228) target = $region40
      $region39: #{forward.5} parent=5 // pred_region
        %s232 = ssub.s32 %s15, 1
        %s233 = smul.u32 2, %s25
        %p234 = scmp.lt.s32.totalorder %s24, 1
        %s235 = scalar_select %p234, %s24, 1
        %p236 = scmp.lt.s32.totalorder %s233, 1
        %s237 = scalar_select %p236, %s233, 1
        %s238 = smul.addr %s237, 2
        %s239 = smul.addr %s235, 4
        %s240 = sadd.s32 %s238, %s239
        %s241 = smul.addr %s240, 4
        %s242 = scalar_lea.vmem %s0, %s241
        %p243 = pneg %p55
        %p244 = pneg %p52
        %p245 = pneg %p76
        %p246 = pneg %p73
        %p247 = pneg %p97
        %p248 = pneg %p94
        %p249 = pneg %p118
        %p250 = pneg %p115
        %p251 = pneg %p139
        %p252 = pneg %p136
        %p253 = pneg %p160
        %p254 = pneg %p157
        %p255 = pneg %p181
        %p256 = pneg %p178
        %s257 = smul.u32 2, %s25
        %p258 = scmp.lt.s32.totalorder %s24, 1
        %s259 = scalar_select %p258, %s24, 1
        %p260 = scmp.lt.s32.totalorder %s257, 1
        %s261 = scalar_select %p260, %s257, 1
        %s262 = smul.addr %s261, 2
        %s263 = smul.addr %s259, 4
        %s264 = sadd.s32 %s262, %s263
        %s265 = smul.addr %s264, 4
        %s266 = scalar_lea.vmem %s0, %s265
        %s267 = smul.u32 2, %s25
        %p269 = scmp.eq.s32.totalorder %s25, 0
        // Predicated region
        $region41: #{forward.5} parent=39 // pred_check
          %p270 = pneg %p269
        $region42: #{forward.5} parent=39 // pred_check_branch
          %272 = sbr.rel (%p270) target = $region44
        $region43: #{forward.5} parent=39 // pred_region
          %273 = vst [vmem:[#allocation2] sm:$0xff] 0.0
        $region44: #{forward.5} parent=39 // pred_fallthru
          _
        %v274 = vld [vmem:[%s266] sm:$0xff]
        %v275 = vld [vmem:[%s266 + $0x8] sm:$0xff]
        %v276 = vld [vmem:[%s1] sm:$0xff]
        %v277 = vld [vmem:[%s1 + $0x8] sm:$0xff]
        %v278 = vld [vmem:[%s1 + $0x10] sm:$0xff]
        %v279 = vld [vmem:[%s1 + $0x18] sm:$0xff]
        %v280 = vld [vmem:[%s1 + $0x20] sm:$0xff]
        %v281 = vld [vmem:[%s1 + $0x28] sm:$0xff]
        %v282 = vld [vmem:[%s1 + $0x30] sm:$0xff]
        %v283 = vld [vmem:[%s1 + $0x38] sm:$0xff]
        %v284 = vld [vmem:[%s1 + $0x40] sm:$0xff]
        %v285 = vld [vmem:[%s1 + $0x48] sm:$0xff]
        %v286 = vld [vmem:[%s1 + $0x50] sm:$0xff]
        %v287 = vld [vmem:[%s1 + $0x58] sm:$0xff]
        %v288 = vld [vmem:[%s1 + $0x60] sm:$0xff]
        %v289 = vld [vmem:[%s1 + $0x68] sm:$0xff]
        %v290 = vld [vmem:[%s1 + $0x70] sm:$0xff]
        %v291 = vld [vmem:[%s1 + $0x78] sm:$0xff]
        %v292 = vld [vmem:[%s1 + $0x80] sm:$0xff]
        %v293 = vld [vmem:[%s1 + $0x88] sm:$0xff]
        %v294 = vld [vmem:[%s1 + $0x90] sm:$0xff]
        %v295 = vld [vmem:[%s1 + $0x98] sm:$0xff]
        %v296 = vld [vmem:[%s1 + $0xa0] sm:$0xff]
        %v297 = vld [vmem:[%s1 + $0xa8] sm:$0xff]
        %v298 = vld [vmem:[%s1 + $0xb0] sm:$0xff]
        %v299 = vld [vmem:[%s1 + $0xb8] sm:$0xff]
        %v300 = vld [vmem:[%s1 + $0xc0] sm:$0xff]
        %v301 = vld [vmem:[%s1 + $0xc8] sm:$0xff]
        %v302 = vld [vmem:[%s1 + $0xd0] sm:$0xff]
        %v303 = vld [vmem:[%s1 + $0xd8] sm:$0xff]
        %v304 = vld [vmem:[%s1 + $0xe0] sm:$0xff]
        %v305 = vld [vmem:[%s1 + $0xe8] sm:$0xff]
        %v306 = vld [vmem:[%s1 + $0xf0] sm:$0xff]
        %v307 = vld [vmem:[%s1 + $0xf8] sm:$0xff]
        %v308 = vld [vmem:[%s1 + $0x100] sm:$0xff]
        %v309 = vld [vmem:[%s1 + $0x108] sm:$0xff]
        %v310 = vld [vmem:[%s1 + $0x110] sm:$0xff]
        %v311 = vld [vmem:[%s1 + $0x118] sm:$0xff]
        %v312 = vld [vmem:[%s1 + $0x120] sm:$0xff]
        %v313 = vld [vmem:[%s1 + $0x128] sm:$0xff]
        %v314 = vld [vmem:[%s1 + $0x130] sm:$0xff]
        %v315 = vld [vmem:[%s1 + $0x138] sm:$0xff]
        %v316 = vld [vmem:[%s1 + $0x140] sm:$0xff]
        %v317 = vld [vmem:[%s1 + $0x148] sm:$0xff]
        %v318 = vld [vmem:[%s1 + $0x150] sm:$0xff]
        %v319 = vld [vmem:[%s1 + $0x158] sm:$0xff]
        %v320 = vld [vmem:[%s1 + $0x160] sm:$0xff]
        %v321 = vld [vmem:[%s1 + $0x168] sm:$0xff]
        %v322 = vld [vmem:[%s1 + $0x170] sm:$0xff]
        %v323 = vld [vmem:[%s1 + $0x178] sm:$0xff]
        %v324 = vld [vmem:[%s1 + $0x180] sm:$0xff]
        %v325 = vld [vmem:[%s1 + $0x188] sm:$0xff]
        %v326 = vld [vmem:[%s1 + $0x190] sm:$0xff]
        %v327 = vld [vmem:[%s1 + $0x198] sm:$0xff]
        %v328 = vld [vmem:[%s1 + $0x1a0] sm:$0xff]
        %v329 = vld [vmem:[%s1 + $0x1a8] sm:$0xff]
        %v330 = vld [vmem:[%s1 + $0x1b0] sm:$0xff]
        %v331 = vld [vmem:[%s1 + $0x1b8] sm:$0xff]
        %v332 = vld [vmem:[%s1 + $0x1c0] sm:$0xff]
        %v333 = vld [vmem:[%s1 + $0x1c8] sm:$0xff]
        %v334 = vld [vmem:[%s1 + $0x1d0] sm:$0xff]
        %v335 = vld [vmem:[%s1 + $0x1d8] sm:$0xff]
        %v336 = vld [vmem:[%s1 + $0x1e0] sm:$0xff]
        %v337 = vld [vmem:[%s1 + $0x1e8] sm:$0xff]
        %v338 = vld [vmem:[%s1 + $0x1f0] sm:$0xff]
        %v339 = vld [vmem:[%s1 + $0x1f8] sm:$0xff]
        %v340 = vld [vmem:[%s1 + $0x200] sm:$0xff]
        %v341 = vld [vmem:[%s1 + $0x208] sm:$0xff]
        %v342 = vld [vmem:[%s1 + $0x210] sm:$0xff]
        %v343 = vld [vmem:[%s1 + $0x218] sm:$0xff]
        %v344 = vld [vmem:[%s1 + $0x220] sm:$0xff]
        %v345 = vld [vmem:[%s1 + $0x228] sm:$0xff]
        %v346 = vld [vmem:[%s1 + $0x230] sm:$0xff]
        %v347 = vld [vmem:[%s1 + $0x238] sm:$0xff]
        %v348 = vld [vmem:[%s1 + $0x240] sm:$0xff]
        %v349 = vld [vmem:[%s1 + $0x248] sm:$0xff]
        %v350 = vld [vmem:[%s1 + $0x250] sm:$0xff]
        %v351 = vld [vmem:[%s1 + $0x258] sm:$0xff]
        %v352 = vld [vmem:[%s1 + $0x260] sm:$0xff]
        %v353 = vld [vmem:[%s1 + $0x268] sm:$0xff]
        %v354 = vld [vmem:[%s1 + $0x270] sm:$0xff]
        %v355 = vld [vmem:[%s1 + $0x278] sm:$0xff]
        %v356 = vld [vmem:[%s1 + $0x280] sm:$0xff]
        %v357 = vld [vmem:[%s1 + $0x288] sm:$0xff]
        %v358 = vld [vmem:[%s1 + $0x290] sm:$0xff]
        %v359 = vld [vmem:[%s1 + $0x298] sm:$0xff]
        %v360 = vld [vmem:[%s1 + $0x2a0] sm:$0xff]
        %v361 = vld [vmem:[%s1 + $0x2a8] sm:$0xff]
        %v362 = vld [vmem:[%s1 + $0x2b0] sm:$0xff]
        %v363 = vld [vmem:[%s1 + $0x2b8] sm:$0xff]
        %v364 = vld [vmem:[%s1 + $0x2c0] sm:$0xff]
        %v365 = vld [vmem:[%s1 + $0x2c8] sm:$0xff]
        %v366 = vld [vmem:[%s1 + $0x2d0] sm:$0xff]
        %v367 = vld [vmem:[%s1 + $0x2d8] sm:$0xff]
        %v368 = vld [vmem:[%s1 + $0x2e0] sm:$0xff]
        %v369 = vld [vmem:[%s1 + $0x2e8] sm:$0xff]
        %v370 = vld [vmem:[%s1 + $0x2f0] sm:$0xff]
        %v371 = vld [vmem:[%s1 + $0x2f8] sm:$0xff]
        %v372 = vld [vmem:[%s1 + $0x300] sm:$0xff]
        %v373 = vld [vmem:[%s1 + $0x308] sm:$0xff]
        %v374 = vld [vmem:[%s1 + $0x310] sm:$0xff]
        %v375 = vld [vmem:[%s1 + $0x318] sm:$0xff]
        %v376 = vld [vmem:[%s1 + $0x320] sm:$0xff]
        %v377 = vld [vmem:[%s1 + $0x328] sm:$0xff]
        %v378 = vld [vmem:[%s1 + $0x330] sm:$0xff]
        %v379 = vld [vmem:[%s1 + $0x338] sm:$0xff]
        %v380 = vld [vmem:[%s1 + $0x340] sm:$0xff]
        %v381 = vld [vmem:[%s1 + $0x348] sm:$0xff]
        %v382 = vld [vmem:[%s1 + $0x350] sm:$0xff]
        %v383 = vld [vmem:[%s1 + $0x358] sm:$0xff]
        %v384 = vld [vmem:[%s1 + $0x360] sm:$0xff]
        %v385 = vld [vmem:[%s1 + $0x368] sm:$0xff]
        %v386 = vld [vmem:[%s1 + $0x370] sm:$0xff]
        %v387 = vld [vmem:[%s1 + $0x378] sm:$0xff]
        %v388 = vld [vmem:[%s1 + $0x380] sm:$0xff]
        %v389 = vld [vmem:[%s1 + $0x388] sm:$0xff]
        %v390 = vld [vmem:[%s1 + $0x390] sm:$0xff]
        %v391 = vld [vmem:[%s1 + $0x398] sm:$0xff]
        %v392 = vld [vmem:[%s1 + $0x3a0] sm:$0xff]
        %v393 = vld [vmem:[%s1 + $0x3a8] sm:$0xff]
        %v394 = vld [vmem:[%s1 + $0x3b0] sm:$0xff]
        %v395 = vld [vmem:[%s1 + $0x3b8] sm:$0xff]
        %v396 = vld [vmem:[%s1 + $0x3c0] sm:$0xff]
        %v397 = vld [vmem:[%s1 + $0x3c8] sm:$0xff]
        %v398 = vld [vmem:[%s1 + $0x3d0] sm:$0xff]
        %v399 = vld [vmem:[%s1 + $0x3d8] sm:$0xff]
        %v400 = vld [vmem:[%s1 + $0x3e0] sm:$0xff]
        %v401 = vld [vmem:[%s1 + $0x3e8] sm:$0xff]
        %v402 = vld [vmem:[%s1 + $0x3f0] sm:$0xff]
        %v403 = vld [vmem:[%s1 + $0x3f8] sm:$0xff]
        %v404 = vld [vmem:[%s2] sm:$0xff]
        %v406 = vlaneseq
        %v407 = vshrl.u32 %v406, 7
        %v408 = vsub.s32 0, %v407
        %v409 = vrot.slane %v404, %v408
        %v410 = vlaneseq
        %v411 = vshrl.u32 %v410, 7
        %v412 = vsub.s32 1, %v411
        %v413 = vrot.slane %v404, %v412
        %v414 = vlaneseq
        %v415 = vshrl.u32 %v414, 7
        %v416 = vsub.s32 2, %v415
        %v417 = vrot.slane %v404, %v416
        %v418 = vlaneseq
        %v419 = vshrl.u32 %v418, 7
        %v420 = vsub.s32 3, %v419
        %v421 = vrot.slane %v404, %v420
        %v422 = vlaneseq
        %v423 = vshrl.u32 %v422, 7
        %v424 = vsub.s32 4, %v423
        %v425 = vrot.slane %v404, %v424
        %v426 = vlaneseq
        %v427 = vshrl.u32 %v426, 7
        %v428 = vsub.s32 5, %v427
        %v429 = vrot.slane %v404, %v428
        %v430 = vlaneseq
        %v431 = vshrl.u32 %v430, 7
        %v432 = vsub.s32 6, %v431
        %v433 = vrot.slane %v404, %v432
        %v434 = vlaneseq
        %v435 = vshrl.u32 %v434, 7
        %v436 = vsub.s32 7, %v435
        %v437 = vrot.slane %v404, %v436
        %v448 = vunpack.c.l.b16 %v274
        %v449 = vunpack.c.h.b16 %v274
        %v450 = vunpack.c.l.b16 %v275
        %v451 = vunpack.c.h.b16 %v275
        %v452 = vpack.c.b16 %v450, %v448
        %v453 = vpack.c.b16 %v451, %v449
        %v584 = vunpack.c.l.b16 %v276
        %v585 = vunpack.c.h.b16 %v276
        %v586 = vunpack.c.l.b16 %v277
        %v587 = vunpack.c.h.b16 %v277
        %v588 = vunpack.c.l.b16 %v278
        %v589 = vunpack.c.h.b16 %v278
        %v590 = vunpack.c.l.b16 %v279
        %v591 = vunpack.c.h.b16 %v279
        %v592 = vunpack.c.l.b16 %v280
        %v593 = vunpack.c.h.b16 %v280
        %v594 = vunpack.c.l.b16 %v281
        %v595 = vunpack.c.h.b16 %v281
        %v596 = vunpack.c.l.b16 %v282
        %v597 = vunpack.c.h.b16 %v282
        %v598 = vunpack.c.l.b16 %v283
        %v599 = vunpack.c.h.b16 %v283
        %v600 = vunpack.c.l.b16 %v284
        %v601 = vunpack.c.h.b16 %v284
        %v602 = vunpack.c.l.b16 %v285
        %v603 = vunpack.c.h.b16 %v285
        %v604 = vunpack.c.l.b16 %v286
        %v605 = vunpack.c.h.b16 %v286
        %v606 = vunpack.c.l.b16 %v287
        %v607 = vunpack.c.h.b16 %v287
        %v608 = vunpack.c.l.b16 %v288
        %v609 = vunpack.c.h.b16 %v288
        %v610 = vunpack.c.l.b16 %v289
        %v611 = vunpack.c.h.b16 %v289
        %v612 = vunpack.c.l.b16 %v290
        %v613 = vunpack.c.h.b16 %v290
        %v614 = vunpack.c.l.b16 %v291
        %v615 = vunpack.c.h.b16 %v291
        %v616 = vunpack.c.l.b16 %v292
        %v617 = vunpack.c.h.b16 %v292
        %v618 = vunpack.c.l.b16 %v293
        %v619 = vunpack.c.h.b16 %v293
        %v620 = vunpack.c.l.b16 %v294
        %v621 = vunpack.c.h.b16 %v294
        %v622 = vunpack.c.l.b16 %v295
        %v623 = vunpack.c.h.b16 %v295
        %v624 = vunpack.c.l.b16 %v296
        %v625 = vunpack.c.h.b16 %v296
        %v626 = vunpack.c.l.b16 %v297
        %v627 = vunpack.c.h.b16 %v297
        %v628 = vunpack.c.l.b16 %v298
        %v629 = vunpack.c.h.b16 %v298
        %v630 = vunpack.c.l.b16 %v299
        %v631 = vunpack.c.h.b16 %v299
        %v632 = vunpack.c.l.b16 %v300
        %v633 = vunpack.c.h.b16 %v300
        %v634 = vunpack.c.l.b16 %v301
        %v635 = vunpack.c.h.b16 %v301
        %v636 = vunpack.c.l.b16 %v302
        %v637 = vunpack.c.h.b16 %v302
        %v638 = vunpack.c.l.b16 %v303
        %v639 = vunpack.c.h.b16 %v303
        %v640 = vunpack.c.l.b16 %v304
        %v641 = vunpack.c.h.b16 %v304
        %v642 = vunpack.c.l.b16 %v305
        %v643 = vunpack.c.h.b16 %v305
        %v644 = vunpack.c.l.b16 %v306
        %v645 = vunpack.c.h.b16 %v306
        %v646 = vunpack.c.l.b16 %v307
        %v647 = vunpack.c.h.b16 %v307
        %v648 = vunpack.c.l.b16 %v308
        %v649 = vunpack.c.h.b16 %v308
        %v650 = vunpack.c.l.b16 %v309
        %v651 = vunpack.c.h.b16 %v309
        %v652 = vunpack.c.l.b16 %v310
        %v653 = vunpack.c.h.b16 %v310
        %v654 = vunpack.c.l.b16 %v311
        %v655 = vunpack.c.h.b16 %v311
        %v656 = vunpack.c.l.b16 %v312
        %v657 = vunpack.c.h.b16 %v312
        %v658 = vunpack.c.l.b16 %v313
        %v659 = vunpack.c.h.b16 %v313
        %v660 = vunpack.c.l.b16 %v314
        %v661 = vunpack.c.h.b16 %v314
        %v662 = vunpack.c.l.b16 %v315
        %v663 = vunpack.c.h.b16 %v315
        %v664 = vunpack.c.l.b16 %v316
        %v665 = vunpack.c.h.b16 %v316
        %v666 = vunpack.c.l.b16 %v317
        %v667 = vunpack.c.h.b16 %v317
        %v668 = vunpack.c.l.b16 %v318
        %v669 = vunpack.c.h.b16 %v318
        %v670 = vunpack.c.l.b16 %v319
        %v671 = vunpack.c.h.b16 %v319
        %v672 = vunpack.c.l.b16 %v320
        %v673 = vunpack.c.h.b16 %v320
        %v674 = vunpack.c.l.b16 %v321
        %v675 = vunpack.c.h.b16 %v321
        %v676 = vunpack.c.l.b16 %v322
        %v677 = vunpack.c.h.b16 %v322
        %v678 = vunpack.c.l.b16 %v323
        %v679 = vunpack.c.h.b16 %v323
        %v680 = vunpack.c.l.b16 %v324
        %v681 = vunpack.c.h.b16 %v324
        %v682 = vunpack.c.l.b16 %v325
        %v683 = vunpack.c.h.b16 %v325
        %v684 = vunpack.c.l.b16 %v326
        %v685 = vunpack.c.h.b16 %v326
        %v686 = vunpack.c.l.b16 %v327
        %v687 = vunpack.c.h.b16 %v327
        %v688 = vunpack.c.l.b16 %v328
        %v689 = vunpack.c.h.b16 %v328
        %v690 = vunpack.c.l.b16 %v329
        %v691 = vunpack.c.h.b16 %v329
        %v692 = vunpack.c.l.b16 %v330
        %v693 = vunpack.c.h.b16 %v330
        %v694 = vunpack.c.l.b16 %v331
        %v695 = vunpack.c.h.b16 %v331
        %v696 = vunpack.c.l.b16 %v332
        %v697 = vunpack.c.h.b16 %v332
        %v698 = vunpack.c.l.b16 %v333
        %v699 = vunpack.c.h.b16 %v333
        %v700 = vunpack.c.l.b16 %v334
        %v701 = vunpack.c.h.b16 %v334
        %v702 = vunpack.c.l.b16 %v335
        %v703 = vunpack.c.h.b16 %v335
        %v704 = vunpack.c.l.b16 %v336
        %v705 = vunpack.c.h.b16 %v336
        %v706 = vunpack.c.l.b16 %v337
        %v707 = vunpack.c.h.b16 %v337
        %v708 = vunpack.c.l.b16 %v338
        %v709 = vunpack.c.h.b16 %v338
        %v710 = vunpack.c.l.b16 %v339
        %v711 = vunpack.c.h.b16 %v339
        %v712 = vunpack.c.l.b16 %v340
        %v713 = vunpack.c.h.b16 %v340
        %v714 = vunpack.c.l.b16 %v341
        %v715 = vunpack.c.h.b16 %v341
        %v716 = vunpack.c.l.b16 %v342
        %v717 = vunpack.c.h.b16 %v342
        %v718 = vunpack.c.l.b16 %v343
        %v719 = vunpack.c.h.b16 %v343
        %v720 = vunpack.c.l.b16 %v344
        %v721 = vunpack.c.h.b16 %v344
        %v722 = vunpack.c.l.b16 %v345
        %v723 = vunpack.c.h.b16 %v345
        %v724 = vunpack.c.l.b16 %v346
        %v725 = vunpack.c.h.b16 %v346
        %v726 = vunpack.c.l.b16 %v347
        %v727 = vunpack.c.h.b16 %v347
        %v728 = vunpack.c.l.b16 %v348
        %v729 = vunpack.c.h.b16 %v348
        %v730 = vunpack.c.l.b16 %v349
        %v731 = vunpack.c.h.b16 %v349
        %v732 = vunpack.c.l.b16 %v350
        %v733 = vunpack.c.h.b16 %v350
        %v734 = vunpack.c.l.b16 %v351
        %v735 = vunpack.c.h.b16 %v351
        %v736 = vunpack.c.l.b16 %v352
        %v737 = vunpack.c.h.b16 %v352
        %v738 = vunpack.c.l.b16 %v353
        %v739 = vunpack.c.h.b16 %v353
        %v740 = vunpack.c.l.b16 %v354
        %v741 = vunpack.c.h.b16 %v354
        %v742 = vunpack.c.l.b16 %v355
        %v743 = vunpack.c.h.b16 %v355
        %v744 = vunpack.c.l.b16 %v356
        %v745 = vunpack.c.h.b16 %v356
        %v746 = vunpack.c.l.b16 %v357
        %v747 = vunpack.c.h.b16 %v357
        %v748 = vunpack.c.l.b16 %v358
        %v749 = vunpack.c.h.b16 %v358
        %v750 = vunpack.c.l.b16 %v359
        %v751 = vunpack.c.h.b16 %v359
        %v752 = vunpack.c.l.b16 %v360
        %v753 = vunpack.c.h.b16 %v360
        %v754 = vunpack.c.l.b16 %v361
        %v755 = vunpack.c.h.b16 %v361
        %v756 = vunpack.c.l.b16 %v362
        %v757 = vunpack.c.h.b16 %v362
        %v758 = vunpack.c.l.b16 %v363
        %v759 = vunpack.c.h.b16 %v363
        %v760 = vunpack.c.l.b16 %v364
        %v761 = vunpack.c.h.b16 %v364
        %v762 = vunpack.c.l.b16 %v365
        %v763 = vunpack.c.h.b16 %v365
        %v764 = vunpack.c.l.b16 %v366
        %v765 = vunpack.c.h.b16 %v366
        %v766 = vunpack.c.l.b16 %v367
        %v767 = vunpack.c.h.b16 %v367
        %v768 = vunpack.c.l.b16 %v368
        %v769 = vunpack.c.h.b16 %v368
        %v770 = vunpack.c.l.b16 %v369
        %v771 = vunpack.c.h.b16 %v369
        %v772 = vunpack.c.l.b16 %v370
        %v773 = vunpack.c.h.b16 %v370
        %v774 = vunpack.c.l.b16 %v371
        %v775 = vunpack.c.h.b16 %v371
        %v776 = vunpack.c.l.b16 %v372
        %v777 = vunpack.c.h.b16 %v372
        %v778 = vunpack.c.l.b16 %v373
        %v779 = vunpack.c.h.b16 %v373
        %v780 = vunpack.c.l.b16 %v374
        %v781 = vunpack.c.h.b16 %v374
        %v782 = vunpack.c.l.b16 %v375
        %v783 = vunpack.c.h.b16 %v375
        %v784 = vunpack.c.l.b16 %v376
        %v785 = vunpack.c.h.b16 %v376
        %v786 = vunpack.c.l.b16 %v377
        %v787 = vunpack.c.h.b16 %v377
        %v788 = vunpack.c.l.b16 %v378
        %v789 = vunpack.c.h.b16 %v378
        %v790 = vunpack.c.l.b16 %v379
        %v791 = vunpack.c.h.b16 %v379
        %v792 = vunpack.c.l.b16 %v380
        %v793 = vunpack.c.h.b16 %v380
        %v794 = vunpack.c.l.b16 %v381
        %v795 = vunpack.c.h.b16 %v381
        %v796 = vunpack.c.l.b16 %v382
        %v797 = vunpack.c.h.b16 %v382
        %v798 = vunpack.c.l.b16 %v383
        %v799 = vunpack.c.h.b16 %v383
        %v800 = vunpack.c.l.b16 %v384
        %v801 = vunpack.c.h.b16 %v384
        %v802 = vunpack.c.l.b16 %v385
        %v803 = vunpack.c.h.b16 %v385
        %v804 = vunpack.c.l.b16 %v386
        %v805 = vunpack.c.h.b16 %v386
        %v806 = vunpack.c.l.b16 %v387
        %v807 = vunpack.c.h.b16 %v387
        %v808 = vunpack.c.l.b16 %v388
        %v809 = vunpack.c.h.b16 %v388
        %v810 = vunpack.c.l.b16 %v389
        %v811 = vunpack.c.h.b16 %v389
        %v812 = vunpack.c.l.b16 %v390
        %v813 = vunpack.c.h.b16 %v390
        %v814 = vunpack.c.l.b16 %v391
        %v815 = vunpack.c.h.b16 %v391
        %v816 = vunpack.c.l.b16 %v392
        %v817 = vunpack.c.h.b16 %v392
        %v818 = vunpack.c.l.b16 %v393
        %v819 = vunpack.c.h.b16 %v393
        %v820 = vunpack.c.l.b16 %v394
        %v821 = vunpack.c.h.b16 %v394
        %v822 = vunpack.c.l.b16 %v395
        %v823 = vunpack.c.h.b16 %v395
        %v824 = vunpack.c.l.b16 %v396
        %v825 = vunpack.c.h.b16 %v396
        %v826 = vunpack.c.l.b16 %v397
        %v827 = vunpack.c.h.b16 %v397
        %v828 = vunpack.c.l.b16 %v398
        %v829 = vunpack.c.h.b16 %v398
        %v830 = vunpack.c.l.b16 %v399
        %v831 = vunpack.c.h.b16 %v399
        %v832 = vunpack.c.l.b16 %v400
        %v833 = vunpack.c.h.b16 %v400
        %v834 = vunpack.c.l.b16 %v401
        %v835 = vunpack.c.h.b16 %v401
        %v836 = vunpack.c.l.b16 %v402
        %v837 = vunpack.c.h.b16 %v402
        %v838 = vunpack.c.l.b16 %v403
        %v839 = vunpack.c.h.b16 %v403
        %v840 = vpack.c.b16 %v592, %v584
        %v841 = vpack.c.b16 %v593, %v585
        %v842 = vpack.c.b16 %v594, %v586
        %v843 = vpack.c.b16 %v595, %v587
        %v844 = vpack.c.b16 %v596, %v588
        %v845 = vpack.c.b16 %v597, %v589
        %v846 = vpack.c.b16 %v598, %v590
        %v847 = vpack.c.b16 %v599, %v591
        %v848 = vpack.c.b16 %v608, %v600
        %v849 = vpack.c.b16 %v609, %v601
        %v850 = vpack.c.b16 %v610, %v602
        %v851 = vpack.c.b16 %v611, %v603
        %v852 = vpack.c.b16 %v612, %v604
        %v853 = vpack.c.b16 %v613, %v605
        %v854 = vpack.c.b16 %v614, %v606
        %v855 = vpack.c.b16 %v615, %v607
        %v856 = vpack.c.b16 %v624, %v616
        %v857 = vpack.c.b16 %v625, %v617
        %v858 = vpack.c.b16 %v626, %v618
        %v859 = vpack.c.b16 %v627, %v619
        %v860 = vpack.c.b16 %v628, %v620
        %v861 = vpack.c.b16 %v629, %v621
        %v862 = vpack.c.b16 %v630, %v622
        %v863 = vpack.c.b16 %v631, %v623
        %v864 = vpack.c.b16 %v640, %v632
        %v865 = vpack.c.b16 %v641, %v633
        %v866 = vpack.c.b16 %v642, %v634
        %v867 = vpack.c.b16 %v643, %v635
        %v868 = vpack.c.b16 %v644, %v636
        %v869 = vpack.c.b16 %v645, %v637
        %v870 = vpack.c.b16 %v646, %v638
        %v871 = vpack.c.b16 %v647, %v639
        %v872 = vpack.c.b16 %v656, %v648
        %v873 = vpack.c.b16 %v657, %v649
        %v874 = vpack.c.b16 %v658, %v650
        %v875 = vpack.c.b16 %v659, %v651
        %v876 = vpack.c.b16 %v660, %v652
        %v877 = vpack.c.b16 %v661, %v653
        %v878 = vpack.c.b16 %v662, %v654
        %v879 = vpack.c.b16 %v663, %v655
        %v880 = vpack.c.b16 %v672, %v664
        %v881 = vpack.c.b16 %v673, %v665
        %v882 = vpack.c.b16 %v674, %v666
        %v883 = vpack.c.b16 %v675, %v667
        %v884 = vpack.c.b16 %v676, %v668
        %v885 = vpack.c.b16 %v677, %v669
        %v886 = vpack.c.b16 %v678, %v670
        %v887 = vpack.c.b16 %v679, %v671
        %v888 = vpack.c.b16 %v688, %v680
        %v889 = vpack.c.b16 %v689, %v681
        %v890 = vpack.c.b16 %v690, %v682
        %v891 = vpack.c.b16 %v691, %v683
        %v892 = vpack.c.b16 %v692, %v684
        %v893 = vpack.c.b16 %v693, %v685
        %v894 = vpack.c.b16 %v694, %v686
        %v895 = vpack.c.b16 %v695, %v687
        %v896 = vpack.c.b16 %v704, %v696
        %v897 = vpack.c.b16 %v705, %v697
        %v898 = vpack.c.b16 %v706, %v698
        %v899 = vpack.c.b16 %v707, %v699
        %v900 = vpack.c.b16 %v708, %v700
        %v901 = vpack.c.b16 %v709, %v701
        %v902 = vpack.c.b16 %v710, %v702
        %v903 = vpack.c.b16 %v711, %v703
        %v904 = vpack.c.b16 %v720, %v712
        %v905 = vpack.c.b16 %v721, %v713
        %v906 = vpack.c.b16 %v722, %v714
        %v907 = vpack.c.b16 %v723, %v715
        %v908 = vpack.c.b16 %v724, %v716
        %v909 = vpack.c.b16 %v725, %v717
        %v910 = vpack.c.b16 %v726, %v718
        %v911 = vpack.c.b16 %v727, %v719
        %v912 = vpack.c.b16 %v736, %v728
        %v913 = vpack.c.b16 %v737, %v729
        %v914 = vpack.c.b16 %v738, %v730
        %v915 = vpack.c.b16 %v739, %v731
        %v916 = vpack.c.b16 %v740, %v732
        %v917 = vpack.c.b16 %v741, %v733
        %v918 = vpack.c.b16 %v742, %v734
        %v919 = vpack.c.b16 %v743, %v735
        %v920 = vpack.c.b16 %v752, %v744
        %v921 = vpack.c.b16 %v753, %v745
        %v922 = vpack.c.b16 %v754, %v746
        %v923 = vpack.c.b16 %v755, %v747
        %v924 = vpack.c.b16 %v756, %v748
        %v925 = vpack.c.b16 %v757, %v749
        %v926 = vpack.c.b16 %v758, %v750
        %v927 = vpack.c.b16 %v759, %v751
        %v928 = vpack.c.b16 %v768, %v760
        %v929 = vpack.c.b16 %v769, %v761
        %v930 = vpack.c.b16 %v770, %v762
        %v931 = vpack.c.b16 %v771, %v763
        %v932 = vpack.c.b16 %v772, %v764
        %v933 = vpack.c.b16 %v773, %v765
        %v934 = vpack.c.b16 %v774, %v766
        %v935 = vpack.c.b16 %v775, %v767
        %v936 = vpack.c.b16 %v784, %v776
        %v937 = vpack.c.b16 %v785, %v777
        %v938 = vpack.c.b16 %v786, %v778
        %v939 = vpack.c.b16 %v787, %v779
        %v940 = vpack.c.b16 %v788, %v780
        %v941 = vpack.c.b16 %v789, %v781
        %v942 = vpack.c.b16 %v790, %v782
        %v943 = vpack.c.b16 %v791, %v783
        %v944 = vpack.c.b16 %v800, %v792
        %v945 = vpack.c.b16 %v801, %v793
        %v946 = vpack.c.b16 %v802, %v794
        %v947 = vpack.c.b16 %v803, %v795
        %v948 = vpack.c.b16 %v804, %v796
        %v949 = vpack.c.b16 %v805, %v797
        %v950 = vpack.c.b16 %v806, %v798
        %v951 = vpack.c.b16 %v807, %v799
        %v952 = vpack.c.b16 %v816, %v808
        %v953 = vpack.c.b16 %v817, %v809
        %v954 = vpack.c.b16 %v818, %v810
        %v955 = vpack.c.b16 %v819, %v811
        %v956 = vpack.c.b16 %v820, %v812
        %v957 = vpack.c.b16 %v821, %v813
        %v958 = vpack.c.b16 %v822, %v814
        %v959 = vpack.c.b16 %v823, %v815
        %v960 = vpack.c.b16 %v832, %v824
        %v961 = vpack.c.b16 %v833, %v825
        %v962 = vpack.c.b16 %v834, %v826
        %v963 = vpack.c.b16 %v835, %v827
        %v964 = vpack.c.b16 %v836, %v828
        %v965 = vpack.c.b16 %v837, %v829
        %v966 = vpack.c.b16 %v838, %v830
        %v967 = vpack.c.b16 %v839, %v831
        %1096 = vmatprep.subr.bf16.mxu0 %v841
        %1097 = vmatpush1.bf16.msra.mxu0 %v840
        %1098 = vmatprep.subr.bf16.mxu0 %v849
        %1099 = vmatpush1.bf16.msra.mxu0 %v848
        %1100 = vmatprep.subr.bf16.mxu0 %v857
        %1101 = vmatpush1.bf16.msra.mxu0 %v856
        %1102 = vmatprep.subr.bf16.mxu0 %v865
        %1103 = vmatpush1.bf16.msra.mxu0 %v864
        %1104 = vmatprep.subr.bf16.mxu0 %v873
        %1105 = vmatpush1.bf16.msra.mxu0 %v872
        %1106 = vmatprep.subr.bf16.mxu0 %v881
        %1107 = vmatpush1.bf16.msra.mxu0 %v880
        %1108 = vmatprep.subr.bf16.mxu0 %v889
        %1109 = vmatpush1.bf16.msra.mxu0 %v888
        %1110 = vmatprep.subr.bf16.mxu0 %v897
        %1111 = vmatpush1.bf16.msra.mxu0 %v896
        %1112 = vmatprep.subr.bf16.mxu0 %v905
        %1113 = vmatpush1.bf16.msra.mxu0 %v904
        %1114 = vmatprep.subr.bf16.mxu0 %v913
        %1115 = vmatpush1.bf16.msra.mxu0 %v912
        %1116 = vmatprep.subr.bf16.mxu0 %v921
        %1117 = vmatpush1.bf16.msra.mxu0 %v920
        %1118 = vmatprep.subr.bf16.mxu0 %v929
        %1119 = vmatpush1.bf16.msra.mxu0 %v928
        %1120 = vmatprep.subr.bf16.mxu0 %v937
        %1121 = vmatpush1.bf16.msra.mxu0 %v936
        %1122 = vmatprep.subr.bf16.mxu0 %v945
        %1123 = vmatpush1.bf16.msra.mxu0 %v944
        %1124 = vmatprep.subr.bf16.mxu0 %v953
        %1125 = vmatpush1.bf16.msra.mxu0 %v952
        %1126 = vmatprep.subr.bf16.mxu0 %v961
        %1127 = vmatpush1.bf16.msra.mxu0 %v960
        %1128 = vmatprep.mubr.bf16.mxu0 %v453
        %1129 = vmatmul.mubr.bf16.gmra.mrb[0].mxu0 %v452
        %v1130 = vpop.f32.mrb[0].mxu0
        %v1131 = vadd.f32 %v409, %v1130
        %v1132 = vpop.f32.mrb[0].mxu0
        %v1133 = vadd.f32 %v413, %v1132
        %v1134 = vpop.f32.mrb[0].mxu0
        %v1135 = vadd.f32 %v409, %v1134
        %v1136 = vpop.f32.mrb[0].mxu0
        %v1137 = vadd.f32 %v413, %v1136
        %1138 = vdwg.mxu0
        %1139 = vmatprep.subr.bf16.mxu0 %v843
        %1140 = vmatpush1.bf16.msra.mxu0 %v842
        %1141 = vmatprep.subr.bf16.mxu0 %v851
        %1142 = vmatpush1.bf16.msra.mxu0 %v850
        %1143 = vmatprep.subr.bf16.mxu0 %v859
        %1144 = vmatpush1.bf16.msra.mxu0 %v858
        %1145 = vmatprep.subr.bf16.mxu0 %v867
        %1146 = vmatpush1.bf16.msra.mxu0 %v866
        %1147 = vmatprep.subr.bf16.mxu0 %v875
        %1148 = vmatpush1.bf16.msra.mxu0 %v874
        %1149 = vmatprep.subr.bf16.mxu0 %v883
        %1150 = vmatpush1.bf16.msra.mxu0 %v882
        %1151 = vmatprep.subr.bf16.mxu0 %v891
        %1152 = vmatpush1.bf16.msra.mxu0 %v890
        %1153 = vmatprep.subr.bf16.mxu0 %v899
        %1154 = vmatpush1.bf16.msra.mxu0 %v898
        %1155 = vmatprep.subr.bf16.mxu0 %v907
        %1156 = vmatpush1.bf16.msra.mxu0 %v906
        %1157 = vmatprep.subr.bf16.mxu0 %v915
        %1158 = vmatpush1.bf16.msra.mxu0 %v914
        %1159 = vmatprep.subr.bf16.mxu0 %v923
        %1160 = vmatpush1.bf16.msra.mxu0 %v922
        %1161 = vmatprep.subr.bf16.mxu0 %v931
        %1162 = vmatpush1.bf16.msra.mxu0 %v930
        %1163 = vmatprep.subr.bf16.mxu0 %v939
        %1164 = vmatpush1.bf16.msra.mxu0 %v938
        %1165 = vmatprep.subr.bf16.mxu0 %v947
        %1166 = vmatpush1.bf16.msra.mxu0 %v946
        %1167 = vmatprep.subr.bf16.mxu0 %v955
        %1168 = vmatpush1.bf16.msra.mxu0 %v954
        %1169 = vmatprep.subr.bf16.mxu0 %v963
        %1170 = vmatpush1.bf16.msra.mxu0 %v962
        %1171 = vmatprep.mubr.bf16.mxu0 %v453
        %1172 = vmatmul.mubr.bf16.gmra.mrb[0].mxu0 %v452
        %v1173 = vpop.f32.mrb[0].mxu0
        %v1174 = vadd.f32 %v417, %v1173
        %v1175 = vpop.f32.mrb[0].mxu0
        %v1176 = vadd.f32 %v421, %v1175
        %v1177 = vpop.f32.mrb[0].mxu0
        %v1178 = vadd.f32 %v417, %v1177
        %v1179 = vpop.f32.mrb[0].mxu0
        %v1180 = vadd.f32 %v421, %v1179
        %1181 = vdwg.mxu0
        %1182 = vmatprep.subr.bf16.mxu0 %v845
        %1183 = vmatpush1.bf16.msra.mxu0 %v844
        %1184 = vmatprep.subr.bf16.mxu0 %v853
        %1185 = vmatpush1.bf16.msra.mxu0 %v852
        %1186 = vmatprep.subr.bf16.mxu0 %v861
        %1187 = vmatpush1.bf16.msra.mxu0 %v860
        %1188 = vmatprep.subr.bf16.mxu0 %v869
        %1189 = vmatpush1.bf16.msra.mxu0 %v868
        %1190 = vmatprep.subr.bf16.mxu0 %v877
        %1191 = vmatpush1.bf16.msra.mxu0 %v876
        %1192 = vmatprep.subr.bf16.mxu0 %v885
        %1193 = vmatpush1.bf16.msra.mxu0 %v884
        %1194 = vmatprep.subr.bf16.mxu0 %v893
        %1195 = vmatpush1.bf16.msra.mxu0 %v892
        %1196 = vmatprep.subr.bf16.mxu0 %v901
        %1197 = vmatpush1.bf16.msra.mxu0 %v900
        %1198 = vmatprep.subr.bf16.mxu0 %v909
        %1199 = vmatpush1.bf16.msra.mxu0 %v908
        %1200 = vmatprep.subr.bf16.mxu0 %v917
        %1201 = vmatpush1.bf16.msra.mxu0 %v916
        %1202 = vmatprep.subr.bf16.mxu0 %v925
        %1203 = vmatpush1.bf16.msra.mxu0 %v924
        %1204 = vmatprep.subr.bf16.mxu0 %v933
        %1205 = vmatpush1.bf16.msra.mxu0 %v932
        %1206 = vmatprep.subr.bf16.mxu0 %v941
        %1207 = vmatpush1.bf16.msra.mxu0 %v940
        %1208 = vmatprep.subr.bf16.mxu0 %v949
        %1209 = vmatpush1.bf16.msra.mxu0 %v948
        %1210 = vmatprep.subr.bf16.mxu0 %v957
        %1211 = vmatpush1.bf16.msra.mxu0 %v956
        %1212 = vmatprep.subr.bf16.mxu0 %v965
        %1213 = vmatpush1.bf16.msra.mxu0 %v964
        %1214 = vmatprep.mubr.bf16.mxu0 %v453
        %1215 = vmatmul.mubr.bf16.gmra.mrb[0].mxu0 %v452
        %v1216 = vpop.f32.mrb[0].mxu0
        %v1217 = vadd.f32 %v425, %v1216
        %v1218 = vpop.f32.mrb[0].mxu0
        %v1219 = vadd.f32 %v429, %v1218
        %v1220 = vpop.f32.mrb[0].mxu0
        %v1221 = vadd.f32 %v425, %v1220
        %v1222 = vpop.f32.mrb[0].mxu0
        %v1223 = vadd.f32 %v429, %v1222
        %1224 = vdwg.mxu0
        %1225 = vmatprep.subr.bf16.mxu0 %v847
        %1226 = vmatpush1.bf16.msra.mxu0 %v846
        %1227 = vmatprep.subr.bf16.mxu0 %v855
        %1228 = vmatpush1.bf16.msra.mxu0 %v854
        %1229 = vmatprep.subr.bf16.mxu0 %v863
        %1230 = vmatpush1.bf16.msra.mxu0 %v862
        %1231 = vmatprep.subr.bf16.mxu0 %v871
        %1232 = vmatpush1.bf16.msra.mxu0 %v870
        %1233 = vmatprep.subr.bf16.mxu0 %v879
        %1234 = vmatpush1.bf16.msra.mxu0 %v878
        %1235 = vmatprep.subr.bf16.mxu0 %v887
        %1236 = vmatpush1.bf16.msra.mxu0 %v886
        %1237 = vmatprep.subr.bf16.mxu0 %v895
        %1238 = vmatpush1.bf16.msra.mxu0 %v894
        %1239 = vmatprep.subr.bf16.mxu0 %v903
        %1240 = vmatpush1.bf16.msra.mxu0 %v902
        %1241 = vmatprep.subr.bf16.mxu0 %v911
        %1242 = vmatpush1.bf16.msra.mxu0 %v910
        %1243 = vmatprep.subr.bf16.mxu0 %v919
        %1244 = vmatpush1.bf16.msra.mxu0 %v918
        %1245 = vmatprep.subr.bf16.mxu0 %v927
        %1246 = vmatpush1.bf16.msra.mxu0 %v926
        %1247 = vmatprep.subr.bf16.mxu0 %v935
        %1248 = vmatpush1.bf16.msra.mxu0 %v934
        %1249 = vmatprep.subr.bf16.mxu0 %v943
        %1250 = vmatpush1.bf16.msra.mxu0 %v942
        %1251 = vmatprep.subr.bf16.mxu0 %v951
        %1252 = vmatpush1.bf16.msra.mxu0 %v950
        %1253 = vmatprep.subr.bf16.mxu0 %v959
        %1254 = vmatpush1.bf16.msra.mxu0 %v958
        %1255 = vmatprep.subr.bf16.mxu0 %v967
        %1256 = vmatpush1.bf16.msra.mxu0 %v966
        %1257 = vmatprep.mubr.bf16.mxu0 %v453
        %1258 = vmatmul.mubr.bf16.gmra.mrb[0].mxu0 %v452
        %v1259 = vpop.f32.mrb[0].mxu0
        %v1260 = vadd.f32 %v433, %v1259
        %v1261 = vpop.f32.mrb[0].mxu0
        %v1262 = vadd.f32 %v437, %v1261
        %v1263 = vpop.f32.mrb[0].mxu0
        %v1264 = vadd.f32 %v433, %v1263
        %v1265 = vpop.f32.mrb[0].mxu0
        %v1266 = vadd.f32 %v437, %v1265
        %1267 = vdwg.mxu0
        %v1268 = vmax.f32 %v1131, 0.0
        %v1269 = vmax.f32 %v1133, 0.0
        %v1270 = vmax.f32 %v1174, 0.0
        %v1271 = vmax.f32 %v1176, 0.0
        %v1272 = vmax.f32 %v1217, 0.0
        %v1273 = vmax.f32 %v1219, 0.0
        %v1274 = vmax.f32 %v1260, 0.0
        %v1275 = vmax.f32 %v1262, 0.0
        %v1276 = vmax.f32 %v1135, 0.0
        %v1277 = vmax.f32 %v1137, 0.0
        %v1278 = vmax.f32 %v1178, 0.0
        %v1279 = vmax.f32 %v1180, 0.0
        %v1280 = vmax.f32 %v1221, 0.0
        %v1281 = vmax.f32 %v1223, 0.0
        %v1282 = vmax.f32 %v1264, 0.0
        %v1283 = vmax.f32 %v1266, 0.0
        %s1284 = smul.u32 %s25, 16
        %v1285 = vlaneseq
        %v1286 = vshrl.u32 %v1285, 7
        %v1287 = vadd.s32 %v1286, 8
        %v1288 = vstv %s1284
        %v1289 = vadd.s32 %v1288, %v1286
        %v1290 = vadd.s32 %v1288, %v1287
        %vm1291 = vcmp.lt.s32.totalorder %v1289, 16
        %vm1292 = vcmp.lt.s32.totalorder %v1290, 16
        %v1293 = vsel %vm1291, 1, 0
        %v1294 = vsel %vm1292, 1, 0
        %vm1295 = vcmp.eq.s32.totalorder %v1293, 1
        %vm1296 = vcmp.eq.s32.totalorder %v1294, 1
        %v1297 = vsel %vm1295, %v1268, 0.0
        %v1298 = vsel %vm1295, %v1269, 0.0
        %v1299 = vsel %vm1295, %v1270, 0.0
        %v1300 = vsel %vm1295, %v1271, 0.0
        %v1301 = vsel %vm1295, %v1272, 0.0
        %v1302 = vsel %vm1295, %v1273, 0.0
        %v1303 = vsel %vm1295, %v1274, 0.0
        %v1304 = vsel %vm1295, %v1275, 0.0
        %v1305 = vsel %vm1296, %v1276, 0.0
        %v1306 = vsel %vm1296, %v1277, 0.0
        %v1307 = vsel %vm1296, %v1278, 0.0
        %v1308 = vsel %vm1296, %v1279, 0.0
        %v1309 = vsel %vm1296, %v1280, 0.0
        %v1310 = vsel %vm1296, %v1281, 0.0
        %v1311 = vsel %vm1296, %v1282, 0.0
        %v1312 = vsel %vm1296, %v1283, 0.0
        %v1313 = vld [vmem:[#allocation2] sm:$0xff]
        %v1314 = vadd.f32 %v1297, %v1305
        %v1315 = vrot.slane %v1314, 4
        %v1316 = vadd.f32 %v1314, %v1315
        %v1317 = vrot.slane %v1316, 2
        %v1318 = vadd.f32 %v1316, %v1317
        %v1319 = vrot.slane %v1318, 1
        %v1320 = vadd.f32 %v1318, %v1319
        %v1321 = vadd.f32 %v1298, %v1306
        %v1322 = vrot.slane %v1321, 4
        %v1323 = vadd.f32 %v1321, %v1322
        %v1324 = vrot.slane %v1323, 2
        %v1325 = vadd.f32 %v1323, %v1324
        %v1326 = vrot.slane %v1325, 1
        %v1327 = vadd.f32 %v1325, %v1326
        %v1328 = vadd.f32 %v1299, %v1307
        %v1329 = vrot.slane %v1328, 4
        %v1330 = vadd.f32 %v1328, %v1329
        %v1331 = vrot.slane %v1330, 2
        %v1332 = vadd.f32 %v1330, %v1331
        %v1333 = vrot.slane %v1332, 1
        %v1334 = vadd.f32 %v1332, %v1333
        %v1335 = vadd.f32 %v1300, %v1308
        %v1336 = vrot.slane %v1335, 4
        %v1337 = vadd.f32 %v1335, %v1336
        %v1338 = vrot.slane %v1337, 2
        %v1339 = vadd.f32 %v1337, %v1338
        %v1340 = vrot.slane %v1339, 1
        %v1341 = vadd.f32 %v1339, %v1340
        %v1342 = vadd.f32 %v1301, %v1309
        %v1343 = vrot.slane %v1342, 4
        %v1344 = vadd.f32 %v1342, %v1343
        %v1345 = vrot.slane %v1344, 2
        %v1346 = vadd.f32 %v1344, %v1345
        %v1347 = vrot.slane %v1346, 1
        %v1348 = vadd.f32 %v1346, %v1347
        %v1349 = vadd.f32 %v1302, %v1310
        %v1350 = vrot.slane %v1349, 4
        %v1351 = vadd.f32 %v1349, %v1350
        %v1352 = vrot.slane %v1351, 2
        %v1353 = vadd.f32 %v1351, %v1352
        %v1354 = vrot.slane %v1353, 1
        %v1355 = vadd.f32 %v1353, %v1354
        %v1356 = vadd.f32 %v1303, %v1311
        %v1357 = vrot.slane %v1356, 4
        %v1358 = vadd.f32 %v1356, %v1357
        %v1359 = vrot.slane %v1358, 2
        %v1360 = vadd.f32 %v1358, %v1359
        %v1361 = vrot.slane %v1360, 1
        %v1362 = vadd.f32 %v1360, %v1361
        %v1363 = vadd.f32 %v1304, %v1312
        %v1364 = vrot.slane %v1363, 4
        %v1365 = vadd.f32 %v1363, %v1364
        %v1366 = vrot.slane %v1365, 2
        %v1367 = vadd.f32 %v1365, %v1366
        %v1368 = vrot.slane %v1367, 1
        %v1369 = vadd.f32 %v1367, %v1368
        %v1378 = vcombine.low %v1320, %v1327
        %v1379 = vcombine.low %v1334, %v1341
        %v1380 = vcombine.low %v1348, %v1355
        %v1381 = vcombine.low %v1362, %v1369
        %v1383 = vunpack.c.l.s4 1966171168
        %v1384 = vunpack.c.0.s8 %v1383
        %v1385 = vlaneseq
        %v1386 = vshrl.u32 %v1385, 7
        %v1387 = vsub.s32 %v1384, %v1386
        %v1388 = vrot.slane %v1378, %v1387
        %v1390 = vunpack.c.l.s4 1966171168
        %v1391 = vunpack.c.0.s8 %v1390
        %v1392 = vlaneseq
        %v1393 = vshrl.u32 %v1392, 7
        %v1394 = vsub.s32 %v1391, %v1393
        %v1395 = vrot.slane %v1379, %v1394
        %v1397 = vunpack.c.l.s4 1966171168
        %v1398 = vunpack.c.0.s8 %v1397
        %v1399 = vlaneseq
        %v1400 = vshrl.u32 %v1399, 7
        %v1401 = vsub.s32 %v1398, %v1400
        %v1402 = vrot.slane %v1380, %v1401
        %v1404 = vunpack.c.l.s4 1966171168
        %v1405 = vunpack.c.0.s8 %v1404
        %v1406 = vlaneseq
        %v1407 = vshrl.u32 %v1406, 7
        %v1408 = vsub.s32 %v1405, %v1407
        %v1409 = vrot.slane %v1381, %v1408
        %v1410 = vcombine.low %v1388, %v1395
        %v1411 = vcombine.low %v1402, %v1409
        %v1413 = vunpack.c.l.s4 1966171168
        %v1414 = vunpack.c.0.s8 %v1413
        %v1415 = vlaneseq
        %v1416 = vshrl.u32 %v1415, 7
        %v1417 = vsub.s32 %v1414, %v1416
        %v1418 = vrot.slane %v1410, %v1417
        %v1420 = vunpack.c.l.s4 1966171168
        %v1421 = vunpack.c.0.s8 %v1420
        %v1422 = vlaneseq
        %v1423 = vshrl.u32 %v1422, 7
        %v1424 = vsub.s32 %v1421, %v1423
        %v1425 = vrot.slane %v1411, %v1424
        %v1426 = vcombine.low %v1418, %v1425
        %v1428 = vadd.f32 %v1313, %v1426
        %1429 = vst [vmem:[#allocation2] sm:$0xff] %v1428
        // Predicated region
        $region45: #{forward.5} parent=39 // pred_check
          %p1430 = pneg %p269
        $region46: #{forward.5} parent=39 // pred_check_branch
          %1432 = sbr.rel (%p1430) target = $region48
        $region47: #{forward.5} parent=39 // pred_region
          %v1433 = vld [vmem:[#allocation2] sm:$0xff]
          %v1434 = vmul.f32 %v1433, 0.0625
          %s1435 = sshra.s32 %s24, 1
          %s1436 = sand.u32 %s24, 1
          %s1437 = sshra.s32 %s24, 1
          %s1438 = sand.u32 %s24, 1
          %s1439 = smul.u32 %s1435, 8
          %s1440 = smul.u32 %s1439, 2
          %s1441 = sadd.s32 %s1440, %s1438
          %s1442 = scalar_lea.vmem [#allocation5], %s1441
          %1443 = vst [vmem:[%s1442] ss:$2 sm:$0xff] %v1434
          %v1445 = vlaneseq
          %v1446 = vshrl.u32 %v1445, 7
          %v1447 = vsub.s32 0, %v1446
          %v1448 = vrot.slane %v1434, %v1447
          %v1449 = vlaneseq
          %v1450 = vshrl.u32 %v1449, 7
          %v1451 = vsub.s32 1, %v1450
          %v1452 = vrot.slane %v1434, %v1451
          %v1453 = vlaneseq
          %v1454 = vshrl.u32 %v1453, 7
          %v1455 = vsub.s32 2, %v1454
          %v1456 = vrot.slane %v1434, %v1455
          %v1457 = vlaneseq
          %v1458 = vshrl.u32 %v1457, 7
          %v1459 = vsub.s32 3, %v1458
          %v1460 = vrot.slane %v1434, %v1459
          %v1461 = vlaneseq
          %v1462 = vshrl.u32 %v1461, 7
          %v1463 = vsub.s32 4, %v1462
          %v1464 = vrot.slane %v1434, %v1463
          %v1465 = vlaneseq
          %v1466 = vshrl.u32 %v1465, 7
          %v1467 = vsub.s32 5, %v1466
          %v1468 = vrot.slane %v1434, %v1467
          %v1469 = vlaneseq
          %v1470 = vshrl.u32 %v1469, 7
          %v1471 = vsub.s32 6, %v1470
          %v1472 = vrot.slane %v1434, %v1471
          %v1473 = vlaneseq
          %v1474 = vshrl.u32 %v1473, 7
          %v1475 = vsub.s32 7, %v1474
          %v1476 = vrot.slane %v1434, %v1475
          %v1485 = vpack.c.bf16 %v1448, %v1448
          %v1486 = vpack.c.bf16 %v1452, %v1452
          %v1487 = vpack.c.bf16 %v1456, %v1456
          %v1488 = vpack.c.bf16 %v1460, %v1460
          %v1489 = vpack.c.bf16 %v1464, %v1464
          %v1490 = vpack.c.bf16 %v1468, %v1468
          %v1491 = vpack.c.bf16 %v1472, %v1472
          %v1492 = vpack.c.bf16 %v1476, %v1476
          %v1493 = vld [vmem:[%s3] sm:$0xf]
          %v1494 = vld [vmem:[%s3 + $0x4] sm:$0xf]
          %v1495 = vld [vmem:[%s3 + $0x8] sm:$0xf]
          %v1496 = vld [vmem:[%s3 + $0xc] sm:$0xf]
          %v1497 = vld [vmem:[%s3 + $0x10] sm:$0xf]
          %v1498 = vld [vmem:[%s3 + $0x14] sm:$0xf]
          %v1499 = vld [vmem:[%s3 + $0x18] sm:$0xf]
          %v1500 = vld [vmem:[%s3 + $0x1c] sm:$0xf]
          %v1501 = vld [vmem:[%s3 + $0x20] sm:$0xf]
          %v1502 = vld [vmem:[%s3 + $0x24] sm:$0xf]
          %v1503 = vld [vmem:[%s3 + $0x28] sm:$0xf]
          %v1504 = vld [vmem:[%s3 + $0x2c] sm:$0xf]
          %v1505 = vld [vmem:[%s3 + $0x30] sm:$0xf]
          %v1506 = vld [vmem:[%s3 + $0x34] sm:$0xf]
          %v1507 = vld [vmem:[%s3 + $0x38] sm:$0xf]
          %v1508 = vld [vmem:[%s3 + $0x3c] sm:$0xf]
          %v1509 = vld [vmem:[%s3 + $0x40] sm:$0xf]
          %v1510 = vld [vmem:[%s3 + $0x44] sm:$0xf]
          %v1511 = vld [vmem:[%s3 + $0x48] sm:$0xf]
          %v1512 = vld [vmem:[%s3 + $0x4c] sm:$0xf]
          %v1513 = vld [vmem:[%s3 + $0x50] sm:$0xf]
          %v1514 = vld [vmem:[%s3 + $0x54] sm:$0xf]
          %v1515 = vld [vmem:[%s3 + $0x58] sm:$0xf]
          %v1516 = vld [vmem:[%s3 + $0x5c] sm:$0xf]
          %v1517 = vld [vmem:[%s3 + $0x60] sm:$0xf]
          %v1518 = vld [vmem:[%s3 + $0x64] sm:$0xf]
          %v1519 = vld [vmem:[%s3 + $0x68] sm:$0xf]
          %v1520 = vld [vmem:[%s3 + $0x6c] sm:$0xf]
          %v1521 = vld [vmem:[%s3 + $0x70] sm:$0xf]
          %v1522 = vld [vmem:[%s3 + $0x74] sm:$0xf]
          %v1523 = vld [vmem:[%s3 + $0x78] sm:$0xf]
          %v1524 = vld [vmem:[%s3 + $0x7c] sm:$0xf]
          %v1525 = vld [vmem:[%s3 + $0x80] sm:$0xf]
          %v1526 = vld [vmem:[%s3 + $0x84] sm:$0xf]
          %v1527 = vld [vmem:[%s3 + $0x88] sm:$0xf]
          %v1528 = vld [vmem:[%s3 + $0x8c] sm:$0xf]
          %v1529 = vld [vmem:[%s3 + $0x90] sm:$0xf]
          %v1530 = vld [vmem:[%s3 + $0x94] sm:$0xf]
          %v1531 = vld [vmem:[%s3 + $0x98] sm:$0xf]
          %v1532 = vld [vmem:[%s3 + $0x9c] sm:$0xf]
          %v1533 = vld [vmem:[%s3 + $0xa0] sm:$0xf]
          %v1534 = vld [vmem:[%s3 + $0xa4] sm:$0xf]
          %v1535 = vld [vmem:[%s3 + $0xa8] sm:$0xf]
          %v1536 = vld [vmem:[%s3 + $0xac] sm:$0xf]
          %v1537 = vld [vmem:[%s3 + $0xb0] sm:$0xf]
          %v1538 = vld [vmem:[%s3 + $0xb4] sm:$0xf]
          %v1539 = vld [vmem:[%s3 + $0xb8] sm:$0xf]
          %v1540 = vld [vmem:[%s3 + $0xbc] sm:$0xf]
          %v1541 = vld [vmem:[%s3 + $0xc0] sm:$0xf]
          %v1542 = vld [vmem:[%s3 + $0xc4] sm:$0xf]
          %v1543 = vld [vmem:[%s3 + $0xc8] sm:$0xf]
          %v1544 = vld [vmem:[%s3 + $0xcc] sm:$0xf]
          %v1545 = vld [vmem:[%s3 + $0xd0] sm:$0xf]
          %v1546 = vld [vmem:[%s3 + $0xd4] sm:$0xf]
          %v1547 = vld [vmem:[%s3 + $0xd8] sm:$0xf]
          %v1548 = vld [vmem:[%s3 + $0xdc] sm:$0xf]
          %v1549 = vld [vmem:[%s3 + $0xe0] sm:$0xf]
          %v1550 = vld [vmem:[%s3 + $0xe4] sm:$0xf]
          %v1551 = vld [vmem:[%s3 + $0xe8] sm:$0xf]
          %v1552 = vld [vmem:[%s3 + $0xec] sm:$0xf]
          %v1553 = vld [vmem:[%s3 + $0xf0] sm:$0xf]
          %v1554 = vld [vmem:[%s3 + $0xf4] sm:$0xf]
          %v1555 = vld [vmem:[%s3 + $0xf8] sm:$0xf]
          %v1556 = vld [vmem:[%s3 + $0xfc] sm:$0xf]
          %v1557 = vld [vmem:[%s3 + $0x100] sm:$0xf]
          %v1558 = vld [vmem:[%s3 + $0x104] sm:$0xf]
          %v1559 = vld [vmem:[%s3 + $0x108] sm:$0xf]
          %v1560 = vld [vmem:[%s3 + $0x10c] sm:$0xf]
          %v1561 = vld [vmem:[%s3 + $0x110] sm:$0xf]
          %v1562 = vld [vmem:[%s3 + $0x114] sm:$0xf]
          %v1563 = vld [vmem:[%s3 + $0x118] sm:$0xf]
          %v1564 = vld [vmem:[%s3 + $0x11c] sm:$0xf]
          %v1565 = vld [vmem:[%s3 + $0x120] sm:$0xf]
          %v1566 = vld [vmem:[%s3 + $0x124] sm:$0xf]
          %v1567 = vld [vmem:[%s3 + $0x128] sm:$0xf]
          %v1568 = vld [vmem:[%s3 + $0x12c] sm:$0xf]
          %v1569 = vld [vmem:[%s3 + $0x130] sm:$0xf]
          %v1570 = vld [vmem:[%s3 + $0x134] sm:$0xf]
          %v1571 = vld [vmem:[%s3 + $0x138] sm:$0xf]
          %v1572 = vld [vmem:[%s3 + $0x13c] sm:$0xf]
          %v1573 = vld [vmem:[%s3 + $0x140] sm:$0xf]
          %v1574 = vld [vmem:[%s3 + $0x144] sm:$0xf]
          %v1575 = vld [vmem:[%s3 + $0x148] sm:$0xf]
          %v1576 = vld [vmem:[%s3 + $0x14c] sm:$0xf]
          %v1577 = vld [vmem:[%s3 + $0x150] sm:$0xf]
          %v1578 = vld [vmem:[%s3 + $0x154] sm:$0xf]
          %v1579 = vld [vmem:[%s3 + $0x158] sm:$0xf]
          %v1580 = vld [vmem:[%s3 + $0x15c] sm:$0xf]
          %v1581 = vld [vmem:[%s3 + $0x160] sm:$0xf]
          %v1582 = vld [vmem:[%s3 + $0x164] sm:$0xf]
          %v1583 = vld [vmem:[%s3 + $0x168] sm:$0xf]
          %v1584 = vld [vmem:[%s3 + $0x16c] sm:$0xf]
          %v1585 = vld [vmem:[%s3 + $0x170] sm:$0xf]
          %v1586 = vld [vmem:[%s3 + $0x174] sm:$0xf]
          %v1587 = vld [vmem:[%s3 + $0x178] sm:$0xf]
          %v1588 = vld [vmem:[%s3 + $0x17c] sm:$0xf]
          %v1589 = vld [vmem:[%s3 + $0x180] sm:$0xf]
          %v1590 = vld [vmem:[%s3 + $0x184] sm:$0xf]
          %v1591 = vld [vmem:[%s3 + $0x188] sm:$0xf]
          %v1592 = vld [vmem:[%s3 + $0x18c] sm:$0xf]
          %v1593 = vld [vmem:[%s3 + $0x190] sm:$0xf]
          %v1594 = vld [vmem:[%s3 + $0x194] sm:$0xf]
          %v1595 = vld [vmem:[%s3 + $0x198] sm:$0xf]
          %v1596 = vld [vmem:[%s3 + $0x19c] sm:$0xf]
          %v1597 = vld [vmem:[%s3 + $0x1a0] sm:$0xf]
          %v1598 = vld [vmem:[%s3 + $0x1a4] sm:$0xf]
          %v1599 = vld [vmem:[%s3 + $0x1a8] sm:$0xf]
          %v1600 = vld [vmem:[%s3 + $0x1ac] sm:$0xf]
          %v1601 = vld [vmem:[%s3 + $0x1b0] sm:$0xf]
          %v1602 = vld [vmem:[%s3 + $0x1b4] sm:$0xf]
          %v1603 = vld [vmem:[%s3 + $0x1b8] sm:$0xf]
          %v1604 = vld [vmem:[%s3 + $0x1bc] sm:$0xf]
          %v1605 = vld [vmem:[%s3 + $0x1c0] sm:$0xf]
          %v1606 = vld [vmem:[%s3 + $0x1c4] sm:$0xf]
          %v1607 = vld [vmem:[%s3 + $0x1c8] sm:$0xf]
          %v1608 = vld [vmem:[%s3 + $0x1cc] sm:$0xf]
          %v1609 = vld [vmem:[%s3 + $0x1d0] sm:$0xf]
          %v1610 = vld [vmem:[%s3 + $0x1d4] sm:$0xf]
          %v1611 = vld [vmem:[%s3 + $0x1d8] sm:$0xf]
          %v1612 = vld [vmem:[%s3 + $0x1dc] sm:$0xf]
          %v1613 = vld [vmem:[%s3 + $0x1e0] sm:$0xf]
          %v1614 = vld [vmem:[%s3 + $0x1e4] sm:$0xf]
          %v1615 = vld [vmem:[%s3 + $0x1e8] sm:$0xf]
          %v1616 = vld [vmem:[%s3 + $0x1ec] sm:$0xf]
          %v1617 = vld [vmem:[%s3 + $0x1f0] sm:$0xf]
          %v1618 = vld [vmem:[%s3 + $0x1f4] sm:$0xf]
          %v1619 = vld [vmem:[%s3 + $0x1f8] sm:$0xf]
          %v1620 = vld [vmem:[%s3 + $0x1fc] sm:$0xf]
          %v1621 = vld [vmem:[%s4] sm:$0x1]
          %v1750 = vunpack.c.l.b16 %v1493
          %v1751 = vunpack.c.l.b16 %v1494
          %v1752 = vunpack.c.l.b16 %v1495
          %v1753 = vunpack.c.l.b16 %v1496
          %v1754 = vunpack.c.l.b16 %v1497
          %v1755 = vunpack.c.l.b16 %v1498
          %v1756 = vunpack.c.l.b16 %v1499
          %v1757 = vunpack.c.l.b16 %v1500
          %v1758 = vunpack.c.l.b16 %v1501
          %v1759 = vunpack.c.l.b16 %v1502
          %v1760 = vunpack.c.l.b16 %v1503
          %v1761 = vunpack.c.l.b16 %v1504
          %v1762 = vunpack.c.l.b16 %v1505
          %v1763 = vunpack.c.l.b16 %v1506
          %v1764 = vunpack.c.l.b16 %v1507
          %v1765 = vunpack.c.l.b16 %v1508
          %v1766 = vunpack.c.l.b16 %v1509
          %v1767 = vunpack.c.l.b16 %v1510
          %v1768 = vunpack.c.l.b16 %v1511
          %v1769 = vunpack.c.l.b16 %v1512
          %v1770 = vunpack.c.l.b16 %v1513
          %v1771 = vunpack.c.l.b16 %v1514
          %v1772 = vunpack.c.l.b16 %v1515
          %v1773 = vunpack.c.l.b16 %v1516
          %v1774 = vunpack.c.l.b16 %v1517
          %v1775 = vunpack.c.l.b16 %v1518
          %v1776 = vunpack.c.l.b16 %v1519
          %v1777 = vunpack.c.l.b16 %v1520
          %v1778 = vunpack.c.l.b16 %v1521
          %v1779 = vunpack.c.l.b16 %v1522
          %v1780 = vunpack.c.l.b16 %v1523
          %v1781 = vunpack.c.l.b16 %v1524
          %v1782 = vunpack.c.l.b16 %v1525
          %v1783 = vunpack.c.l.b16 %v1526
          %v1784 = vunpack.c.l.b16 %v1527
          %v1785 = vunpack.c.l.b16 %v1528
          %v1786 = vunpack.c.l.b16 %v1529
          %v1787 = vunpack.c.l.b16 %v1530
          %v1788 = vunpack.c.l.b16 %v1531
          %v1789 = vunpack.c.l.b16 %v1532
          %v1790 = vunpack.c.l.b16 %v1533
          %v1791 = vunpack.c.l.b16 %v1534
          %v1792 = vunpack.c.l.b16 %v1535
          %v1793 = vunpack.c.l.b16 %v1536
          %v1794 = vunpack.c.l.b16 %v1537
          %v1795 = vunpack.c.l.b16 %v1538
          %v1796 = vunpack.c.l.b16 %v1539
          %v1797 = vunpack.c.l.b16 %v1540
          %v1798 = vunpack.c.l.b16 %v1541
          %v1799 = vunpack.c.l.b16 %v1542
          %v1800 = vunpack.c.l.b16 %v1543
          %v1801 = vunpack.c.l.b16 %v1544
          %v1802 = vunpack.c.l.b16 %v1545
          %v1803 = vunpack.c.l.b16 %v1546
          %v1804 = vunpack.c.l.b16 %v1547
          %v1805 = vunpack.c.l.b16 %v1548
          %v1806 = vunpack.c.l.b16 %v1549
          %v1807 = vunpack.c.l.b16 %v1550
          %v1808 = vunpack.c.l.b16 %v1551
          %v1809 = vunpack.c.l.b16 %v1552
          %v1810 = vunpack.c.l.b16 %v1553
          %v1811 = vunpack.c.l.b16 %v1554
          %v1812 = vunpack.c.l.b16 %v1555
          %v1813 = vunpack.c.l.b16 %v1556
          %v1814 = vunpack.c.l.b16 %v1557
          %v1815 = vunpack.c.l.b16 %v1558
          %v1816 = vunpack.c.l.b16 %v1559
          %v1817 = vunpack.c.l.b16 %v1560
          %v1818 = vunpack.c.l.b16 %v1561
          %v1819 = vunpack.c.l.b16 %v1562
          %v1820 = vunpack.c.l.b16 %v1563
          %v1821 = vunpack.c.l.b16 %v1564
          %v1822 = vunpack.c.l.b16 %v1565
          %v1823 = vunpack.c.l.b16 %v1566
          %v1824 = vunpack.c.l.b16 %v1567
          %v1825 = vunpack.c.l.b16 %v1568
          %v1826 = vunpack.c.l.b16 %v1569
          %v1827 = vunpack.c.l.b16 %v1570
          %v1828 = vunpack.c.l.b16 %v1571
          %v1829 = vunpack.c.l.b16 %v1572
          %v1830 = vunpack.c.l.b16 %v1573
          %v1831 = vunpack.c.l.b16 %v1574
          %v1832 = vunpack.c.l.b16 %v1575
          %v1833 = vunpack.c.l.b16 %v1576
          %v1834 = vunpack.c.l.b16 %v1577
          %v1835 = vunpack.c.l.b16 %v1578
          %v1836 = vunpack.c.l.b16 %v1579
          %v1837 = vunpack.c.l.b16 %v1580
          %v1838 = vunpack.c.l.b16 %v1581
          %v1839 = vunpack.c.l.b16 %v1582
          %v1840 = vunpack.c.l.b16 %v1583
          %v1841 = vunpack.c.l.b16 %v1584
          %v1842 = vunpack.c.l.b16 %v1585
          %v1843 = vunpack.c.l.b16 %v1586
          %v1844 = vunpack.c.l.b16 %v1587
          %v1845 = vunpack.c.l.b16 %v1588
          %v1846 = vunpack.c.l.b16 %v1589
          %v1847 = vunpack.c.l.b16 %v1590
          %v1848 = vunpack.c.l.b16 %v1591
          %v1849 = vunpack.c.l.b16 %v1592
          %v1850 = vunpack.c.l.b16 %v1593
          %v1851 = vunpack.c.l.b16 %v1594
          %v1852 = vunpack.c.l.b16 %v1595
          %v1853 = vunpack.c.l.b16 %v1596
          %v1854 = vunpack.c.l.b16 %v1597
          %v1855 = vunpack.c.l.b16 %v1598
          %v1856 = vunpack.c.l.b16 %v1599
          %v1857 = vunpack.c.l.b16 %v1600
          %v1858 = vunpack.c.l.b16 %v1601
          %v1859 = vunpack.c.l.b16 %v1602
          %v1860 = vunpack.c.l.b16 %v1603
          %v1861 = vunpack.c.l.b16 %v1604
          %v1862 = vunpack.c.l.b16 %v1605
          %v1863 = vunpack.c.l.b16 %v1606
          %v1864 = vunpack.c.l.b16 %v1607
          %v1865 = vunpack.c.l.b16 %v1608
          %v1866 = vunpack.c.l.b16 %v1609
          %v1867 = vunpack.c.l.b16 %v1610
          %v1868 = vunpack.c.l.b16 %v1611
          %v1869 = vunpack.c.l.b16 %v1612
          %v1870 = vunpack.c.l.b16 %v1613
          %v1871 = vunpack.c.l.b16 %v1614
          %v1872 = vunpack.c.l.b16 %v1615
          %v1873 = vunpack.c.l.b16 %v1616
          %v1874 = vunpack.c.l.b16 %v1617
          %v1875 = vunpack.c.l.b16 %v1618
          %v1876 = vunpack.c.l.b16 %v1619
          %v1877 = vunpack.c.l.b16 %v1620
          %v1878 = vpack.c.b16 %v1751, %v1750
          %v1879 = vpack.c.b16 %v1753, %v1752
          %v1880 = vpack.c.b16 %v1755, %v1754
          %v1881 = vpack.c.b16 %v1757, %v1756
          %v1882 = vpack.c.b16 %v1759, %v1758
          %v1883 = vpack.c.b16 %v1761, %v1760
          %v1884 = vpack.c.b16 %v1763, %v1762
          %v1885 = vpack.c.b16 %v1765, %v1764
          %v1886 = vpack.c.b16 %v1767, %v1766
          %v1887 = vpack.c.b16 %v1769, %v1768
          %v1888 = vpack.c.b16 %v1771, %v1770
          %v1889 = vpack.c.b16 %v1773, %v1772
          %v1890 = vpack.c.b16 %v1775, %v1774
          %v1891 = vpack.c.b16 %v1777, %v1776
          %v1892 = vpack.c.b16 %v1779, %v1778
          %v1893 = vpack.c.b16 %v1781, %v1780
          %v1894 = vpack.c.b16 %v1783, %v1782
          %v1895 = vpack.c.b16 %v1785, %v1784
          %v1896 = vpack.c.b16 %v1787, %v1786
          %v1897 = vpack.c.b16 %v1789, %v1788
          %v1898 = vpack.c.b16 %v1791, %v1790
          %v1899 = vpack.c.b16 %v1793, %v1792
          %v1900 = vpack.c.b16 %v1795, %v1794
          %v1901 = vpack.c.b16 %v1797, %v1796
          %v1902 = vpack.c.b16 %v1799, %v1798
          %v1903 = vpack.c.b16 %v1801, %v1800
          %v1904 = vpack.c.b16 %v1803, %v1802
          %v1905 = vpack.c.b16 %v1805, %v1804
          %v1906 = vpack.c.b16 %v1807, %v1806
          %v1907 = vpack.c.b16 %v1809, %v1808
          %v1908 = vpack.c.b16 %v1811, %v1810
          %v1909 = vpack.c.b16 %v1813, %v1812
          %v1910 = vpack.c.b16 %v1815, %v1814
          %v1911 = vpack.c.b16 %v1817, %v1816
          %v1912 = vpack.c.b16 %v1819, %v1818
          %v1913 = vpack.c.b16 %v1821, %v1820
          %v1914 = vpack.c.b16 %v1823, %v1822
          %v1915 = vpack.c.b16 %v1825, %v1824
          %v1916 = vpack.c.b16 %v1827, %v1826
          %v1917 = vpack.c.b16 %v1829, %v1828
          %v1918 = vpack.c.b16 %v1831, %v1830
          %v1919 = vpack.c.b16 %v1833, %v1832
          %v1920 = vpack.c.b16 %v1835, %v1834
          %v1921 = vpack.c.b16 %v1837, %v1836
          %v1922 = vpack.c.b16 %v1839, %v1838
          %v1923 = vpack.c.b16 %v1841, %v1840
          %v1924 = vpack.c.b16 %v1843, %v1842
          %v1925 = vpack.c.b16 %v1845, %v1844
          %v1926 = vpack.c.b16 %v1847, %v1846
          %v1927 = vpack.c.b16 %v1849, %v1848
          %v1928 = vpack.c.b16 %v1851, %v1850
          %v1929 = vpack.c.b16 %v1853, %v1852
          %v1930 = vpack.c.b16 %v1855, %v1854
          %v1931 = vpack.c.b16 %v1857, %v1856
          %v1932 = vpack.c.b16 %v1859, %v1858
          %v1933 = vpack.c.b16 %v1861, %v1860
          %v1934 = vpack.c.b16 %v1863, %v1862
          %v1935 = vpack.c.b16 %v1865, %v1864
          %v1936 = vpack.c.b16 %v1867, %v1866
          %v1937 = vpack.c.b16 %v1869, %v1868
          %v1938 = vpack.c.b16 %v1871, %v1870
          %v1939 = vpack.c.b16 %v1873, %v1872
          %v1940 = vpack.c.b16 %v1875, %v1874
          %v1941 = vpack.c.b16 %v1877, %v1876
          %2006 = vmatprep.subr.bf16.mxu0 0
          %2007 = vmatpush1.bf16.msra.mxu0 %v1878
          %2008 = vmatprep.subr.bf16.mxu0 0
          %2009 = vmatpush1.bf16.msra.mxu0 %v1879
          %2010 = vmatprep.subr.bf16.mxu0 0
          %2011 = vmatpush1.bf16.msra.mxu0 %v1880
          %2012 = vmatprep.subr.bf16.mxu0 0
          %2013 = vmatpush1.bf16.msra.mxu0 %v1881
          %2014 = vmatprep.subr.bf16.mxu0 0
          %2015 = vmatpush1.bf16.msra.mxu0 %v1882
          %2016 = vmatprep.subr.bf16.mxu0 0
          %2017 = vmatpush1.bf16.msra.mxu0 %v1883
          %2018 = vmatprep.subr.bf16.mxu0 0
          %2019 = vmatpush1.bf16.msra.mxu0 %v1884
          %2020 = vmatprep.subr.bf16.mxu0 0
          %2021 = vmatpush1.bf16.msra.mxu0 %v1885
          %2022 = vmatprep.subr.bf16.mxu0 0
          %2023 = vmatpush1.bf16.msra.mxu0 %v1886
          %2024 = vmatprep.subr.bf16.mxu0 0
          %2025 = vmatpush1.bf16.msra.mxu0 %v1887
          %2026 = vmatprep.subr.bf16.mxu0 0
          %2027 = vmatpush1.bf16.msra.mxu0 %v1888
          %2028 = vmatprep.subr.bf16.mxu0 0
          %2029 = vmatpush1.bf16.msra.mxu0 %v1889
          %2030 = vmatprep.subr.bf16.mxu0 0
          %2031 = vmatpush1.bf16.msra.mxu0 %v1890
          %2032 = vmatprep.subr.bf16.mxu0 0
          %2033 = vmatpush1.bf16.msra.mxu0 %v1891
          %2034 = vmatprep.subr.bf16.mxu0 0
          %2035 = vmatpush1.bf16.msra.mxu0 %v1892
          %2036 = vmatprep.subr.bf16.mxu0 0
          %2037 = vmatpush1.bf16.msra.mxu0 %v1893
          %2038 = vmatprep.mubr.bf16.mxu0 %v1486
          %2039 = vmatmul.mubr.bf16.gmra.mrb[0].mxu0 %v1485
          %v2040 = vpop.f32.mrb[0].mxu0
          %v2041 = vadd.f32 %v1621, %v2040
          %v2042 = vpop.f32.mrb[0].mxu0
          %v2043 = vpop.f32.mrb[0].mxu0
          %v2044 = vpop.f32.mrb[0].mxu0
          %2045 = vdwg.mxu0
          %2046 = vmatprep.subr.bf16.mxu0 0
          %2047 = vmatpush1.bf16.msra.mxu0 %v1894
          %2048 = vmatprep.subr.bf16.mxu0 0
          %2049 = vmatpush1.bf16.msra.mxu0 %v1895
          %2050 = vmatprep.subr.bf16.mxu0 0
          %2051 = vmatpush1.bf16.msra.mxu0 %v1896
          %2052 = vmatprep.subr.bf16.mxu0 0
          %2053 = vmatpush1.bf16.msra.mxu0 %v1897
          %2054 = vmatprep.subr.bf16.mxu0 0
          %2055 = vmatpush1.bf16.msra.mxu0 %v1898
          %2056 = vmatprep.subr.bf16.mxu0 0
          %2057 = vmatpush1.bf16.msra.mxu0 %v1899
          %2058 = vmatprep.subr.bf16.mxu0 0
          %2059 = vmatpush1.bf16.msra.mxu0 %v1900
          %2060 = vmatprep.subr.bf16.mxu0 0
          %2061 = vmatpush1.bf16.msra.mxu0 %v1901
          %2062 = vmatprep.subr.bf16.mxu0 0
          %2063 = vmatpush1.bf16.msra.mxu0 %v1902
          %2064 = vmatprep.subr.bf16.mxu0 0
          %2065 = vmatpush1.bf16.msra.mxu0 %v1903
          %2066 = vmatprep.subr.bf16.mxu0 0
          %2067 = vmatpush1.bf16.msra.mxu0 %v1904
          %2068 = vmatprep.subr.bf16.mxu0 0
          %2069 = vmatpush1.bf16.msra.mxu0 %v1905
          %2070 = vmatprep.subr.bf16.mxu0 0
          %2071 = vmatpush1.bf16.msra.mxu0 %v1906
          %2072 = vmatprep.subr.bf16.mxu0 0
          %2073 = vmatpush1.bf16.msra.mxu0 %v1907
          %2074 = vmatprep.subr.bf16.mxu0 0
          %2075 = vmatpush1.bf16.msra.mxu0 %v1908
          %2076 = vmatprep.subr.bf16.mxu0 0
          %2077 = vmatpush1.bf16.msra.mxu0 %v1909
          %2078 = vmatprep.mubr.bf16.mxu0 %v1488
          %2079 = vmatmul.mubr.bf16.gmra.mrb[0].mxu0 %v1487
          %v2080 = vpop.f32.mrb[0].mxu0
          %v2081 = vadd.f32 %v2041, %v2080
          %v2082 = vpop.f32.mrb[0].mxu0
          %v2083 = vpop.f32.mrb[0].mxu0
          %v2084 = vpop.f32.mrb[0].mxu0
          %2085 = vdwg.mxu0
          %2086 = vmatprep.subr.bf16.mxu0 0
          %2087 = vmatpush1.bf16.msra.mxu0 %v1910
          %2088 = vmatprep.subr.bf16.mxu0 0
          %2089 = vmatpush1.bf16.msra.mxu0 %v1911
          %2090 = vmatprep.subr.bf16.mxu0 0
          %2091 = vmatpush1.bf16.msra.mxu0 %v1912
          %2092 = vmatprep.subr.bf16.mxu0 0
          %2093 = vmatpush1.bf16.msra.mxu0 %v1913
          %2094 = vmatprep.subr.bf16.mxu0 0
          %2095 = vmatpush1.bf16.msra.mxu0 %v1914
          %2096 = vmatprep.subr.bf16.mxu0 0
          %2097 = vmatpush1.bf16.msra.mxu0 %v1915
          %2098 = vmatprep.subr.bf16.mxu0 0
          %2099 = vmatpush1.bf16.msra.mxu0 %v1916
          %2100 = vmatprep.subr.bf16.mxu0 0
          %2101 = vmatpush1.bf16.msra.mxu0 %v1917
          %2102 = vmatprep.subr.bf16.mxu0 0
          %2103 = vmatpush1.bf16.msra.mxu0 %v1918
          %2104 = vmatprep.subr.bf16.mxu0 0
          %2105 = vmatpush1.bf16.msra.mxu0 %v1919
          %2106 = vmatprep.subr.bf16.mxu0 0
          %2107 = vmatpush1.bf16.msra.mxu0 %v1920
          %2108 = vmatprep.subr.bf16.mxu0 0
          %2109 = vmatpush1.bf16.msra.mxu0 %v1921
          %2110 = vmatprep.subr.bf16.mxu0 0
          %2111 = vmatpush1.bf16.msra.mxu0 %v1922
          %2112 = vmatprep.subr.bf16.mxu0 0
          %2113 = vmatpush1.bf16.msra.mxu0 %v1923
          %2114 = vmatprep.subr.bf16.mxu0 0
          %2115 = vmatpush1.bf16.msra.mxu0 %v1924
          %2116 = vmatprep.subr.bf16.mxu0 0
          %2117 = vmatpush1.bf16.msra.mxu0 %v1925
          %2118 = vmatprep.mubr.bf16.mxu0 %v1490
          %2119 = vmatmul.mubr.bf16.gmra.mrb[0].mxu0 %v1489
          %v2120 = vpop.f32.mrb[0].mxu0
          %v2121 = vadd.f32 %v2081, %v2120
          %v2122 = vpop.f32.mrb[0].mxu0
          %v2123 = vpop.f32.mrb[0].mxu0
          %v2124 = vpop.f32.mrb[0].mxu0
          %2125 = vdwg.mxu0
          %2126 = vmatprep.subr.bf16.mxu0 0
          %2127 = vmatpush1.bf16.msra.mxu0 %v1926
          %2128 = vmatprep.subr.bf16.mxu0 0
          %2129 = vmatpush1.bf16.msra.mxu0 %v1927
          %2130 = vmatprep.subr.bf16.mxu0 0
          %2131 = vmatpush1.bf16.msra.mxu0 %v1928
          %2132 = vmatprep.subr.bf16.mxu0 0
          %2133 = vmatpush1.bf16.msra.mxu0 %v1929
          %2134 = vmatprep.subr.bf16.mxu0 0
          %2135 = vmatpush1.bf16.msra.mxu0 %v1930
          %2136 = vmatprep.subr.bf16.mxu0 0
          %2137 = vmatpush1.bf16.msra.mxu0 %v1931
          %2138 = vmatprep.subr.bf16.mxu0 0
          %2139 = vmatpush1.bf16.msra.mxu0 %v1932
          %2140 = vmatprep.subr.bf16.mxu0 0
          %2141 = vmatpush1.bf16.msra.mxu0 %v1933
          %2142 = vmatprep.subr.bf16.mxu0 0
          %2143 = vmatpush1.bf16.msra.mxu0 %v1934
          %2144 = vmatprep.subr.bf16.mxu0 0
          %2145 = vmatpush1.bf16.msra.mxu0 %v1935
          %2146 = vmatprep.subr.bf16.mxu0 0
          %2147 = vmatpush1.bf16.msra.mxu0 %v1936
          %2148 = vmatprep.subr.bf16.mxu0 0
          %2149 = vmatpush1.bf16.msra.mxu0 %v1937
          %2150 = vmatprep.subr.bf16.mxu0 0
          %2151 = vmatpush1.bf16.msra.mxu0 %v1938
          %2152 = vmatprep.subr.bf16.mxu0 0
          %2153 = vmatpush1.bf16.msra.mxu0 %v1939
          %2154 = vmatprep.subr.bf16.mxu0 0
          %2155 = vmatpush1.bf16.msra.mxu0 %v1940
          %2156 = vmatprep.subr.bf16.mxu0 0
          %2157 = vmatpush1.bf16.msra.mxu0 %v1941
          %2158 = vmatprep.mubr.bf16.mxu0 %v1492
          %2159 = vmatmul.mubr.bf16.gmra.mrb[0].mxu0 %v1491
          %v2160 = vpop.f32.mrb[0].mxu0
          %v2161 = vadd.f32 %v2121, %v2160
          %v2162 = vpop.f32.mrb[0].mxu0
          %v2163 = vpop.f32.mrb[0].mxu0
          %v2164 = vpop.f32.mrb[0].mxu0
          %2165 = vdwg.mxu0
          %s2166 = scalar_lea.vmem [#allocation3], %s24
          %2167 = vst [vmem:[%s2166] sm:$0x1] %v2161
        $region48: #{forward.5} parent=39 // pred_fallthru
          _
        // Predicated region
        $region49: #{forward.5} parent=39 // pred_check
          %p2168 = pneg %p157
        $region50: #{forward.5} parent=39 // pred_check_branch
          %2170 = sbr.rel (%p2168) target = $region52
        $region51: #{forward.5} parent=39 // pred_region
          %s2172 = ssub.s32 32, 32
          %2173 = vsyncadd [#allocation4], %s2172
          %s2175 = sshll.u32 [#allocation3], 4
          %s2176 = int_to_ptr.vmem [resolvable:$true] %s2175
          %2178 = dma.vmem_to_hbm [thread:$0]  %s2176, 32, %s5, [#allocation4]
        $region52: #{forward.5} parent=39 // pred_fallthru
          _
        // Predicated region
        $region53: #{forward.5} parent=39 // pred_check
          %p2179 = pneg %p178
        $region54: #{forward.5} parent=39 // pred_check_branch
          %2181 = sbr.rel (%p2179) target = $region56
        $region55: #{forward.5} parent=39 // pred_region
          %s2183 = ssub.s32 256, 256
          %2184 = vsyncadd [#allocation6], %s2183
          %s2186 = sshll.u32 [#allocation5], 4
          %s2187 = int_to_ptr.vmem [resolvable:$true] %s2186
          %2189 = dma.vmem_to_hbm [thread:$0]  %s2187, 256, %s6, [#allocation6]
        $region56: #{forward.5} parent=39 // pred_fallthru
          _
        // Predicated region
        $region57: #{forward.5} parent=39 // pred_check
          %p2190 = pneg %p157
        $region58: #{forward.5} parent=39 // pred_check_branch
          %2192 = sbr.rel (%p2190) target = $region60
        $region59: #{forward.5} parent=39 // pred_region
          %2193 = dma.done [#allocation4], 32
        $region60: #{forward.5} parent=39 // pred_fallthru
          _
        // Predicated region
        $region61: #{forward.5} parent=39 // pred_check
          %p2194 = pneg %p178
        $region62: #{forward.5} parent=39 // pred_check_branch
          %2196 = sbr.rel (%p2194) target = $region64
        $region63: #{forward.5} parent=39 // pred_region
          %2197 = dma.done [#allocation6], 256
        $region64: #{forward.5} parent=39 // pred_fallthru
          _
      $region40: #{forward.5} parent=5 // pred_fallthru
        _
      %p2198 = scmp.le.s32.totalorder 2, %s15
      // Predicated region
      $region65: #{forward.5} parent=5 // pred_check
        %p2199 = pneg %p2198
      $region66: #{forward.5} parent=5 // pred_check_branch
        %2201 = sbr.rel (%p2199) target = $region68
      $region67: #{forward.5} parent=5 // pred_region
        %s2202 = ssub.s32 %s15, 2
      $region68: #{forward.5} parent=5 // pred_fallthru
        _
    $region6: #{forward.5} parent=1 // loop_footer
      %s19 = sadd.s32 1, %s15
    $region7: #{forward.5} parent=1 // loop_footer_branch
      %14 = sbr.rel target = $region3
    $region8: #{forward.5} parent=1 // loop_exit
      _
    %2203 = vsyncpa [#allocation4], 1
    %s2204 = scalar_lea.sflag [#allocation4], 1
    %2205 = vsyncpa %s2204, 1
    %2206 = vsyncpa [#allocation6], 1

</llo_original>
